<compile_context>
chip_gen: v5e
topology: v5e:2x2
jax: 0.10.0
libtpu: 0.0.40
codegen_flags: <defaults>
</compile_context>

<pallas_src>
import functools

import jax
import jax.numpy as jnp
from jax.experimental import pallas as pl
from jax.experimental.pallas import tpu as pltpu


def _round_up(x, m):
    return ((x + m - 1) // m) * m


# ---------------------------------------------------------------------------
# Tiled matmul: bf16 operands on the MXU, f32 accumulator, K innermost.
# Dims that fit in a single tile use the full (possibly unaligned) extent so
# small problems are never padded/copied.
# ---------------------------------------------------------------------------
def _matmul_kernel(a_ref, b_ref, o_ref, acc_ref):
    @pl.when(pl.program_id(2) == 0)
    def _():
        acc_ref[...] = jnp.zeros_like(acc_ref)

    acc_ref[...] += jnp.dot(a_ref[...], b_ref[...],
                            preferred_element_type=jnp.float32)

    @pl.when(pl.program_id(2) == pl.num_programs(2) - 1)
    def _():
        o_ref[...] = acc_ref[...].astype(o_ref.dtype)


def pallas_matmul(a, b, out_dtype=jnp.float32, tm=256, tn=256, tk=512):
    M, K = a.shape
    K2, N = b.shape
    assert K == K2

    def _fit(dim, tile, align):
        if dim <= tile:
            return dim, dim                      # one full-extent tile, no pad
        padded = _round_up(dim, align)
        t = (min(tile, padded) // align) * align
        while padded % t:
            t -= align
        return t, padded

    tm_, Mp = _fit(M, tm, 8)
    tn_, Np = _fit(N, tn, 128)
    tk_, Kp = _fit(K, tk, 128)

    a_p = a if (Mp == M and Kp == K) else jnp.pad(a, ((0, Mp - M), (0, Kp - K)))
    b_p = b if (Kp == K and Np == N) else jnp.pad(b, ((0, Kp - K), (0, Np - N)))

    out = pl.pallas_call(
        _matmul_kernel,
        out_shape=jax.ShapeDtypeStruct((Mp, Np), out_dtype),
        grid=(Mp // tm_, Np // tn_, Kp // tk_),
        in_specs=[pl.BlockSpec((tm_, tk_), lambda i, j, k: (i, k)),
                  pl.BlockSpec((tk_, tn_), lambda i, j, k: (k, j))],
        out_specs=pl.BlockSpec((tm_, tn_), lambda i, j, k: (i, j)),
        scratch_shapes=[pltpu.VMEM((tm_, tn_), jnp.float32)],
        compiler_params=pltpu.CompilerParams(
            dimension_semantics=("parallel", "parallel", "arbitrary")),
    )(a_p, b_p)
    return out[:M, :N] if (Mp != M or Np != N) else out


# ---------------------------------------------------------------------------
# Attention: cosine-normalized QK^T modulated by a per-head Gaussian of the
# relative spatial distance, then @ V.  Grid = (batch, q_tiles) with batch
# OUTER so the full qkv slab of a batch stays resident in VMEM across q tiles.
# ---------------------------------------------------------------------------
def _attention_kernel(factor_ref, qh_ref, qw_ref, ch_ref, cw_ref, invrs_ref,
                      qkv_ref, o_ref, kn_ref, *, smooth, G, D, tq):
    qi = pl.program_id(1)
    inner = G * D

    # Per-head inverse key norms depend only on the batch (outer axis):
    # compute once per batch at the first q tile and cache in VMEM scratch.
    @pl.when(qi == 0)
    def _():
        ones_row = jnp.ones((1, D), jnp.float32)
        for g in range(G):
            kg = qkv_ref[:, pl.ds(inner + g * D, D)].astype(jnp.float32)   # (N, D)
            kn_sq = jax.lax.dot_general(
                ones_row, kg * kg, (((1,), (1,)), ((), ())),
                preferred_element_type=jnp.float32)                        # (1, N)
            kn_ref[g] = jax.lax.rsqrt(kn_sq + smooth)

    # Relative-distance tile shared by all heads (recomputed per step: cheap
    # VPU/EUP work that overlaps the MXU; no (G, tq, N) cache needed).
    dh = qh_ref[...] - ch_ref[...]                                          # (tq, N)
    dw = qw_ref[...] - cw_ref[...]
    dis = dh * dh + dw * dw

    row0 = pl.multiple_of(qi * tq, tq)
    for g in range(G):
        qg = qkv_ref[pl.ds(row0, tq), pl.ds(g * D, D)]                      # (tq, D) bf16
        kg = qkv_ref[:, pl.ds(inner + g * D, D)]                            # (N,  D) bf16
        vg = qkv_ref[:, pl.ds(2 * inner + g * D, D)]                        # (N,  D) bf16

        # QK^T on the MXU without materializing k.T
        attn = jax.lax.dot_general(qg, kg, (((1,), (1,)), ((), ())),
                                   preferred_element_type=jnp.float32)      # (tq, N)

        q32 = qg.astype(jnp.float32)
        inv_qn = jax.lax.rsqrt(jnp.sum(q32 * q32, axis=-1, keepdims=True)
                               + smooth)                                    # (tq, 1)
        # Rank-1 cosine denominator (the reference's extra "+smooth" outside
        # the norm product is dropped: relative effect ~smooth/|q||k| << bf16 eps).
        cos_scale = inv_qn * kn_ref[g]                                      # (tq, N)

        # Gaussian modulation with its row-sum normalization precomputed
        # analytically in the wrapper (separable Gaussian).
        mod = jnp.exp(-factor_ref[g] * dis) * invrs_ref[:, pl.ds(g, 1)]     # (tq, N)

        attn = attn * cos_scale * mod
        o_ref[:, pl.ds(g * D, D)] = jnp.dot(
            attn.astype(vg.dtype), vg,
            preferred_element_type=jnp.float32).astype(o_ref.dtype)


def _gaussian_inv_rowsum(factor, H, W, Np):
    """1 / sum_keys exp(-f*((dh/H)^2+(dw/W)^2)) per (query, head), via the
    separable-Gaussian factorization.  Shape (Np, heads) f32 (padded with 1)."""
    hh = jnp.arange(H, dtype=jnp.float32) / float(H)
    ww = jnp.arange(W, dtype=jnp.float32) / float(W)
    dh2 = (hh[:, None] - hh[None, :]) ** 2
    dw2 = (ww[:, None] - ww[None, :]) ** 2
    sh = jnp.sum(jnp.exp(-factor[:, None, None] * dh2[None]), axis=-1)      # (G, H)
    sw = jnp.sum(jnp.exp(-factor[:, None, None] * dw2[None]), axis=-1)      # (G, W)
    rs = (sh[:, :, None] * sw[:, None, :]).reshape(factor.shape[0], H * W)  # (G, N)
    inv = (1.0 / rs).T                                                      # (N, G)
    if Np > H * W:
        inv = jnp.pad(inv, ((0, Np - H * W), (0, 0)), constant_values=1.0)
    return inv


def pallas_attention(qkv, factor, H, W, heads, dim_head, smooth):
    """qkv: (B, N, 3*heads*dim_head) bf16 in conv-channel order; -> (B, N, heads*dim_head)."""
    B, N, three_inner = qkv.shape
    G, D = heads, dim_head
    inner = G * D
    assert three_inner == 3 * inner

    tq = 128
    Np = _round_up(N, tq)
    n_q = Np // tq
    if Np != N:
        # Zero-padded key/value rows contribute exactly zero (k=0 -> attn col 0,
        # v=0), and the Gaussian row-sum is computed over the true grid only.
        qkv = jnp.pad(qkv, ((0, 0), (0, Np - N), (0, 0)))

    # O(N) spatial coordinates (pre-divided by H / W), as column + row vectors.
    ph = jnp.repeat(jnp.arange(H, dtype=jnp.float32) / float(H), W)          # (N,)
    pw = jnp.tile(jnp.arange(W, dtype=jnp.float32) / float(W), H)            # (N,)
    if Np != N:
        ph = jnp.pad(ph, (0, Np - N))
        pw = jnp.pad(pw, (0, Np - N))

    inv_rowsum = _gaussian_inv_rowsum(factor, H, W, Np)                      # (Np, G)

    kern = functools.partial(_attention_kernel, smooth=float(smooth),
                             G=G, D=D, tq=tq)
    out = pl.pallas_call(
        kern,
        out_shape=jax.ShapeDtypeStruct((B, Np, inner), jnp.bfloat16),
        grid=(B, n_q),                       # batch OUTER: qkv block stays resident
        in_specs=[
            pl.BlockSpec(memory_space=pltpu.SMEM),                           # factor (G,)
            pl.BlockSpec((tq, 1), lambda b, qi: (qi, 0)),                    # query h coords
            pl.BlockSpec((tq, 1), lambda b, qi: (qi, 0)),                    # query w coords
            pl.BlockSpec((1, Np), lambda b, qi: (0, 0)),                     # key h coords
            pl.BlockSpec((1, Np), lambda b, qi: (0, 0)),                     # key w coords
            pl.BlockSpec((tq, G), lambda b, qi: (qi, 0)),                    # 1/rowsum(exp)
            pl.BlockSpec((None, Np, 3 * inner), lambda b, qi: (b, 0, 0)),    # qkv (resident)
        ],
        out_specs=pl.BlockSpec((None, tq, inner), lambda b, qi: (b, qi, 0)),
        scratch_shapes=[pltpu.VMEM((G, 1, Np), jnp.float32)],                # inv key norms
        compiler_params=pltpu.CompilerParams(
            dimension_semantics=("parallel", "arbitrary"),
            vmem_limit_bytes=48 * 1024 * 1024),
        # TODO(synk): add kv-axis tiling (analytic row-sum already supports it)
        # for N large enough that full qkv residency exceeds v7x's 64 MiB VMEM.
    )(factor, ph.reshape(Np, 1), pw.reshape(Np, 1),
      ph.reshape(1, Np), pw.reshape(1, Np), inv_rowsum, qkv)
    return out[:, :N, :] if Np != N else out


# ---------------------------------------------------------------------------
# to_out: 1x1 conv + BatchNorm2d(train mode) + ReLU, with NO padded f32
# intermediate:
#   pass 1: per-tile channel sum / sum-of-squares of x @ w (stats only).
#   pass 2: recompute x @ w (tiny VMEM-resident weight) fused with BN + ReLU.
# ---------------------------------------------------------------------------
def _proj_stats_kernel(x_ref, w_ref, ssum_ref, ssq_ref):
    y = jnp.dot(x_ref[...], w_ref[...], preferred_element_type=jnp.float32)
    ssum_ref[...] = jnp.sum(y, axis=0, keepdims=True)
    ssq_ref[...] = jnp.sum(y * y, axis=0, keepdims=True)


def _proj_bn_relu_kernel(x_ref, w_ref, scale_ref, bias_ref, o_ref):
    y = jnp.dot(x_ref[...], w_ref[...], preferred_element_type=jnp.float32)
    o_ref[...] = jnp.maximum(y * scale_ref[...] + bias_ref[...],
                             0.0).astype(o_ref.dtype)


def pallas_out_proj(x, w, gamma, beta, eps=1e-5, tm=512):
    M, K = x.shape
    C = w.shape[1]
    if M <= tm:
        tm_, Mp = M, M
    else:
        Mp = _round_up(M, 8)
        tm_ = min(tm, Mp)
        while Mp % tm_:
            tm_ -= 8
    n_m = Mp // tm_
    x_p = x if Mp == M else jnp.pad(x, ((0, Mp - M), (0, 0)))   # zero rows: no effect on sums
    w = w.astype(x.dtype)
    par = pltpu.CompilerParams(dimension_semantics=("parallel",))

    ssum, ssq = pl.pallas_call(
        _proj_stats_kernel,
        out_shape=(jax.ShapeDtypeStruct((n_m, 1, C), jnp.float32),
                   jax.ShapeDtypeStruct((n_m, 1, C), jnp.float32)),
        grid=(n_m,),
        in_specs=[pl.BlockSpec((tm_, K), lambda i: (i, 0)),
                  pl.BlockSpec((K, C), lambda i: (0, 0))],
        out_specs=(pl.BlockSpec((None, 1, C), lambda i: (i, 0, 0)),
                   pl.BlockSpec((None, 1, C), lambda i: (i, 0, 0))),
        compiler_params=par,
    )(x_p, w)

    # Tiny cross-tile reduction + train-mode BN stats (biased variance).
    mean = jnp.sum(ssum[:, 0, :], axis=0) / M
    var = jnp.maximum(jnp.sum(ssq[:, 0, :], axis=0) / M - mean * mean, 0.0)
    scale = gamma * jax.lax.rsqrt(var + eps)
    bias = beta - mean * scale

    out = pl.pallas_call(
        _proj_bn_relu_kernel,
        out_shape=jax.ShapeDtypeStruct((Mp, C), jnp.float32),
        grid=(n_m,),
        in_specs=[pl.BlockSpec((tm_, K), lambda i: (i, 0)),
                  pl.BlockSpec((K, C), lambda i: (0, 0)),
                  pl.BlockSpec((1, C), lambda i: (0, 0)),
                  pl.BlockSpec((1, C), lambda i: (0, 0))],
        out_specs=pl.BlockSpec((tm_, C), lambda i: (i, 0)),
        compiler_params=par,
    )(x_p, w, scale.reshape(1, C).astype(jnp.float32),
      bias.reshape(1, C).astype(jnp.float32))
    return out[:M] if Mp != M else out


# ---------------------------------------------------------------------------
# Plain-JAX glue (im2col, reshapes, parameter prep).
# ---------------------------------------------------------------------------
def cnn_attention_forward(x, params, *, heads, dim_head, smooth=1e-4):
    B, C, H, W = x.shape
    N = H * W
    inner = heads * dim_head

    # --- to_qkv: 3x3 conv, padding=1, no bias, via im2col + tiled MXU matmul ---
    # TODO(synk): fuse the 9 conv taps into the matmul K-grid (shifted-window
    # index maps) to avoid materializing the 9x im2col matrix in HBM.
    xb = x.astype(jnp.bfloat16)
    xp = jnp.pad(xb, ((0, 0), (0, 0), (1, 1), (1, 1)))
    patches = jnp.stack([xp[:, :, di:di + H, dj:dj + W]
                         for di in range(3) for dj in range(3)], axis=2)     # (B,C,9,H,W)
    a = jnp.transpose(patches, (0, 3, 4, 1, 2)).reshape(B * N, C * 9)
    w_qkv = params["w_qkv"].reshape(3 * inner, C * 9).T.astype(jnp.bfloat16)  # (C*9, 3*inner)
    qkv = pallas_matmul(a, w_qkv, out_dtype=jnp.bfloat16)                    # (B*N, 3*inner)
    # Columns are already [q|k|v] x [head] x [dim] (conv channel order), so the
    # attention kernel can slice them directly: no HBM transpose of qkv.
    qkv = qkv.reshape(B, N, 3 * inner)

    # --- per-head Gaussian positional modulation factor ---
    sita = jax.nn.sigmoid(params["headsita"]) * (0.4 - 0.003) + 0.003
    factor = (1.0 / (2.0 * sita ** 2)).astype(jnp.float32)                   # (heads,)

    # --- attention hot path ---
    out = pallas_attention(qkv, factor, H, W, heads, dim_head, smooth)       # (B,N,inner) bf16

    # --- to_out: 1x1 conv + BatchNorm2d(train) + ReLU ---
    w_out = params["w_out"].reshape(C, inner).T                              # (inner, C)
    y = pallas_out_proj(out.reshape(B * N, inner), w_out,
                        params["bn_gamma"], params["bn_beta"])               # (B*N, C) f32
    y = y.reshape(B, H, W, C)
    return jnp.transpose(y, (0, 3, 1, 2))                                    # NCHW


# ---------------------------------------------------------------------------
if __name__ == "__main__":
    B, dim, H, W = 2, 4, 16, 16          # num_patches = H*W = 256
    heads, dim_head = 2, 8
    inner = heads * dim_head

    key = jax.random.PRNGKey(0)
    kx, k1, k2, k3 = jax.random.split(key, 4)
    x = jax.random.normal(kx, (B, dim, H, W), jnp.float32)
    params = dict(
        w_qkv=jax.random.normal(k1, (3 * inner, dim, 3, 3), jnp.float32) * 0.1,
        headsita=jax.random.normal(k2, (heads,), jnp.float32),
        w_out=jax.random.normal(k3, (dim, inner, 1, 1), jnp.float32) * 0.1,
        bn_gamma=jnp.ones((dim,), jnp.float32),
        bn_beta=jnp.zeros((dim,), jnp.float32),
    )

    fwd = jax.jit(functools.partial(cnn_attention_forward,
                                    heads=heads, dim_head=dim_head))
    y = fwd(x, params)
    jax.block_until_ready(y)
    assert y.shape == (B, dim, H, W) and y.dtype == jnp.float32
    assert bool(jnp.all(jnp.isfinite(y)))
    # TODO(synk): eval-mode (mode != 'train') also returns the attention map; only the
    # train-mode path (to_out applied, attn not returned) is implemented here.
    print("KERNEL_OK")
</pallas_src>

<mosaic_0001>
module attributes {stable_mosaic.version = 11 : i64} {
  func.func @_matmul_kernel(%arg0: i32, %arg1: i32, %arg2: i32, %arg3: memref<256x36xbf16, #tpu.memory_space<vmem>>, %arg4: memref<36x48xbf16, #tpu.memory_space<vmem>>, %arg5: memref<256x48xbf16, #tpu.memory_space<vmem>>, %arg6: memref<256x48xf32, #tpu.memory_space<vmem>>) attributes {dimension_semantics = [#tpu.dimension_semantics<parallel>, #tpu.dimension_semantics<parallel>, #tpu.dimension_semantics<arbitrary>], iteration_bounds = array<i64: 2, 1, 1>, scalar_prefetch = 0 : i64, scratch_operands = 1 : i64, tpu.core_type = #tpu.core_type<tc>, window_params = [{transform_indices = @transform_0, window_bounds = array<i64: 256, 36>}, {transform_indices = @transform_1, window_bounds = array<i64: 36, 48>}, {transform_indices = @transform_2, window_bounds = array<i64: 256, 48>}]} {
    %c0_i32 = arith.constant 0 : i32
    %0 = arith.cmpi eq, %arg2, %c0_i32 : i32
    %1 = arith.extui %0 : i1 to i32
    %c0_i32_0 = arith.constant 0 : i32
    %2 = arith.cmpi ne, %1, %c0_i32_0 : i32
    scf.if %2 {
      %cst_10 = arith.constant 0.000000e+00 : f32
      %12 = vector.broadcast %cst_10 : f32 to vector<256x48xf32>
      %c0_11 = arith.constant 0 : index
      %c0_12 = arith.constant 0 : index
      %13 = vector.load %arg6[%c0_11, %c0_12] : memref<256x48xf32, #tpu.memory_space<vmem>>, vector<256x48xf32>
      tpu.vector_store %arg6[%c0_11, %c0_12], %12 {strides = array<i32>} : memref<256x48xf32, #tpu.memory_space<vmem>>, vector<256x48xf32>,
    } else {
    }
    %c0 = arith.constant 0 : index
    %c0_1 = arith.constant 0 : index
    %3 = vector.load %arg6[%c0, %c0_1] : memref<256x48xf32, #tpu.memory_space<vmem>>, vector<256x48xf32>
    %c0_2 = arith.constant 0 : index
    %c0_3 = arith.constant 0 : index
    %4 = vector.load %arg3[%c0_2, %c0_3] : memref<256x36xbf16, #tpu.memory_space<vmem>>, vector<256x36xbf16>
    %c0_4 = arith.constant 0 : index
    %c0_5 = arith.constant 0 : index
    %5 = vector.load %arg4[%c0_4, %c0_5] : memref<36x48xbf16, #tpu.memory_space<vmem>>, vector<36x48xbf16>
    %cst = arith.constant dense<0.000000e+00> : vector<256x48xf32>
    %6 = tpu.matmul %4, %5, %cst {dimension_numbers = #tpu.dot_dimension_numbers<[1], [0], [0], [1], [0, 0, 1, 1], [], []>} : vector<256x36xbf16>, vector<36x48xbf16>, vector<256x48xf32> -> vector<256x48xf32>
    %7 = arith.addf %3, %6 : vector<256x48xf32>
    %c0_6 = arith.constant 0 : index
    %c0_7 = arith.constant 0 : index
    %8 = vector.load %arg6[%c0_6, %c0_7] : memref<256x48xf32, #tpu.memory_space<vmem>>, vector<256x48xf32>
    tpu.vector_store %arg6[%c0_6, %c0_7], %7 {strides = array<i32>} : memref<256x48xf32, #tpu.memory_space<vmem>>, vector<256x48xf32>,
    %c0_i32_8 = arith.constant 0 : i32
    %9 = arith.cmpi eq, %arg2, %c0_i32_8 : i32
    %10 = arith.extui %9 : i1 to i32
    %c0_i32_9 = arith.constant 0 : i32
    %11 = arith.cmpi ne, %10, %c0_i32_9 : i32
    scf.if %11 {
      %c0_10 = arith.constant 0 : index
      %c0_11 = arith.constant 0 : index
      %12 = vector.load %arg6[%c0_10, %c0_11] : memref<256x48xf32, #tpu.memory_space<vmem>>, vector<256x48xf32>
      %13 = arith.truncf %12 : vector<256x48xf32> to vector<256x48xbf16>
      %c0_12 = arith.constant 0 : index
      %c0_13 = arith.constant 0 : index
      %14 = vector.load %arg5[%c0_12, %c0_13] : memref<256x48xbf16, #tpu.memory_space<vmem>>, vector<256x48xbf16>
      tpu.vector_store %arg5[%c0_12, %c0_13], %13 {strides = array<i32>} : memref<256x48xbf16, #tpu.memory_space<vmem>>, vector<256x48xbf16>,
    } else {
    }
    return
  }
  func.func @transform_0(%arg0: i32, %arg1: i32, %arg2: i32) -> (i32, i32) {
    %c0_i32 = arith.constant 0 : i32
    return %arg0, %arg2 : i32, i32
  }
  func.func @transform_1(%arg0: i32, %arg1: i32, %arg2: i32) -> (i32, i32) {
    %c0_i32 = arith.constant 0 : i32
    return %arg2, %arg1 : i32, i32
  }
  func.func @transform_2(%arg0: i32, %arg1: i32, %arg2: i32) -> (i32, i32) {
    %c0_i32 = arith.constant 0 : i32
    return %arg0, %arg1 : i32, i32
  }
}

module attributes {stable_mosaic.version = 11 : i64} {
  func.func @_attention_kernel(%arg0: i32, %arg1: i32, %arg2: memref<2xf32, #tpu.memory_space<smem>>, %arg3: memref<128x1xf32, #tpu.memory_space<vmem>>, %arg4: memref<128x1xf32, #tpu.memory_space<vmem>>, %arg5: memref<1x256xf32, #tpu.memory_space<vmem>>, %arg6: memref<1x256xf32, #tpu.memory_space<vmem>>, %arg7: memref<128x2xf32, #tpu.memory_space<vmem>>, %arg8: memref<1x256x48xbf16, #tpu.memory_space<vmem>>, %arg9: memref<1x128x16xbf16, #tpu.memory_space<vmem>>, %arg10: memref<2x1x256xf32, #tpu.memory_space<vmem>>) attributes {dimension_semantics = [#tpu.dimension_semantics<parallel>, #tpu.dimension_semantics<arbitrary>], iteration_bounds = array<i64: 2, 2>, scalar_prefetch = 0 : i64, scratch_operands = 1 : i64, tpu.core_type = #tpu.core_type<tc>, window_params = [{transform_indices = @transform_0, window_bounds = array<i64: 2>}, {transform_indices = @transform_1, window_bounds = array<i64: 128, 1>}, {transform_indices = @transform_2, window_bounds = array<i64: 128, 1>}, {pipeline_mode = #tpu.pipeline_mode<synchronous>, transform_indices = @transform_3, window_bounds = array<i64: 1, 256>}, {pipeline_mode = #tpu.pipeline_mode<synchronous>, transform_indices = @transform_4, window_bounds = array<i64: 1, 256>}, {transform_indices = @transform_5, window_bounds = array<i64: 128, 2>}, {transform_indices = @transform_6, window_bounds = array<i64: 1, 256, 48>}, {transform_indices = @transform_7, window_bounds = array<i64: 1, 128, 16>}]} {
    %c0_i32 = arith.constant 0 : i32
    %0 = arith.cmpi eq, %arg1, %c0_i32 : i32
    %1 = arith.extui %0 : i1 to i32
    %c0_i32_0 = arith.constant 0 : i32
    %2 = arith.cmpi ne, %1, %c0_i32_0 : i32
    scf.if %2 {
      %cst_45 = arith.constant 1.000000e+00 : f32
      %90 = vector.broadcast %cst_45 : f32 to vector<1x8xf32>
      %c0_46 = arith.constant 0 : index
      %c0_47 = arith.constant 0 : index
      %c16_48 = arith.constant 16 : index
      %91 = vector.load %arg8[%c0_46, %c0_47, %c16_48] : memref<1x256x48xbf16, #tpu.memory_space<vmem>>, vector<1x256x8xbf16>
      %92 = vector.shape_cast %91 : vector<1x256x8xbf16> to vector<256x8xbf16>
      %93 = arith.extf %92 : vector<256x8xbf16> to vector<256x8xf32>
      %94 = arith.mulf %93, %93 : vector<256x8xf32>
      %cst_49 = arith.constant dense<0.000000e+00> : vector<1x256xf32>
      %95 = tpu.matmul %90, %94, %cst_49 {dimension_numbers = #tpu.dot_dimension_numbers<[1], [1], [0], [0], [0, 0, 1, 0], [], []>} : vector<1x8xf32>, vector<256x8xf32>, vector<1x256xf32> -> vector<1x256xf32>
      %cst_50 = arith.constant 9.99999974E-5 : f32
      %96 = vector.broadcast %cst_50 : f32 to vector<1x256xf32>
      %97 = arith.addf %95, %96 : vector<1x256xf32>
      %98 = math.rsqrt %97 : vector<1x256xf32>
      %c0_51 = arith.constant 0 : index
      %c0_52 = arith.constant 0 : index
      %c0_53 = arith.constant 0 : index
      %99 = vector.load %arg10[%c0_51, %c0_52, %c0_53] : memref<2x1x256xf32, #tpu.memory_space<vmem>>, vector<1x1x256xf32>
      %100 = vector.shape_cast %99 : vector<1x1x256xf32> to vector<1x256xf32>
      %101 = vector.shape_cast %98 : vector<1x256xf32> to vector<1x1x256xf32>
      tpu.vector_store %arg10[%c0_51, %c0_52, %c0_53], %101 {strides = array<i32>} : memref<2x1x256xf32, #tpu.memory_space<vmem>>, vector<1x1x256xf32>,
      %c0_54 = arith.constant 0 : index
      %c0_55 = arith.constant 0 : index
      %c24_56 = arith.constant 24 : index
      %102 = vector.load %arg8[%c0_54, %c0_55, %c24_56] : memref<1x256x48xbf16, #tpu.memory_space<vmem>>, vector<1x256x8xbf16>
      %103 = vector.shape_cast %102 : vector<1x256x8xbf16> to vector<256x8xbf16>
      %104 = arith.extf %103 : vector<256x8xbf16> to vector<256x8xf32>
      %105 = arith.mulf %104, %104 : vector<256x8xf32>
      %cst_57 = arith.constant dense<0.000000e+00> : vector<1x256xf32>
      %106 = tpu.matmul %90, %105, %cst_57 {dimension_numbers = #tpu.dot_dimension_numbers<[1], [1], [0], [0], [0, 0, 1, 0], [], []>} : vector<1x8xf32>, vector<256x8xf32>, vector<1x256xf32> -> vector<1x256xf32>
      %cst_58 = arith.constant 9.99999974E-5 : f32
      %107 = vector.broadcast %cst_58 : f32 to vector<1x256xf32>
      %108 = arith.addf %106, %107 : vector<1x256xf32>
      %109 = math.rsqrt %108 : vector<1x256xf32>
      %c1_59 = arith.constant 1 : index
      %c0_60 = arith.constant 0 : index
      %c0_61 = arith.constant 0 : index
      %110 = vector.load %arg10[%c1_59, %c0_60, %c0_61] : memref<2x1x256xf32, #tpu.memory_space<vmem>>, vector<1x1x256xf32>
      %111 = vector.shape_cast %110 : vector<1x1x256xf32> to vector<1x256xf32>
      %112 = vector.shape_cast %109 : vector<1x256xf32> to vector<1x1x256xf32>
      tpu.vector_store %arg10[%c1_59, %c0_60, %c0_61], %112 {strides = array<i32>} : memref<2x1x256xf32, #tpu.memory_space<vmem>>, vector<1x1x256xf32>,
    } else {
    }
    %c0 = arith.constant 0 : index
    %c0_1 = arith.constant 0 : index
    %3 = vector.load %arg3[%c0, %c0_1] : memref<128x1xf32, #tpu.memory_space<vmem>>, vector<128x1xf32>
    %c0_2 = arith.constant 0 : index
    %c0_3 = arith.constant 0 : index
    %4 = vector.load %arg5[%c0_2, %c0_3] : memref<1x256xf32, #tpu.memory_space<vmem>>, vector<1x256xf32>
    %5 = vector.broadcast %3 : vector<128x1xf32> to vector<128x256xf32>
    %6 = vector.broadcast %4 : vector<1x256xf32> to vector<128x256xf32>
    %7 = arith.subf %5, %6 : vector<128x256xf32>
    %c0_4 = arith.constant 0 : index
    %c0_5 = arith.constant 0 : index
    %8 = vector.load %arg4[%c0_4, %c0_5] : memref<128x1xf32, #tpu.memory_space<vmem>>, vector<128x1xf32>
    %c0_6 = arith.constant 0 : index
    %c0_7 = arith.constant 0 : index
    %9 = vector.load %arg6[%c0_6, %c0_7] : memref<1x256xf32, #tpu.memory_space<vmem>>, vector<1x256xf32>
    %10 = vector.broadcast %8 : vector<128x1xf32> to vector<128x256xf32>
    %11 = vector.broadcast %9 : vector<1x256xf32> to vector<128x256xf32>
    %12 = arith.subf %10, %11 : vector<128x256xf32>
    %13 = arith.mulf %7, %7 : vector<128x256xf32>
    %14 = arith.mulf %12, %12 : vector<128x256xf32>
    %15 = arith.addf %13, %14 : vector<128x256xf32>
    %c128_i32 = arith.constant 128 : i32
    %16 = arith.muli %arg1, %c128_i32 : i32
    %17 = tpu.assume_multiple %16, 128 : i32
    %c0_8 = arith.constant 0 : index
    %18 = arith.index_cast %17 : i32 to index
    %c0_9 = arith.constant 0 : index
    %19 = vector.load %arg8[%c0_8, %18, %c0_9] : memref<1x256x48xbf16, #tpu.memory_space<vmem>>, vector<1x128x8xbf16>
    %20 = vector.shape_cast %19 : vector<1x128x8xbf16> to vector<128x8xbf16>
    %c0_10 = arith.constant 0 : index
    %c0_11 = arith.constant 0 : index
    %c16 = arith.constant 16 : index
    %21 = vector.load %arg8[%c0_10, %c0_11, %c16] : memref<1x256x48xbf16, #tpu.memory_space<vmem>>, vector<1x256x8xbf16>
    %22 = vector.shape_cast %21 : vector<1x256x8xbf16> to vector<256x8xbf16>
    %c0_12 = arith.constant 0 : index
    %c0_13 = arith.constant 0 : index
    %c32 = arith.constant 32 : index
    %23 = vector.load %arg8[%c0_12, %c0_13, %c32] : memref<1x256x48xbf16, #tpu.memory_space<vmem>>, vector<1x256x8xbf16>
    %24 = vector.shape_cast %23 : vector<1x256x8xbf16> to vector<256x8xbf16>
    %cst = arith.constant dense<0.000000e+00> : vector<128x256xf32>
    %25 = tpu.matmul %20, %22, %cst {dimension_numbers = #tpu.dot_dimension_numbers<[1], [1], [0], [0], [0, 0, 1, 0], [], []>} : vector<128x8xbf16>, vector<256x8xbf16>, vector<128x256xf32> -> vector<128x256xf32>
    %26 = arith.extf %20 : vector<128x8xbf16> to vector<128x8xf32>
    %27 = arith.mulf %26, %26 : vector<128x8xf32>
    %cst_14 = arith.constant dense<0.000000e+00> : vector<128xf32>
    %28 = vector.multi_reduction <add>, %27, %cst_14 [1] : vector<128x8xf32> to vector<128xf32>
    %29 = vector.shape_cast %28 : vector<128xf32> to vector<128x1xf32>
    %cst_15 = arith.constant 9.99999974E-5 : f32
    %30 = vector.broadcast %cst_15 : f32 to vector<128x1xf32>
    %31 = arith.addf %29, %30 : vector<128x1xf32>
    %32 = math.rsqrt %31 : vector<128x1xf32>
    %c0_16 = arith.constant 0 : index
    %c0_17 = arith.constant 0 : index
    %c0_18 = arith.constant 0 : index
    %33 = vector.load %arg10[%c0_16, %c0_17, %c0_18] : memref<2x1x256xf32, #tpu.memory_space<vmem>>, vector<1x1x256xf32>
    %34 = vector.shape_cast %33 : vector<1x1x256xf32> to vector<1x256xf32>
    %35 = vector.broadcast %32 : vector<128x1xf32> to vector<128x256xf32>
    %36 = vector.broadcast %34 : vector<1x256xf32> to vector<128x256xf32>
    %37 = arith.mulf %35, %36 : vector<128x256xf32>
    %c0_19 = arith.constant 0 : index
    %38 = memref.load %arg2[%c0_19] : memref<2xf32, #tpu.memory_space<smem>>
    %cst_20 = arith.constant 0.000000e+00 : f32
    %39 = arith.subf %cst_20, %38 : f32
    %40 = vector.broadcast %39 : f32 to vector<128x256xf32>
    %41 = arith.mulf %40, %15 : vector<128x256xf32>
    %42 = math.exp %41 : vector<128x256xf32>
    %c0_21 = arith.constant 0 : index
    %c0_22 = arith.constant 0 : index
    %43 = vector.load %arg7[%c0_21, %c0_22] : memref<128x2xf32, #tpu.memory_space<vmem>>, vector<128x1xf32>
    %44 = vector.broadcast %43 : vector<128x1xf32> to vector<128x256xf32>
    %45 = arith.mulf %42, %44 : vector<128x256xf32>
    %46 = arith.mulf %25, %37 : vector<128x256xf32>
    %47 = arith.mulf %46, %45 : vector<128x256xf32>
    %48 = arith.truncf %47 : vector<128x256xf32> to vector<128x256xbf16>
    %cst_23 = arith.constant dense<0.000000e+00> : vector<128x8xf32>
    %49 = tpu.matmul %48, %24, %cst_23 {dimension_numbers = #tpu.dot_dimension_numbers<[1], [0], [0], [1], [0, 0, 1, 1], [], []>} : vector<128x256xbf16>, vector<256x8xbf16>, vector<128x8xf32> -> vector<128x8xf32>
    %50 = arith.truncf %49 : vector<128x8xf32> to vector<128x8xbf16>
    %c0_24 = arith.constant 0 : index
    %c0_25 = arith.constant 0 : index
    %c0_26 = arith.constant 0 : index
    %51 = vector.load %arg9[%c0_24, %c0_25, %c0_26] : memref<1x128x16xbf16, #tpu.memory_space<vmem>>, vector<1x128x8xbf16>
    %52 = vector.shape_cast %51 : vector<1x128x8xbf16> to vector<128x8xbf16>
    %53 = vector.shape_cast %50 : vector<128x8xbf16> to vector<1x128x8xbf16>
    tpu.vector_store %arg9[%c0_24, %c0_25, %c0_26], %53 {strides = array<i32>} : memref<1x128x16xbf16, #tpu.memory_space<vmem>>, vector<1x128x8xbf16>,
    %c0_27 = arith.constant 0 : index
    %54 = arith.index_cast %17 : i32 to index
    %c8 = arith.constant 8 : index
    %55 = vector.load %arg8[%c0_27, %54, %c8] : memref<1x256x48xbf16, #tpu.memory_space<vmem>>, vector<1x128x8xbf16>
    %56 = vector.shape_cast %55 : vector<1x128x8xbf16> to vector<128x8xbf16>
    %c0_28 = arith.constant 0 : index
    %c0_29 = arith.constant 0 : index
    %c24 = arith.constant 24 : index
    %57 = vector.load %arg8[%c0_28, %c0_29, %c24] : memref<1x256x48xbf16, #tpu.memory_space<vmem>>, vector<1x256x8xbf16>
    %58 = vector.shape_cast %57 : vector<1x256x8xbf16> to vector<256x8xbf16>
    %c0_30 = arith.constant 0 : index
    %c0_31 = arith.constant 0 : index
    %c40 = arith.constant 40 : index
    %59 = vector.load %arg8[%c0_30, %c0_31, %c40] : memref<1x256x48xbf16, #tpu.memory_space<vmem>>, vector<1x256x8xbf16>
    %60 = vector.shape_cast %59 : vector<1x256x8xbf16> to vector<256x8xbf16>
    %cst_32 = arith.constant dense<0.000000e+00> : vector<128x256xf32>
    %61 = tpu.matmul %56, %58, %cst_32 {dimension_numbers = #tpu.dot_dimension_numbers<[1], [1], [0], [0], [0, 0, 1, 0], [], []>} : vector<128x8xbf16>, vector<256x8xbf16>, vector<128x256xf32> -> vector<128x256xf32>
    %62 = arith.extf %56 : vector<128x8xbf16> to vector<128x8xf32>
    %63 = arith.mulf %62, %62 : vector<128x8xf32>
    %cst_33 = arith.constant dense<0.000000e+00> : vector<128xf32>
    %64 = vector.multi_reduction <add>, %63, %cst_33 [1] : vector<128x8xf32> to vector<128xf32>
    %65 = vector.shape_cast %64 : vector<128xf32> to vector<128x1xf32>
    %cst_34 = arith.constant 9.99999974E-5 : f32
    %66 = vector.broadcast %cst_34 : f32 to vector<128x1xf32>
    %67 = arith.addf %65, %66 : vector<128x1xf32>
    %68 = math.rsqrt %67 : vector<128x1xf32>
    %c1 = arith.constant 1 : index
    %c0_35 = arith.constant 0 : index
    %c0_36 = arith.constant 0 : index
    %69 = vector.load %arg10[%c1, %c0_35, %c0_36] : memref<2x1x256xf32, #tpu.memory_space<vmem>>, vector<1x1x256xf32>
    %70 = vector.shape_cast %69 : vector<1x1x256xf32> to vector<1x256xf32>
    %71 = vector.broadcast %68 : vector<128x1xf32> to vector<128x256xf32>
    %72 = vector.broadcast %70 : vector<1x256xf32> to vector<128x256xf32>
    %73 = arith.mulf %71, %72 : vector<128x256xf32>
    %c1_37 = arith.constant 1 : index
    %74 = memref.load %arg2[%c1_37] : memref<2xf32, #tpu.memory_space<smem>>
    %cst_38 = arith.constant 0.000000e+00 : f32
    %75 = arith.subf %cst_38, %74 : f32
    %76 = vector.broadcast %75 : f32 to vector<128x256xf32>
    %77 = arith.mulf %76, %15 : vector<128x256xf32>
    %78 = math.exp %77 : vector<128x256xf32>
    %c0_39 = arith.constant 0 : index
    %c1_40 = arith.constant 1 : index
    %79 = vector.load %arg7[%c0_39, %c1_40] : memref<128x2xf32, #tpu.memory_space<vmem>>, vector<128x1xf32>
    %80 = vector.broadcast %79 : vector<128x1xf32> to vector<128x256xf32>
    %81 = arith.mulf %78, %80 : vector<128x256xf32>
    %82 = arith.mulf %61, %73 : vector<128x256xf32>
    %83 = arith.mulf %82, %81 : vector<128x256xf32>
    %84 = arith.truncf %83 : vector<128x256xf32> to vector<128x256xbf16>
    %cst_41 = arith.constant dense<0.000000e+00> : vector<128x8xf32>
    %85 = tpu.matmul %84, %60, %cst_41 {dimension_numbers = #tpu.dot_dimension_numbers<[1], [0], [0], [1], [0, 0, 1, 1], [], []>} : vector<128x256xbf16>, vector<256x8xbf16>, vector<128x8xf32> -> vector<128x8xf32>
    %86 = arith.truncf %85 : vector<128x8xf32> to vector<128x8xbf16>
    %c0_42 = arith.constant 0 : index
    %c0_43 = arith.constant 0 : index
    %c8_44 = arith.constant 8 : index
    %87 = vector.load %arg9[%c0_42, %c0_43, %c8_44] : memref<1x128x16xbf16, #tpu.memory_space<vmem>>, vector<1x128x8xbf16>
    %88 = vector.shape_cast %87 : vector<1x128x8xbf16> to vector<128x8xbf16>
    %89 = vector.shape_cast %86 : vector<128x8xbf16> to vector<1x128x8xbf16>
    tpu.vector_store %arg9[%c0_42, %c0_43, %c8_44], %89 {strides = array<i32>} : memref<1x128x16xbf16, #tpu.memory_space<vmem>>, vector<1x128x8xbf16>,
    return
  }
  func.func @transform_0(%arg0: i32, %arg1: i32) -> i32 {
    %c0_i32 = arith.constant 0 : i32
    %c0_i32_0 = arith.constant 0 : i32
    return %c0_i32 : i32
  }
  func.func @transform_1(%arg0: i32, %arg1: i32) -> (i32, i32) {
    %c0_i32 = arith.constant 0 : i32
    %c0_i32_0 = arith.constant 0 : i32
    return %arg1, %c0_i32 : i32, i32
  }
  func.func @transform_2(%arg0: i32, %arg1: i32) -> (i32, i32) {
    %c0_i32 = arith.constant 0 : i32
    %c0_i32_0 = arith.constant 0 : i32
    return %arg1, %c0_i32 : i32, i32
  }
  func.func @transform_3(%arg0: i32, %arg1: i32) -> (i32, i32) {
    %c0_i32 = arith.constant 0 : i32
    %c0_i32_0 = arith.constant 0 : i32
    %c0_i32_1 = arith.constant 0 : i32
    return %c0_i32, %c0_i32_0 : i32, i32
  }
  func.func @transform_4(%arg0: i32, %arg1: i32) -> (i32, i32) {
    %c0_i32 = arith.constant 0 : i32
    %c0_i32_0 = arith.constant 0 : i32
    %c0_i32_1 = arith.constant 0 : i32
    return %c0_i32, %c0_i32_0 : i32, i32
  }
  func.func @transform_5(%arg0: i32, %arg1: i32) -> (i32, i32) {
    %c0_i32 = arith.constant 0 : i32
    %c0_i32_0 = arith.constant 0 : i32
    return %arg1, %c0_i32 : i32, i32
  }
  func.func @transform_6(%arg0: i32, %arg1: i32) -> (i32, i32, i32) {
    %c0_i32 = arith.constant 0 : i32
    %c0_i32_0 = arith.constant 0 : i32
    %c0_i32_1 = arith.constant 0 : i32
    return %arg0, %c0_i32, %c0_i32_0 : i32, i32, i32
  }
  func.func @transform_7(%arg0: i32, %arg1: i32) -> (i32, i32, i32) {
    %c0_i32 = arith.constant 0 : i32
    %c0_i32_0 = arith.constant 0 : i32
    return %arg0, %arg1, %c0_i32 : i32, i32, i32
  }
}

module attributes {stable_mosaic.version = 11 : i64} {
  func.func @_proj_stats_kernel(%arg0: i32, %arg1: memref<512x16xbf16, #tpu.memory_space<vmem>>, %arg2: memref<16x4xbf16, #tpu.memory_space<vmem>>, %arg3: memref<1x1x4xf32, #tpu.memory_space<vmem>>, %arg4: memref<1x1x4xf32, #tpu.memory_space<vmem>>) attributes {dimension_semantics = [#tpu.dimension_semantics<parallel>], iteration_bounds = array<i64: 1>, scalar_prefetch = 0 : i64, scratch_operands = 0 : i64, tpu.core_type = #tpu.core_type<tc>, window_params = [{transform_indices = @transform_0, window_bounds = array<i64: 512, 16>}, {pipeline_mode = #tpu.pipeline_mode<synchronous>, transform_indices = @transform_1, window_bounds = array<i64: 16, 4>}, {transform_indices = @transform_2, window_bounds = array<i64: 1, 1, 4>}, {transform_indices = @transform_3, window_bounds = array<i64: 1, 1, 4>}]} {
    %c0 = arith.constant 0 : index
    %c0_0 = arith.constant 0 : index
    %0 = vector.load %arg1[%c0, %c0_0] : memref<512x16xbf16, #tpu.memory_space<vmem>>, vector<512x16xbf16>
    %c0_1 = arith.constant 0 : index
    %c0_2 = arith.constant 0 : index
    %1 = vector.load %arg2[%c0_1, %c0_2] : memref<16x4xbf16, #tpu.memory_space<vmem>>, vector<16x4xbf16>
    %cst = arith.constant dense<0.000000e+00> : vector<512x4xf32>
    %2 = tpu.matmul %0, %1, %cst {dimension_numbers = #tpu.dot_dimension_numbers<[1], [0], [0], [1], [0, 0, 1, 1], [], []>} : vector<512x16xbf16>, vector<16x4xbf16>, vector<512x4xf32> -> vector<512x4xf32>
    %cst_3 = arith.constant dense<0.000000e+00> : vector<4xf32>
    %3 = vector.multi_reduction <add>, %2, %cst_3 [0] : vector<512x4xf32> to vector<4xf32>
    %4 = vector.shape_cast %3 : vector<4xf32> to vector<1x4xf32>
    %c0_4 = arith.constant 0 : index
    %c0_5 = arith.constant 0 : index
    %c0_6 = arith.constant 0 : index
    %5 = vector.load %arg3[%c0_4, %c0_5, %c0_6] : memref<1x1x4xf32, #tpu.memory_space<vmem>>, vector<1x1x4xf32>
    %6 = vector.shape_cast %5 : vector<1x1x4xf32> to vector<1x4xf32>
    %7 = vector.shape_cast %4 : vector<1x4xf32> to vector<1x1x4xf32>
    tpu.vector_store %arg3[%c0_4, %c0_5, %c0_6], %7 {strides = array<i32>} : memref<1x1x4xf32, #tpu.memory_space<vmem>>, vector<1x1x4xf32>,
    %8 = arith.mulf %2, %2 : vector<512x4xf32>
    %cst_7 = arith.constant dense<0.000000e+00> : vector<4xf32>
    %9 = vector.multi_reduction <add>, %8, %cst_7 [0] : vector<512x4xf32> to vector<4xf32>
    %10 = vector.shape_cast %9 : vector<4xf32> to vector<1x4xf32>
    %c0_8 = arith.constant 0 : index
    %c0_9 = arith.constant 0 : index
    %c0_10 = arith.constant 0 : index
    %11 = vector.load %arg4[%c0_8, %c0_9, %c0_10] : memref<1x1x4xf32, #tpu.memory_space<vmem>>, vector<1x1x4xf32>
    %12 = vector.shape_cast %11 : vector<1x1x4xf32> to vector<1x4xf32>
    %13 = vector.shape_cast %10 : vector<1x4xf32> to vector<1x1x4xf32>
    tpu.vector_store %arg4[%c0_8, %c0_9, %c0_10], %13 {strides = array<i32>} : memref<1x1x4xf32, #tpu.memory_space<vmem>>, vector<1x1x4xf32>,
    return
  }
  func.func @transform_0(%arg0: i32) -> (i32, i32) {
    %c0_i32 = arith.constant 0 : i32
    %c0_i32_0 = arith.constant 0 : i32
    return %arg0, %c0_i32 : i32, i32
  }
  func.func @transform_1(%arg0: i32) -> (i32, i32) {
    %c0_i32 = arith.constant 0 : i32
    %c0_i32_0 = arith.constant 0 : i32
    %c0_i32_1 = arith.constant 0 : i32
    return %c0_i32, %c0_i32_0 : i32, i32
  }
  func.func @transform_2(%arg0: i32) -> (i32, i32, i32) {
    %c0_i32 = arith.constant 0 : i32
    %c0_i32_0 = arith.constant 0 : i32
    %c0_i32_1 = arith.constant 0 : i32
    return %arg0, %c0_i32, %c0_i32_0 : i32, i32, i32
  }
  func.func @transform_3(%arg0: i32) -> (i32, i32, i32) {
    %c0_i32 = arith.constant 0 : i32
    %c0_i32_0 = arith.constant 0 : i32
    %c0_i32_1 = arith.constant 0 : i32
    return %arg0, %c0_i32, %c0_i32_0 : i32, i32, i32
  }
}

module attributes {stable_mosaic.version = 11 : i64} {
  func.func @_proj_bn_relu_kernel(%arg0: i32, %arg1: memref<512x16xbf16, #tpu.memory_space<vmem>>, %arg2: memref<16x4xbf16, #tpu.memory_space<vmem>>, %arg3: memref<1x4xf32, #tpu.memory_space<vmem>>, %arg4: memref<1x4xf32, #tpu.memory_space<vmem>>, %arg5: memref<512x4xf32, #tpu.memory_space<vmem>>) attributes {dimension_semantics = [#tpu.dimension_semantics<parallel>], iteration_bounds = array<i64: 1>, scalar_prefetch = 0 : i64, scratch_operands = 0 : i64, tpu.core_type = #tpu.core_type<tc>, window_params = [{transform_indices = @transform_0, window_bounds = array<i64: 512, 16>}, {pipeline_mode = #tpu.pipeline_mode<synchronous>, transform_indices = @transform_1, window_bounds = array<i64: 16, 4>}, {pipeline_mode = #tpu.pipeline_mode<synchronous>, transform_indices = @transform_2, window_bounds = array<i64: 1, 4>}, {pipeline_mode = #tpu.pipeline_mode<synchronous>, transform_indices = @transform_3, window_bounds = array<i64: 1, 4>}, {transform_indices = @transform_4, window_bounds = array<i64: 512, 4>}]} {
    %c0 = arith.constant 0 : index
    %c0_0 = arith.constant 0 : index
    %0 = vector.load %arg1[%c0, %c0_0] : memref<512x16xbf16, #tpu.memory_space<vmem>>, vector<512x16xbf16>
    %c0_1 = arith.constant 0 : index
    %c0_2 = arith.constant 0 : index
    %1 = vector.load %arg2[%c0_1, %c0_2] : memref<16x4xbf16, #tpu.memory_space<vmem>>, vector<16x4xbf16>
    %cst = arith.constant dense<0.000000e+00> : vector<512x4xf32>
    %2 = tpu.matmul %0, %1, %cst {dimension_numbers = #tpu.dot_dimension_numbers<[1], [0], [0], [1], [0, 0, 1, 1], [], []>} : vector<512x16xbf16>, vector<16x4xbf16>, vector<512x4xf32> -> vector<512x4xf32>
    %c0_3 = arith.constant 0 : index
    %c0_4 = arith.constant 0 : index
    %3 = vector.load %arg3[%c0_3, %c0_4] : memref<1x4xf32, #tpu.memory_space<vmem>>, vector<1x4xf32>
    %4 = vector.broadcast %3 : vector<1x4xf32> to vector<512x4xf32>
    %5 = arith.mulf %2, %4 : vector<512x4xf32>
    %c0_5 = arith.constant 0 : index
    %c0_6 = arith.constant 0 : index
    %6 = vector.load %arg4[%c0_5, %c0_6] : memref<1x4xf32, #tpu.memory_space<vmem>>, vector<1x4xf32>
    %7 = vector.broadcast %6 : vector<1x4xf32> to vector<512x4xf32>
    %8 = arith.addf %5, %7 : vector<512x4xf32>
    %cst_7 = arith.constant 0.000000e+00 : f32
    %9 = vector.broadcast %cst_7 : f32 to vector<512x4xf32>
    %10 = arith.maximumf %8, %9 : vector<512x4xf32>
    %c0_8 = arith.constant 0 : index
    %c0_9 = arith.constant 0 : index
    %11 = vector.load %arg5[%c0_8, %c0_9] : memref<512x4xf32, #tpu.memory_space<vmem>>, vector<512x4xf32>
    tpu.vector_store %arg5[%c0_8, %c0_9], %10 {strides = array<i32>} : memref<512x4xf32, #tpu.memory_space<vmem>>, vector<512x4xf32>,
    return
  }
  func.func @transform_0(%arg0: i32) -> (i32, i32) {
    %c0_i32 = arith.constant 0 : i32
    %c0_i32_0 = arith.constant 0 : i32
    return %arg0, %c0_i32 : i32, i32
  }
  func.func @transform_1(%arg0: i32) -> (i32, i32) {
    %c0_i32 = arith.constant 0 : i32
    %c0_i32_0 = arith.constant 0 : i32
    %c0_i32_1 = arith.constant 0 : i32
    return %c0_i32, %c0_i32_0 : i32, i32
  }
  func.func @transform_2(%arg0: i32) -> (i32, i32) {
    %c0_i32 = arith.constant 0 : i32
    %c0_i32_0 = arith.constant 0 : i32
    %c0_i32_1 = arith.constant 0 : i32
    return %c0_i32, %c0_i32_0 : i32, i32
  }
  func.func @transform_3(%arg0: i32) -> (i32, i32) {
    %c0_i32 = arith.constant 0 : i32
    %c0_i32_0 = arith.constant 0 : i32
    %c0_i32_1 = arith.constant 0 : i32
    return %c0_i32, %c0_i32_0 : i32, i32
  }
  func.func @transform_4(%arg0: i32) -> (i32, i32) {
    %c0_i32 = arith.constant 0 : i32
    %c0_i32_0 = arith.constant 0 : i32
    return %arg0, %c0_i32 : i32, i32
  }
}

</mosaic_0001>

<llo_original>
// kernel: tile.9
$region0: #{tile.9}
  #allocation0 [shape = 's32[1]{0}', space=sflag, size = 0x4, scoped, tag = 'scoped memory for tile.9']
  %s0 = inlined_call_operand.vmem [shape: f32[16], index: 0, kind: input, shape index: {}]
  %s1 = inlined_call_operand.vmem [shape: f32[16,16], index: 1, kind: output, shape index: {}]
  // Predicated region
  $region2: #{tile.9} parent=0 // pred_check
    _
  $region3: #{tile.9} parent=0 // pred_check_branch
    %3 = sbr.rel (0) target = $region5
  $region4: #{tile.9} parent=0 // pred_region
    _
  $region5: #{tile.9} parent=0 // pred_fallthru
    _
  %v4 = vld [vmem:[%s0] ss:$0 sm:$0xff]
  %5 = vst [vmem:[%s1] sm:$0xff] %v4
  %s6 = scalar_lea.vmem %s1, 8
  %7 = vst [vmem:[%s6] sm:$0xff] %v4

// kernel: cnn_attention_forward.4
$region0: #{cnn_attention_forward.4}
  #allocation0 [shape = 'u32[]', space=smem, size = 0x4, offset = 0x4, fixed_abs, tag = 'smem constant byte address 0x4 - core index']
  #allocation1 [shape = 'u32[72,128]{1,0:T(1,128)}', space=vmem, size = 0x9000, scoped, tag = 'internal scratch']
  #allocation2 [shape = 'f32[256,48]{1,0:T(8,128)}', space=vmem, size = 0x20000, scoped, tag = 'scratch operand']
  %s0 = inlined_call_operand.vmem [shape: bf16[512,36], index: 0, kind: input, shape index: {}]
  %s1 = inlined_call_operand.vmem [shape: bf16[36,48], index: 1, kind: input, shape index: {}]
  %s2 = inlined_call_operand.vmem [shape: bf16[512,48], index: 2, kind: output, shape index: {}]
  %s3 = sld [smem:[#allocation0]]
  $region49: #{cnn_attention_forward.4} parent=0
    _
  %s5 = ssub.s32 1, %s3
  %s6 = scalar_select 0, %s5, %s3
  loop: start=0, step=1, limit=4
  $region2: #{cnn_attention_forward.4} parent=0 // loop_pre_header
    _
  $region3: #{cnn_attention_forward.4} parent=0 // loop_header
    %s8 = sphi 0, %s12
    %p9 = scmp.ge.s32.totalorder %s8, 4
    %s15 = sphi 0, %s34
    %s16 = sphi 0, %s30
    %s17 = sphi 0, %s26
    %s18 = sphi 0, %s15
    %s19 = sphi 0, %s16
    %s20 = sphi 0, %s17
    %s21 = sphi 0, %s18
    %s22 = sphi 0, %s19
    %s23 = sphi 0, %s20
    %s39 = sphi 0, %s41
    %s42 = sphi 0, %s39
    %s43 = sphi 0, %s42
    %s59 = sphi 0, %s43
    %s67 = sphi 0, %s69
    %s70 = sphi 0, %s67
    %s71 = sphi 0, %s70
    %s87 = sphi 0, %s71
    %s95 = sphi 0, %s97
    %s98 = sphi 0, %s95
    %s99 = sphi 0, %s98
    %s115 = sphi 0, %s99
  $region4: #{cnn_attention_forward.4} parent=0 // loop_header_branch
    %11 = sbr.rel (%p9) target = $region8
  $region5: #{cnn_attention_forward.4} parent=0 // loop_body
    %s13 = ssub.s32 %s8, 1
    %s14 = ssub.s32 %s8, 2
    %s24 = sadd.s32 1, %s17
    %p25 = scmp.ge.s32.totalorder %s24, 1
    %s26 = scalar_select %p25, 0, %s24
    %s27 = sadd.s32 1, %s16
    %s28 = scalar_select %p25, %s27, %s16
    %p29 = scmp.ge.s32.totalorder %s28, 1
    %s30 = scalar_select %p29, 0, %s28
    %s31 = sadd.s32 1, %s15
    %s32 = scalar_select %p29, %s31, %s15
    %p33 = scmp.ge.s32.totalorder %s32, 2
    %s34 = scalar_select %p33, 0, %s32
    %s35 = ssub.s32 %s15, %s34
    %s36 = ssub.s32 %s17, %s26
    %s37 = sor.u32 %s35, %s36
    %p38 = scmp.eq.s32.totalorder %s37, 0
    %s40 = sadd.s32 %s39, 1
    %s41 = scalar_select %p38, %s39, %s40
    %p44 = pneg %p38
    %p45 = scmp.eq.s32.totalorder %s8, 1
    %p46 = por %p44, %p45
    %p47 = scmp.ne.s32.totalorder %s39, %s42
    %p48 = scmp.eq.s32.totalorder %s8, 0
    %p49 = por %p47, %p48
    %p50 = scmp.ne.s32.totalorder %s39, %s42
    %p51 = scmp.eq.s32.totalorder %s13, 1
    %p52 = por %p50, %p51
    %p53 = scmp.ne.s32.totalorder %s42, %s43
    %p54 = scmp.eq.s32.totalorder %s13, 0
    %p55 = por %p53, %p54
    %p56 = scmp.ne.s32.totalorder %s42, %s43
    %p57 = scmp.eq.s32.totalorder %s14, 1
    %p58 = por %p56, %p57
    %p60 = scmp.ne.s32.totalorder %s43, %s59
    %p61 = scmp.eq.s32.totalorder %s14, 0
    %p62 = por %p60, %p61
    %s63 = ssub.s32 %s17, %s26
    %s64 = ssub.s32 %s16, %s30
    %s65 = sor.u32 %s63, %s64
    %p66 = scmp.eq.s32.totalorder %s65, 0
    %s68 = sadd.s32 %s67, 1
    %s69 = scalar_select %p66, %s67, %s68
    %p72 = pneg %p66
    %p73 = scmp.eq.s32.totalorder %s8, 1
    %p74 = por %p72, %p73
    %p75 = scmp.ne.s32.totalorder %s67, %s70
    %p76 = scmp.eq.s32.totalorder %s8, 0
    %p77 = por %p75, %p76
    %p78 = scmp.ne.s32.totalorder %s67, %s70
    %p79 = scmp.eq.s32.totalorder %s13, 1
    %p80 = por %p78, %p79
    %p81 = scmp.ne.s32.totalorder %s70, %s71
    %p82 = scmp.eq.s32.totalorder %s13, 0
    %p83 = por %p81, %p82
    %p84 = scmp.ne.s32.totalorder %s70, %s71
    %p85 = scmp.eq.s32.totalorder %s14, 1
    %p86 = por %p84, %p85
    %p88 = scmp.ne.s32.totalorder %s71, %s87
    %p89 = scmp.eq.s32.totalorder %s14, 0
    %p90 = por %p88, %p89
    %s91 = ssub.s32 %s15, %s34
    %s92 = ssub.s32 %s16, %s30
    %s93 = sor.u32 %s91, %s92
    %p94 = scmp.eq.s32.totalorder %s93, 0
    %s96 = sadd.s32 %s95, 1
    %s97 = scalar_select %p94, %s95, %s96
    %p100 = pneg %p94
    %p101 = scmp.eq.s32.totalorder %s8, 1
    %p102 = por %p100, %p101
    %p103 = scmp.ne.s32.totalorder %s95, %s98
    %p104 = scmp.eq.s32.totalorder %s8, 0
    %p105 = por %p103, %p104
    %p106 = scmp.ne.s32.totalorder %s95, %s98
    %p107 = scmp.eq.s32.totalorder %s13, 1
    %p108 = por %p106, %p107
    %p109 = scmp.ne.s32.totalorder %s98, %s99
    %p110 = scmp.eq.s32.totalorder %s13, 0
    %p111 = por %p109, %p110
    %p112 = scmp.ne.s32.totalorder %s98, %s99
    %p113 = scmp.eq.s32.totalorder %s14, 1
    %p114 = por %p112, %p113
    %p116 = scmp.ne.s32.totalorder %s99, %s115
    %p117 = scmp.eq.s32.totalorder %s14, 0
    %p118 = por %p116, %p117
    %p119 = scmp.le.s32.totalorder 1, %s8
    %p120 = scmp.lt.s32.totalorder %s8, 3
    %p121 = pnand %p119, %p120
    %p122 = pneg %p121
    // Predicated region
    $region9: #{cnn_attention_forward.4} parent=5 // pred_check
      _
    $region10: #{cnn_attention_forward.4} parent=5 // pred_check_branch
      %124 = sbr.rel (%p121) target = $region12
    $region11: #{cnn_attention_forward.4} parent=5 // pred_region
      %s125 = ssub.s32 %s8, 1
      // Predicated region
      $region13: #{cnn_attention_forward.4} parent=11 // pred_check
        %p126 = pneg %p83
      $region14: #{cnn_attention_forward.4} parent=11 // pred_check_branch
        %128 = sbr.rel (%p126) target = $region16
      $region15: #{cnn_attention_forward.4} parent=11 // pred_region
        %s129 = smul.u32 5, %s20
        %p130 = scmp.lt.s32.totalorder %s129, 4
        %s131 = scalar_select %p130, %s129, 4
        %p132 = scmp.lt.s32.totalorder %s19, 0
        %s133 = scalar_select %p132, %s19, 0
        %s134 = sadd.s32 %s133, %s131
        %s135 = smul.addr %s134, 4
        %s136 = scalar_lea.vmem %s1, %s135
        %s137 = smul.u32 5, %s20
      $region16: #{cnn_attention_forward.4} parent=11 // pred_fallthru
        _
    $region12: #{cnn_attention_forward.4} parent=5 // pred_fallthru
      _
    %p138 = scmp.lt.s32.totalorder %s8, 2
    // Predicated region
    $region17: #{cnn_attention_forward.4} parent=5 // pred_check
      %p139 = pneg %p138
    $region18: #{cnn_attention_forward.4} parent=5 // pred_check_branch
      %141 = sbr.rel (%p139) target = $region20
    $region19: #{cnn_attention_forward.4} parent=5 // pred_region
      // Predicated region
      $region21: #{cnn_attention_forward.4} parent=19 // pred_check
        %p142 = pneg %p49
      $region22: #{cnn_attention_forward.4} parent=19 // pred_check_branch
        %144 = sbr.rel (%p142) target = $region24
      $region23: #{cnn_attention_forward.4} parent=19 // pred_region
        %s145 = smul.u32 32, %s15
        %p146 = scmp.lt.s32.totalorder %s145, 63
        %s147 = scalar_select %p146, %s145, 63
        %p148 = scmp.lt.s32.totalorder %s17, 0
        %s149 = scalar_select %p148, %s17, 0
        %s150 = sadd.s32 %s149, %s147
        %s151 = smul.addr %s150, 4
        %s152 = scalar_lea.vmem %s0, %s151
        %s153 = smul.u32 32, %s15
      $region24: #{cnn_attention_forward.4} parent=19 // pred_fallthru
        _
    $region20: #{cnn_attention_forward.4} parent=5 // pred_fallthru
      _
    %p154 = scmp.le.s32.totalorder 1, %s8
    %p155 = scmp.lt.s32.totalorder %s8, 3
    %p156 = pnand %p154, %p155
    %p157 = pneg %p156
    // Predicated region
    $region25: #{cnn_attention_forward.4} parent=5 // pred_check
      _
    $region26: #{cnn_attention_forward.4} parent=5 // pred_check_branch
      %159 = sbr.rel (%p156) target = $region28
    $region27: #{cnn_attention_forward.4} parent=5 // pred_region
      %s160 = ssub.s32 %s8, 1
      %s161 = smul.u32 32, %s18
      %p162 = scmp.lt.s32.totalorder %s161, 63
      %s163 = scalar_select %p162, %s161, 63
      %p164 = scmp.lt.s32.totalorder %s20, 0
      %s165 = scalar_select %p164, %s20, 0
      %s166 = sadd.s32 %s165, %s163
      %s167 = smul.addr %s166, 4
      %s168 = scalar_lea.vmem %s0, %s167
      %p169 = pneg %p55
      %p170 = pneg %p52
      %s171 = smul.u32 5, %s20
      %p172 = scmp.lt.s32.totalorder %s171, 4
      %s173 = scalar_select %p172, %s171, 4
      %p174 = scmp.lt.s32.totalorder %s19, 0
      %s175 = scalar_select %p174, %s19, 0
      %s176 = sadd.s32 %s175, %s173
      %s177 = smul.addr %s176, 4
      %s178 = scalar_lea.vmem %s1, %s177
      %p179 = pneg %p83
      %p180 = pneg %p80
      %p181 = pneg %p111
      %p182 = pneg %p108
      %s183 = smul.u32 32, %s18
      %p184 = scmp.lt.s32.totalorder %s183, 63
      %s185 = scalar_select %p184, %s183, 63
      %p186 = scmp.lt.s32.totalorder %s19, 0
      %s187 = scalar_select %p186, %s19, 0
      %s188 = sadd.s32 %s187, %s185
      %s189 = smul.addr %s188, 4
      %s190 = scalar_lea.vmem %s2, %s189
      %s191 = smul.u32 32, %s18
      %p192 = scmp.lt.s32.totalorder %s191, 63
      %s193 = scalar_select %p192, %s191, 63
      %p194 = scmp.lt.s32.totalorder %s20, 0
      %s195 = scalar_select %p194, %s20, 0
      %s196 = sadd.s32 %s195, %s193
      %s197 = smul.addr %s196, 4
      %s198 = scalar_lea.vmem %s0, %s197
      %s199 = smul.u32 32, %s18
      %s200 = smul.u32 5, %s20
      %p201 = scmp.lt.s32.totalorder %s200, 4
      %s202 = scalar_select %p201, %s200, 4
      %p203 = scmp.lt.s32.totalorder %s19, 0
      %s204 = scalar_select %p203, %s19, 0
      %s205 = sadd.s32 %s204, %s202
      %s206 = smul.addr %s205, 4
      %s207 = scalar_lea.vmem %s1, %s206
      %s208 = smul.u32 5, %s20
      %s209 = smul.u32 32, %s18
      %p210 = scmp.lt.s32.totalorder %s209, 63
      %s211 = scalar_select %p210, %s209, 63
      %p212 = scmp.lt.s32.totalorder %s19, 0
      %s213 = scalar_select %p212, %s19, 0
      %s214 = sadd.s32 %s213, %s211
      %s215 = smul.addr %s214, 4
      %s216 = scalar_lea.vmem %s2, %s215
      %s217 = smul.u32 32, %s18
      %p219 = scmp.eq.s32.totalorder %s20, 0
      // Predicated region
      $region29: #{cnn_attention_forward.4} parent=27 // pred_check
        %p220 = pneg %p219
      $region30: #{cnn_attention_forward.4} parent=27 // pred_check_branch
        %222 = sbr.rel (%p220) target = $region32
      $region31: #{cnn_attention_forward.4} parent=27 // pred_region
        %vm223 = vcmask 392192
        %224 = vst.msk [vmem:[#allocation2] sm:$0xff] %vm223, 0.0
        %225 = vst.msk [vmem:[#allocation2 + $0x8] sm:$0xff] %vm223, 0.0
        %226 = vst.msk [vmem:[#allocation2 + $0x10] sm:$0xff] %vm223, 0.0
        %227 = vst.msk [vmem:[#allocation2 + $0x18] sm:$0xff] %vm223, 0.0
        %228 = vst.msk [vmem:[#allocation2 + $0x20] sm:$0xff] %vm223, 0.0
        %229 = vst.msk [vmem:[#allocation2 + $0x28] sm:$0xff] %vm223, 0.0
        %230 = vst.msk [vmem:[#allocation2 + $0x30] sm:$0xff] %vm223, 0.0
        %231 = vst.msk [vmem:[#allocation2 + $0x38] sm:$0xff] %vm223, 0.0
        %232 = vst.msk [vmem:[#allocation2 + $0x40] sm:$0xff] %vm223, 0.0
        %233 = vst.msk [vmem:[#allocation2 + $0x48] sm:$0xff] %vm223, 0.0
        %234 = vst.msk [vmem:[#allocation2 + $0x50] sm:$0xff] %vm223, 0.0
        %235 = vst.msk [vmem:[#allocation2 + $0x58] sm:$0xff] %vm223, 0.0
        %236 = vst.msk [vmem:[#allocation2 + $0x60] sm:$0xff] %vm223, 0.0
        %237 = vst.msk [vmem:[#allocation2 + $0x68] sm:$0xff] %vm223, 0.0
        %238 = vst.msk [vmem:[#allocation2 + $0x70] sm:$0xff] %vm223, 0.0
        %239 = vst.msk [vmem:[#allocation2 + $0x78] sm:$0xff] %vm223, 0.0
        %240 = vst.msk [vmem:[#allocation2 + $0x80] sm:$0xff] %vm223, 0.0
        %241 = vst.msk [vmem:[#allocation2 + $0x88] sm:$0xff] %vm223, 0.0
        %242 = vst.msk [vmem:[#allocation2 + $0x90] sm:$0xff] %vm223, 0.0
        %243 = vst.msk [vmem:[#allocation2 + $0x98] sm:$0xff] %vm223, 0.0
        %244 = vst.msk [vmem:[#allocation2 + $0xa0] sm:$0xff] %vm223, 0.0
        %245 = vst.msk [vmem:[#allocation2 + $0xa8] sm:$0xff] %vm223, 0.0
        %246 = vst.msk [vmem:[#allocation2 + $0xb0] sm:$0xff] %vm223, 0.0
        %247 = vst.msk [vmem:[#allocation2 + $0xb8] sm:$0xff] %vm223, 0.0
        %248 = vst.msk [vmem:[#allocation2 + $0xc0] sm:$0xff] %vm223, 0.0
        %249 = vst.msk [vmem:[#allocation2 + $0xc8] sm:$0xff] %vm223, 0.0
        %250 = vst.msk [vmem:[#allocation2 + $0xd0] sm:$0xff] %vm223, 0.0
        %251 = vst.msk [vmem:[#allocation2 + $0xd8] sm:$0xff] %vm223, 0.0
        %252 = vst.msk [vmem:[#allocation2 + $0xe0] sm:$0xff] %vm223, 0.0
        %253 = vst.msk [vmem:[#allocation2 + $0xe8] sm:$0xff] %vm223, 0.0
        %254 = vst.msk [vmem:[#allocation2 + $0xf0] sm:$0xff] %vm223, 0.0
        %255 = vst.msk [vmem:[#allocation2 + $0xf8] sm:$0xff] %vm223, 0.0
      $region32: #{cnn_attention_forward.4} parent=27 // pred_fallthru
        _
      %v256 = vld [vmem:[#allocation2] sm:$0xff]
      %v257 = vld [vmem:[#allocation2 + $0x8] sm:$0xff]
      %v258 = vld [vmem:[#allocation2 + $0x10] sm:$0xff]
      %v259 = vld [vmem:[#allocation2 + $0x18] sm:$0xff]
      %v260 = vld [vmem:[#allocation2 + $0x20] sm:$0xff]
      %v261 = vld [vmem:[#allocation2 + $0x28] sm:$0xff]
      %v262 = vld [vmem:[#allocation2 + $0x30] sm:$0xff]
      %v263 = vld [vmem:[#allocation2 + $0x38] sm:$0xff]
      %v264 = vld [vmem:[#allocation2 + $0x40] sm:$0xff]
      %v265 = vld [vmem:[#allocation2 + $0x48] sm:$0xff]
      %v266 = vld [vmem:[#allocation2 + $0x50] sm:$0xff]
      %v267 = vld [vmem:[#allocation2 + $0x58] sm:$0xff]
      %v268 = vld [vmem:[#allocation2 + $0x60] sm:$0xff]
      %v269 = vld [vmem:[#allocation2 + $0x68] sm:$0xff]
      %v270 = vld [vmem:[#allocation2 + $0x70] sm:$0xff]
      %v271 = vld [vmem:[#allocation2 + $0x78] sm:$0xff]
      %v272 = vld [vmem:[#allocation2 + $0x80] sm:$0xff]
      %v273 = vld [vmem:[#allocation2 + $0x88] sm:$0xff]
      %v274 = vld [vmem:[#allocation2 + $0x90] sm:$0xff]
      %v275 = vld [vmem:[#allocation2 + $0x98] sm:$0xff]
      %v276 = vld [vmem:[#allocation2 + $0xa0] sm:$0xff]
      %v277 = vld [vmem:[#allocation2 + $0xa8] sm:$0xff]
      %v278 = vld [vmem:[#allocation2 + $0xb0] sm:$0xff]
      %v279 = vld [vmem:[#allocation2 + $0xb8] sm:$0xff]
      %v280 = vld [vmem:[#allocation2 + $0xc0] sm:$0xff]
      %v281 = vld [vmem:[#allocation2 + $0xc8] sm:$0xff]
      %v282 = vld [vmem:[#allocation2 + $0xd0] sm:$0xff]
      %v283 = vld [vmem:[#allocation2 + $0xd8] sm:$0xff]
      %v284 = vld [vmem:[#allocation2 + $0xe0] sm:$0xff]
      %v285 = vld [vmem:[#allocation2 + $0xe8] sm:$0xff]
      %v286 = vld [vmem:[#allocation2 + $0xf0] sm:$0xff]
      %v287 = vld [vmem:[#allocation2 + $0xf8] sm:$0xff]
      %v288 = vld [vmem:[%s198] sm:$0xf]
      %v289 = vld [vmem:[%s198 + $0x4] sm:$0xf]
      %v290 = vld [vmem:[%s198 + $0x8] sm:$0xf]
      %v291 = vld [vmem:[%s198 + $0xc] sm:$0xf]
      %v292 = vld [vmem:[%s198 + $0x10] sm:$0xf]
      %v293 = vld [vmem:[%s198 + $0x14] sm:$0xf]
      %v294 = vld [vmem:[%s198 + $0x18] sm:$0xf]
      %v295 = vld [vmem:[%s198 + $0x1c] sm:$0xf]
      %v296 = vld [vmem:[%s198 + $0x20] sm:$0xf]
      %v297 = vld [vmem:[%s198 + $0x24] sm:$0xf]
      %v298 = vld [vmem:[%s198 + $0x28] sm:$0xf]
      %v299 = vld [vmem:[%s198 + $0x2c] sm:$0xf]
      %v300 = vld [vmem:[%s198 + $0x30] sm:$0xf]
      %v301 = vld [vmem:[%s198 + $0x34] sm:$0xf]
      %v302 = vld [vmem:[%s198 + $0x38] sm:$0xf]
      %v303 = vld [vmem:[%s198 + $0x3c] sm:$0xf]
      %v304 = vld [vmem:[%s198 + $0x40] sm:$0xf]
      %v305 = vld [vmem:[%s198 + $0x44] sm:$0xf]
      %v306 = vld [vmem:[%s198 + $0x48] sm:$0xf]
      %v307 = vld [vmem:[%s198 + $0x4c] sm:$0xf]
      %v308 = vld [vmem:[%s198 + $0x50] sm:$0xf]
      %v309 = vld [vmem:[%s198 + $0x54] sm:$0xf]
      %v310 = vld [vmem:[%s198 + $0x58] sm:$0xf]
      %v311 = vld [vmem:[%s198 + $0x5c] sm:$0xf]
      %v312 = vld [vmem:[%s198 + $0x60] sm:$0xf]
      %v313 = vld [vmem:[%s198 + $0x64] sm:$0xf]
      %v314 = vld [vmem:[%s198 + $0x68] sm:$0xf]
      %v315 = vld [vmem:[%s198 + $0x6c] sm:$0xf]
      %v316 = vld [vmem:[%s198 + $0x70] sm:$0xf]
      %v317 = vld [vmem:[%s198 + $0x74] sm:$0xf]
      %v318 = vld [vmem:[%s198 + $0x78] sm:$0xf]
      %v319 = vld [vmem:[%s198 + $0x7c] sm:$0xf]
      %v320 = vld [vmem:[%s207] sm:$0xf]
      %v321 = vld [vmem:[%s207 + $0x4] sm:$0xf]
      %v322 = vld [vmem:[%s207 + $0x8] sm:$0xf]
      %v323 = vld [vmem:[%s207 + $0xc] sm:$0xf]
      %v324 = vld [vmem:[%s207 + $0x10] sm:$0x3]
      %v357 = vunpack.c.l.b16 %v288
      %v358 = vunpack.c.l.b16 %v289
      %v359 = vunpack.c.l.b16 %v290
      %v360 = vunpack.c.l.b16 %v291
      %v361 = vunpack.c.l.b16 %v292
      %v362 = vunpack.c.l.b16 %v293
      %v363 = vunpack.c.l.b16 %v294
      %v364 = vunpack.c.l.b16 %v295
      %v365 = vunpack.c.l.b16 %v296
      %v366 = vunpack.c.l.b16 %v297
      %v367 = vunpack.c.l.b16 %v298
      %v368 = vunpack.c.l.b16 %v299
      %v369 = vunpack.c.l.b16 %v300
      %v370 = vunpack.c.l.b16 %v301
      %v371 = vunpack.c.l.b16 %v302
      %v372 = vunpack.c.l.b16 %v303
      %v373 = vunpack.c.l.b16 %v304
      %v374 = vunpack.c.l.b16 %v305
      %v375 = vunpack.c.l.b16 %v306
      %v376 = vunpack.c.l.b16 %v307
      %v377 = vunpack.c.l.b16 %v308
      %v378 = vunpack.c.l.b16 %v309
      %v379 = vunpack.c.l.b16 %v310
      %v380 = vunpack.c.l.b16 %v311
      %v381 = vunpack.c.l.b16 %v312
      %v382 = vunpack.c.l.b16 %v313
      %v383 = vunpack.c.l.b16 %v314
      %v384 = vunpack.c.l.b16 %v315
      %v385 = vunpack.c.l.b16 %v316
      %v386 = vunpack.c.l.b16 %v317
      %v387 = vunpack.c.l.b16 %v318
      %v388 = vunpack.c.l.b16 %v319
      %v389 = vpack.c.b16 %v358, %v357
      %v390 = vpack.c.b16 %v360, %v359
      %v391 = vpack.c.b16 %v362, %v361
      %v392 = vpack.c.b16 %v364, %v363
      %v393 = vpack.c.b16 %v366, %v365
      %v394 = vpack.c.b16 %v368, %v367
      %v395 = vpack.c.b16 %v370, %v369
      %v396 = vpack.c.b16 %v372, %v371
      %v397 = vpack.c.b16 %v374, %v373
      %v398 = vpack.c.b16 %v376, %v375
      %v399 = vpack.c.b16 %v378, %v377
      %v400 = vpack.c.b16 %v380, %v379
      %v401 = vpack.c.b16 %v382, %v381
      %v402 = vpack.c.b16 %v384, %v383
      %v403 = vpack.c.b16 %v386, %v385
      %v404 = vpack.c.b16 %v388, %v387
      %v410 = vunpack.c.l.b16 %v320
      %v411 = vunpack.c.l.b16 %v321
      %v412 = vunpack.c.l.b16 %v322
      %v413 = vunpack.c.l.b16 %v323
      %v414 = vunpack.c.l.b16 %v324
      %v415 = vpack.c.b16 %v411, %v410
      %v416 = vpack.c.b16 %v413, %v412
      %v417 = vpack.c.b16 %v414, %v414
      %vm420 = vcmask 293888
      %v422 = vsel %vm420, %v389, 0
      %v425 = vsel %vm420, %v390, 0
      %v428 = vsel %vm420, %v391, 0
      %v431 = vsel %vm420, %v392, 0
      %v434 = vsel %vm420, %v393, 0
      %v437 = vsel %vm420, %v394, 0
      %v440 = vsel %vm420, %v395, 0
      %v443 = vsel %vm420, %v396, 0
      %v446 = vsel %vm420, %v397, 0
      %v449 = vsel %vm420, %v398, 0
      %v452 = vsel %vm420, %v399, 0
      %v455 = vsel %vm420, %v400, 0
      %v458 = vsel %vm420, %v401, 0
      %v461 = vsel %vm420, %v402, 0
      %v464 = vsel %vm420, %v403, 0
      %v467 = vsel %vm420, %v404, 0
      %vm469 = vcmask 1041408
      %v471 = vsel %vm469, %v417, 0
      %473 = vmatpush.bf16.msra.mxu0 0
      %474 = vmatpush.bf16.msra.mxu0 0
      %475 = vmatpush.bf16.msra.mxu0 0
      %476 = vmatpush.bf16.msra.mxu0 0
      %477 = vmatpush.bf16.msra.mxu0 0
      %478 = vmatpush.bf16.msra.mxu0 %v471
      %479 = vmatpush.bf16.msra.mxu0 %v416
      %480 = vmatpush.bf16.msra.mxu0 %v415
      %481 = vmatmul.bf16.gmra.mxu0 %v422
      %v482 = vpop.f32.mrf.mxu0
      %v483 = vadd.f32 0.0, %v482
      %v484 = vpop.f32.mrf.mxu0
      %v485 = vadd.f32 0.0, %v484
      %486 = vmatmul.bf16.gmra.mxu0 %v425
      %v487 = vpop.f32.mrf.mxu0
      %v488 = vadd.f32 0.0, %v487
      %v489 = vpop.f32.mrf.mxu0
      %v490 = vadd.f32 0.0, %v489
      %491 = vmatmul.bf16.gmra.mxu0 %v428
      %v492 = vpop.f32.mrf.mxu0
      %v493 = vadd.f32 0.0, %v492
      %v494 = vpop.f32.mrf.mxu0
      %v495 = vadd.f32 0.0, %v494
      %496 = vmatmul.bf16.gmra.mxu0 %v431
      %v497 = vpop.f32.mrf.mxu0
      %v498 = vadd.f32 0.0, %v497
      %v499 = vpop.f32.mrf.mxu0
      %v500 = vadd.f32 0.0, %v499
      %501 = vmatmul.bf16.gmra.mxu0 %v434
      %v502 = vpop.f32.mrf.mxu0
      %v503 = vadd.f32 0.0, %v502
      %v504 = vpop.f32.mrf.mxu0
      %v505 = vadd.f32 0.0, %v504
      %506 = vmatmul.bf16.gmra.mxu0 %v437
      %v507 = vpop.f32.mrf.mxu0
      %v508 = vadd.f32 0.0, %v507
      %v509 = vpop.f32.mrf.mxu0
      %v510 = vadd.f32 0.0, %v509
      %511 = vmatmul.bf16.gmra.mxu0 %v440
      %v512 = vpop.f32.mrf.mxu0
      %v513 = vadd.f32 0.0, %v512
      %v514 = vpop.f32.mrf.mxu0
      %v515 = vadd.f32 0.0, %v514
      %516 = vmatmul.bf16.gmra.mxu0 %v443
      %v517 = vpop.f32.mrf.mxu0
      %v518 = vadd.f32 0.0, %v517
      %v519 = vpop.f32.mrf.mxu0
      %v520 = vadd.f32 0.0, %v519
      %521 = vmatmul.bf16.gmra.mxu0 %v446
      %v522 = vpop.f32.mrf.mxu0
      %v523 = vadd.f32 0.0, %v522
      %v524 = vpop.f32.mrf.mxu0
      %v525 = vadd.f32 0.0, %v524
      %526 = vmatmul.bf16.gmra.mxu0 %v449
      %v527 = vpop.f32.mrf.mxu0
      %v528 = vadd.f32 0.0, %v527
      %v529 = vpop.f32.mrf.mxu0
      %v530 = vadd.f32 0.0, %v529
      %531 = vmatmul.bf16.gmra.mxu0 %v452
      %v532 = vpop.f32.mrf.mxu0
      %v533 = vadd.f32 0.0, %v532
      %v534 = vpop.f32.mrf.mxu0
      %v535 = vadd.f32 0.0, %v534
      %536 = vmatmul.bf16.gmra.mxu0 %v455
      %v537 = vpop.f32.mrf.mxu0
      %v538 = vadd.f32 0.0, %v537
      %v539 = vpop.f32.mrf.mxu0
      %v540 = vadd.f32 0.0, %v539
      %541 = vmatmul.bf16.gmra.mxu0 %v458
      %v542 = vpop.f32.mrf.mxu0
      %v543 = vadd.f32 0.0, %v542
      %v544 = vpop.f32.mrf.mxu0
      %v545 = vadd.f32 0.0, %v544
      %546 = vmatmul.bf16.gmra.mxu0 %v461
      %v547 = vpop.f32.mrf.mxu0
      %v548 = vadd.f32 0.0, %v547
      %v549 = vpop.f32.mrf.mxu0
      %v550 = vadd.f32 0.0, %v549
      %551 = vmatmul.bf16.gmra.mxu0 %v464
      %v552 = vpop.f32.mrf.mxu0
      %v553 = vadd.f32 0.0, %v552
      %v554 = vpop.f32.mrf.mxu0
      %v555 = vadd.f32 0.0, %v554
      %556 = vmatmul.bf16.gmra.mxu0 %v467
      %v557 = vpop.f32.mrf.mxu0
      %v558 = vadd.f32 0.0, %v557
      %v559 = vpop.f32.mrf.mxu0
      %v560 = vadd.f32 0.0, %v559
      %561 = vdwg.mxu0
      %v562 = vadd.f32 %v256, %v483
      %v563 = vadd.f32 %v257, %v485
      %v564 = vadd.f32 %v258, %v488
      %v565 = vadd.f32 %v259, %v490
      %v566 = vadd.f32 %v260, %v493
      %v567 = vadd.f32 %v261, %v495
      %v568 = vadd.f32 %v262, %v498
      %v569 = vadd.f32 %v263, %v500
      %v570 = vadd.f32 %v264, %v503
      %v571 = vadd.f32 %v265, %v505
      %v572 = vadd.f32 %v266, %v508
      %v573 = vadd.f32 %v267, %v510
      %v574 = vadd.f32 %v268, %v513
      %v575 = vadd.f32 %v269, %v515
      %v576 = vadd.f32 %v270, %v518
      %v577 = vadd.f32 %v271, %v520
      %v578 = vadd.f32 %v272, %v523
      %v579 = vadd.f32 %v273, %v525
      %v580 = vadd.f32 %v274, %v528
      %v581 = vadd.f32 %v275, %v530
      %v582 = vadd.f32 %v276, %v533
      %v583 = vadd.f32 %v277, %v535
      %v584 = vadd.f32 %v278, %v538
      %v585 = vadd.f32 %v279, %v540
      %v586 = vadd.f32 %v280, %v543
      %v587 = vadd.f32 %v281, %v545
      %v588 = vadd.f32 %v282, %v548
      %v589 = vadd.f32 %v283, %v550
      %v590 = vadd.f32 %v284, %v553
      %v591 = vadd.f32 %v285, %v555
      %v592 = vadd.f32 %v286, %v558
      %v593 = vadd.f32 %v287, %v560
      %vm594 = vcmask 392192
      %595 = vst.msk [vmem:[#allocation2] sm:$0xff] %vm594, %v562
      %596 = vst.msk [vmem:[#allocation2 + $0x8] sm:$0xff] %vm594, %v563
      %597 = vst.msk [vmem:[#allocation2 + $0x10] sm:$0xff] %vm594, %v564
      %598 = vst.msk [vmem:[#allocation2 + $0x18] sm:$0xff] %vm594, %v565
      %599 = vst.msk [vmem:[#allocation2 + $0x20] sm:$0xff] %vm594, %v566
      %600 = vst.msk [vmem:[#allocation2 + $0x28] sm:$0xff] %vm594, %v567
      %601 = vst.msk [vmem:[#allocation2 + $0x30] sm:$0xff] %vm594, %v568
      %602 = vst.msk [vmem:[#allocation2 + $0x38] sm:$0xff] %vm594, %v569
      %603 = vst.msk [vmem:[#allocation2 + $0x40] sm:$0xff] %vm594, %v570
      %604 = vst.msk [vmem:[#allocation2 + $0x48] sm:$0xff] %vm594, %v571
      %605 = vst.msk [vmem:[#allocation2 + $0x50] sm:$0xff] %vm594, %v572
      %606 = vst.msk [vmem:[#allocation2 + $0x58] sm:$0xff] %vm594, %v573
      %607 = vst.msk [vmem:[#allocation2 + $0x60] sm:$0xff] %vm594, %v574
      %608 = vst.msk [vmem:[#allocation2 + $0x68] sm:$0xff] %vm594, %v575
      %609 = vst.msk [vmem:[#allocation2 + $0x70] sm:$0xff] %vm594, %v576
      %610 = vst.msk [vmem:[#allocation2 + $0x78] sm:$0xff] %vm594, %v577
      %611 = vst.msk [vmem:[#allocation2 + $0x80] sm:$0xff] %vm594, %v578
      %612 = vst.msk [vmem:[#allocation2 + $0x88] sm:$0xff] %vm594, %v579
      %613 = vst.msk [vmem:[#allocation2 + $0x90] sm:$0xff] %vm594, %v580
      %614 = vst.msk [vmem:[#allocation2 + $0x98] sm:$0xff] %vm594, %v581
      %615 = vst.msk [vmem:[#allocation2 + $0xa0] sm:$0xff] %vm594, %v582
      %616 = vst.msk [vmem:[#allocation2 + $0xa8] sm:$0xff] %vm594, %v583
      %617 = vst.msk [vmem:[#allocation2 + $0xb0] sm:$0xff] %vm594, %v584
      %618 = vst.msk [vmem:[#allocation2 + $0xb8] sm:$0xff] %vm594, %v585
      %619 = vst.msk [vmem:[#allocation2 + $0xc0] sm:$0xff] %vm594, %v586
      %620 = vst.msk [vmem:[#allocation2 + $0xc8] sm:$0xff] %vm594, %v587
      %621 = vst.msk [vmem:[#allocation2 + $0xd0] sm:$0xff] %vm594, %v588
      %622 = vst.msk [vmem:[#allocation2 + $0xd8] sm:$0xff] %vm594, %v589
      %623 = vst.msk [vmem:[#allocation2 + $0xe0] sm:$0xff] %vm594, %v590
      %624 = vst.msk [vmem:[#allocation2 + $0xe8] sm:$0xff] %vm594, %v591
      %625 = vst.msk [vmem:[#allocation2 + $0xf0] sm:$0xff] %vm594, %v592
      %626 = vst.msk [vmem:[#allocation2 + $0xf8] sm:$0xff] %vm594, %v593
      // Predicated region
      $region33: #{cnn_attention_forward.4} parent=27 // pred_check
        %p627 = pneg %p219
      $region34: #{cnn_attention_forward.4} parent=27 // pred_check_branch
        %629 = sbr.rel (%p627) target = $region36
      $region35: #{cnn_attention_forward.4} parent=27 // pred_region
        %v630 = vld [vmem:[#allocation2] sm:$0xff]
        %v631 = vld [vmem:[#allocation2 + $0x8] sm:$0xff]
        %v632 = vld [vmem:[#allocation2 + $0x10] sm:$0xff]
        %v633 = vld [vmem:[#allocation2 + $0x18] sm:$0xff]
        %v634 = vld [vmem:[#allocation2 + $0x20] sm:$0xff]
        %v635 = vld [vmem:[#allocation2 + $0x28] sm:$0xff]
        %v636 = vld [vmem:[#allocation2 + $0x30] sm:$0xff]
        %v637 = vld [vmem:[#allocation2 + $0x38] sm:$0xff]
        %v638 = vld [vmem:[#allocation2 + $0x40] sm:$0xff]
        %v639 = vld [vmem:[#allocation2 + $0x48] sm:$0xff]
        %v640 = vld [vmem:[#allocation2 + $0x50] sm:$0xff]
        %v641 = vld [vmem:[#allocation2 + $0x58] sm:$0xff]
        %v642 = vld [vmem:[#allocation2 + $0x60] sm:$0xff]
        %v643 = vld [vmem:[#allocation2 + $0x68] sm:$0xff]
        %v644 = vld [vmem:[#allocation2 + $0x70] sm:$0xff]
        %v645 = vld [vmem:[#allocation2 + $0x78] sm:$0xff]
        %v646 = vld [vmem:[#allocation2 + $0x80] sm:$0xff]
        %v647 = vld [vmem:[#allocation2 + $0x88] sm:$0xff]
        %v648 = vld [vmem:[#allocation2 + $0x90] sm:$0xff]
        %v649 = vld [vmem:[#allocation2 + $0x98] sm:$0xff]
        %v650 = vld [vmem:[#allocation2 + $0xa0] sm:$0xff]
        %v651 = vld [vmem:[#allocation2 + $0xa8] sm:$0xff]
        %v652 = vld [vmem:[#allocation2 + $0xb0] sm:$0xff]
        %v653 = vld [vmem:[#allocation2 + $0xb8] sm:$0xff]
        %v654 = vld [vmem:[#allocation2 + $0xc0] sm:$0xff]
        %v655 = vld [vmem:[#allocation2 + $0xc8] sm:$0xff]
        %v656 = vld [vmem:[#allocation2 + $0xd0] sm:$0xff]
        %v657 = vld [vmem:[#allocation2 + $0xd8] sm:$0xff]
        %v658 = vld [vmem:[#allocation2 + $0xe0] sm:$0xff]
        %v659 = vld [vmem:[#allocation2 + $0xe8] sm:$0xff]
        %v660 = vld [vmem:[#allocation2 + $0xf0] sm:$0xff]
        %v661 = vld [vmem:[#allocation2 + $0xf8] sm:$0xff]
        %v662 = vpack.c.bf16 %v630, %v630
        %v663 = vpack.c.bf16 %v631, %v631
        %v664 = vpack.c.bf16 %v632, %v632
        %v665 = vpack.c.bf16 %v633, %v633
        %v666 = vpack.c.bf16 %v634, %v634
        %v667 = vpack.c.bf16 %v635, %v635
        %v668 = vpack.c.bf16 %v636, %v636
        %v669 = vpack.c.bf16 %v637, %v637
        %v670 = vpack.c.bf16 %v638, %v638
        %v671 = vpack.c.bf16 %v639, %v639
        %v672 = vpack.c.bf16 %v640, %v640
        %v673 = vpack.c.bf16 %v641, %v641
        %v674 = vpack.c.bf16 %v642, %v642
        %v675 = vpack.c.bf16 %v643, %v643
        %v676 = vpack.c.bf16 %v644, %v644
        %v677 = vpack.c.bf16 %v645, %v645
        %v678 = vpack.c.bf16 %v646, %v646
        %v679 = vpack.c.bf16 %v647, %v647
        %v680 = vpack.c.bf16 %v648, %v648
        %v681 = vpack.c.bf16 %v649, %v649
        %v682 = vpack.c.bf16 %v650, %v650
        %v683 = vpack.c.bf16 %v651, %v651
        %v684 = vpack.c.bf16 %v652, %v652
        %v685 = vpack.c.bf16 %v653, %v653
        %v686 = vpack.c.bf16 %v654, %v654
        %v687 = vpack.c.bf16 %v655, %v655
        %v688 = vpack.c.bf16 %v656, %v656
        %v689 = vpack.c.bf16 %v657, %v657
        %v690 = vpack.c.bf16 %v658, %v658
        %v691 = vpack.c.bf16 %v659, %v659
        %v692 = vpack.c.bf16 %v660, %v660
        %v693 = vpack.c.bf16 %v661, %v661
        %vm694 = vcmask 388096
        %695 = vst.msk [vmem:[%s216] sm:$0xf] %vm694, %v662
        %696 = vst.msk [vmem:[%s216 + $0x4] sm:$0xf] %vm694, %v663
        %697 = vst.msk [vmem:[%s216 + $0x8] sm:$0xf] %vm694, %v664
        %698 = vst.msk [vmem:[%s216 + $0xc] sm:$0xf] %vm694, %v665
        %699 = vst.msk [vmem:[%s216 + $0x10] sm:$0xf] %vm694, %v666
        %700 = vst.msk [vmem:[%s216 + $0x14] sm:$0xf] %vm694, %v667
        %701 = vst.msk [vmem:[%s216 + $0x18] sm:$0xf] %vm694, %v668
        %702 = vst.msk [vmem:[%s216 + $0x1c] sm:$0xf] %vm694, %v669
        %703 = vst.msk [vmem:[%s216 + $0x20] sm:$0xf] %vm694, %v670
        %704 = vst.msk [vmem:[%s216 + $0x24] sm:$0xf] %vm694, %v671
        %705 = vst.msk [vmem:[%s216 + $0x28] sm:$0xf] %vm694, %v672
        %706 = vst.msk [vmem:[%s216 + $0x2c] sm:$0xf] %vm694, %v673
        %707 = vst.msk [vmem:[%s216 + $0x30] sm:$0xf] %vm694, %v674
        %708 = vst.msk [vmem:[%s216 + $0x34] sm:$0xf] %vm694, %v675
        %709 = vst.msk [vmem:[%s216 + $0x38] sm:$0xf] %vm694, %v676
        %710 = vst.msk [vmem:[%s216 + $0x3c] sm:$0xf] %vm694, %v677
        %711 = vst.msk [vmem:[%s216 + $0x40] sm:$0xf] %vm694, %v678
        %712 = vst.msk [vmem:[%s216 + $0x44] sm:$0xf] %vm694, %v679
        %713 = vst.msk [vmem:[%s216 + $0x48] sm:$0xf] %vm694, %v680
        %714 = vst.msk [vmem:[%s216 + $0x4c] sm:$0xf] %vm694, %v681
        %715 = vst.msk [vmem:[%s216 + $0x50] sm:$0xf] %vm694, %v682
        %716 = vst.msk [vmem:[%s216 + $0x54] sm:$0xf] %vm694, %v683
        %717 = vst.msk [vmem:[%s216 + $0x58] sm:$0xf] %vm694, %v684
        %718 = vst.msk [vmem:[%s216 + $0x5c] sm:$0xf] %vm694, %v685
        %719 = vst.msk [vmem:[%s216 + $0x60] sm:$0xf] %vm694, %v686
        %720 = vst.msk [vmem:[%s216 + $0x64] sm:$0xf] %vm694, %v687
        %721 = vst.msk [vmem:[%s216 + $0x68] sm:$0xf] %vm694, %v688
        %722 = vst.msk [vmem:[%s216 + $0x6c] sm:$0xf] %vm694, %v689
        %723 = vst.msk [vmem:[%s216 + $0x70] sm:$0xf] %vm694, %v690
        %724 = vst.msk [vmem:[%s216 + $0x74] sm:$0xf] %vm694, %v691
        %725 = vst.msk [vmem:[%s216 + $0x78] sm:$0xf] %vm694, %v692
        %726 = vst.msk [vmem:[%s216 + $0x7c] sm:$0xf] %vm694, %v693
      $region36: #{cnn_attention_forward.4} parent=27 // pred_fallthru
        _
      %s727 = smul.u32 32, %s18
      %p728 = scmp.lt.s32.totalorder %s727, 63
      %s729 = scalar_select %p728, %s727, 63
      %p730 = scmp.lt.s32.totalorder %s19, 0
      %s731 = scalar_select %p730, %s19, 0
      %s732 = sadd.s32 %s731, %s729
      %s733 = smul.addr %s732, 4
      %s734 = scalar_lea.vmem %s2, %s733
      // Predicated region
      $region37: #{cnn_attention_forward.4} parent=27 // pred_check
        %p735 = pneg %p108
      $region38: #{cnn_attention_forward.4} parent=27 // pred_check_branch
        %737 = sbr.rel (%p735) target = $region40
      $region39: #{cnn_attention_forward.4} parent=27 // pred_region
        %s738 = smul.u32 32, %s18
      $region40: #{cnn_attention_forward.4} parent=27 // pred_fallthru
        _
    $region28: #{cnn_attention_forward.4} parent=5 // pred_fallthru
      _
    %p739 = scmp.le.s32.totalorder 2, %s8
    // Predicated region
    $region41: #{cnn_attention_forward.4} parent=5 // pred_check
      %p740 = pneg %p739
    $region42: #{cnn_attention_forward.4} parent=5 // pred_check_branch
      %742 = sbr.rel (%p740) target = $region44
    $region43: #{cnn_attention_forward.4} parent=5 // pred_region
      %s743 = ssub.s32 %s8, 2
      // Predicated region
      $region45: #{cnn_attention_forward.4} parent=43 // pred_check
        %p744 = pneg %p114
      $region46: #{cnn_attention_forward.4} parent=43 // pred_check_branch
        %746 = sbr.rel (%p744) target = $region48
      $region47: #{cnn_attention_forward.4} parent=43 // pred_region
        %s747 = smul.u32 32, %s21
        %p748 = scmp.lt.s32.totalorder %s747, 63
        %s749 = scalar_select %p748, %s747, 63
        %p750 = scmp.lt.s32.totalorder %s22, 0
        %s751 = scalar_select %p750, %s22, 0
        %s752 = sadd.s32 %s751, %s749
        %s753 = smul.addr %s752, 4
        %s754 = scalar_lea.vmem %s2, %s753
      $region48: #{cnn_attention_forward.4} parent=43 // pred_fallthru
        _
    $region44: #{cnn_attention_forward.4} parent=5 // pred_fallthru
      _
  $region6: #{cnn_attention_forward.4} parent=0 // loop_footer
    %s12 = sadd.s32 1, %s8
  $region7: #{cnn_attention_forward.4} parent=0 // loop_footer_branch
    %7 = sbr.rel target = $region3
  $region8: #{cnn_attention_forward.4} parent=0 // loop_exit
    _

// kernel: cnn_attention_forward.6
$region0: #{cnn_attention_forward.6}
  #allocation0 [shape = 'u32[]', space=smem, size = 0x4, offset = 0x4, fixed_abs, tag = 'smem constant byte address 0x4 - core index']
  #allocation1 [shape = 'u32[72,128]{1,0:T(1,128)}', space=vmem, size = 0x9000, scoped, tag = 'internal scratch']
  %s0 = inlined_call_operand.vmem [shape: bf16[512,16], index: 0, kind: input, shape index: {}]
  %s1 = inlined_call_operand.vmem [shape: bf16[16,4], index: 1, kind: input, shape index: {}]
  %s2 = inlined_call_operand.vmem [shape: f32[1,1,4], index: 2, kind: output, shape index: {0}]
  %s3 = inlined_call_operand.vmem [shape: f32[1,1,4], index: 3, kind: output, shape index: {1}]
  %4 = xla_tuple %s2, %s3
  %s5 = sld [smem:[#allocation0]]
  $region26: #{cnn_attention_forward.6} parent=0
    _
  %s7 = ssub.s32 1, %s5
  %s8 = scalar_select 0, %s7, %s5
  // Predicated region
  $region2: #{cnn_attention_forward.6} parent=0 // pred_check
    _
  $region3: #{cnn_attention_forward.6} parent=0 // pred_check_branch
    %10 = sbr.rel (0) target = $region5
  $region4: #{cnn_attention_forward.6} parent=0 // pred_region
    _
  $region5: #{cnn_attention_forward.6} parent=0 // pred_fallthru
    _
  // Predicated region
  $region6: #{cnn_attention_forward.6} parent=0 // pred_check
    _
  $region7: #{cnn_attention_forward.6} parent=0 // pred_check_branch
    %12 = sbr.rel (0) target = $region9
  $region8: #{cnn_attention_forward.6} parent=0 // pred_region
    _
  $region9: #{cnn_attention_forward.6} parent=0 // pred_fallthru
    _
  %v14 = vld [vmem:[%s0] sm:$0xf]
  %v15 = vld [vmem:[%s0 + $0x4] sm:$0xf]
  %v16 = vld [vmem:[%s0 + $0x8] sm:$0xf]
  %v17 = vld [vmem:[%s0 + $0xc] sm:$0xf]
  %v18 = vld [vmem:[%s0 + $0x10] sm:$0xf]
  %v19 = vld [vmem:[%s0 + $0x14] sm:$0xf]
  %v20 = vld [vmem:[%s0 + $0x18] sm:$0xf]
  %v21 = vld [vmem:[%s0 + $0x1c] sm:$0xf]
  %v22 = vld [vmem:[%s0 + $0x20] sm:$0xf]
  %v23 = vld [vmem:[%s0 + $0x24] sm:$0xf]
  %v24 = vld [vmem:[%s0 + $0x28] sm:$0xf]
  %v25 = vld [vmem:[%s0 + $0x2c] sm:$0xf]
  %v26 = vld [vmem:[%s0 + $0x30] sm:$0xf]
  %v27 = vld [vmem:[%s0 + $0x34] sm:$0xf]
  %v28 = vld [vmem:[%s0 + $0x38] sm:$0xf]
  %v29 = vld [vmem:[%s0 + $0x3c] sm:$0xf]
  %v30 = vld [vmem:[%s0 + $0x40] sm:$0xf]
  %v31 = vld [vmem:[%s0 + $0x44] sm:$0xf]
  %v32 = vld [vmem:[%s0 + $0x48] sm:$0xf]
  %v33 = vld [vmem:[%s0 + $0x4c] sm:$0xf]
  %v34 = vld [vmem:[%s0 + $0x50] sm:$0xf]
  %v35 = vld [vmem:[%s0 + $0x54] sm:$0xf]
  %v36 = vld [vmem:[%s0 + $0x58] sm:$0xf]
  %v37 = vld [vmem:[%s0 + $0x5c] sm:$0xf]
  %v38 = vld [vmem:[%s0 + $0x60] sm:$0xf]
  %v39 = vld [vmem:[%s0 + $0x64] sm:$0xf]
  %v40 = vld [vmem:[%s0 + $0x68] sm:$0xf]
  %v41 = vld [vmem:[%s0 + $0x6c] sm:$0xf]
  %v42 = vld [vmem:[%s0 + $0x70] sm:$0xf]
  %v43 = vld [vmem:[%s0 + $0x74] sm:$0xf]
  %v44 = vld [vmem:[%s0 + $0x78] sm:$0xf]
  %v45 = vld [vmem:[%s0 + $0x7c] sm:$0xf]
  %v46 = vld [vmem:[%s0 + $0x80] sm:$0xf]
  %v47 = vld [vmem:[%s0 + $0x84] sm:$0xf]
  %v48 = vld [vmem:[%s0 + $0x88] sm:$0xf]
  %v49 = vld [vmem:[%s0 + $0x8c] sm:$0xf]
  %v50 = vld [vmem:[%s0 + $0x90] sm:$0xf]
  %v51 = vld [vmem:[%s0 + $0x94] sm:$0xf]
  %v52 = vld [vmem:[%s0 + $0x98] sm:$0xf]
  %v53 = vld [vmem:[%s0 + $0x9c] sm:$0xf]
  %v54 = vld [vmem:[%s0 + $0xa0] sm:$0xf]
  %v55 = vld [vmem:[%s0 + $0xa4] sm:$0xf]
  %v56 = vld [vmem:[%s0 + $0xa8] sm:$0xf]
  %v57 = vld [vmem:[%s0 + $0xac] sm:$0xf]
  %v58 = vld [vmem:[%s0 + $0xb0] sm:$0xf]
  %v59 = vld [vmem:[%s0 + $0xb4] sm:$0xf]
  %v60 = vld [vmem:[%s0 + $0xb8] sm:$0xf]
  %v61 = vld [vmem:[%s0 + $0xbc] sm:$0xf]
  %v62 = vld [vmem:[%s0 + $0xc0] sm:$0xf]
  %v63 = vld [vmem:[%s0 + $0xc4] sm:$0xf]
  %v64 = vld [vmem:[%s0 + $0xc8] sm:$0xf]
  %v65 = vld [vmem:[%s0 + $0xcc] sm:$0xf]
  %v66 = vld [vmem:[%s0 + $0xd0] sm:$0xf]
  %v67 = vld [vmem:[%s0 + $0xd4] sm:$0xf]
  %v68 = vld [vmem:[%s0 + $0xd8] sm:$0xf]
  %v69 = vld [vmem:[%s0 + $0xdc] sm:$0xf]
  %v70 = vld [vmem:[%s0 + $0xe0] sm:$0xf]
  %v71 = vld [vmem:[%s0 + $0xe4] sm:$0xf]
  %v72 = vld [vmem:[%s0 + $0xe8] sm:$0xf]
  %v73 = vld [vmem:[%s0 + $0xec] sm:$0xf]
  %v74 = vld [vmem:[%s0 + $0xf0] sm:$0xf]
  %v75 = vld [vmem:[%s0 + $0xf4] sm:$0xf]
  %v76 = vld [vmem:[%s0 + $0xf8] sm:$0xf]
  %v77 = vld [vmem:[%s0 + $0xfc] sm:$0xf]
  %v78 = vld [vmem:[%s1] sm:$0xf]
  %v79 = vld [vmem:[%s1 + $0x4] sm:$0xf]
  %v144 = vunpack.c.l.b16 %v14
  %v145 = vunpack.c.l.b16 %v15
  %v146 = vunpack.c.l.b16 %v16
  %v147 = vunpack.c.l.b16 %v17
  %v148 = vunpack.c.l.b16 %v18
  %v149 = vunpack.c.l.b16 %v19
  %v150 = vunpack.c.l.b16 %v20
  %v151 = vunpack.c.l.b16 %v21
  %v152 = vunpack.c.l.b16 %v22
  %v153 = vunpack.c.l.b16 %v23
  %v154 = vunpack.c.l.b16 %v24
  %v155 = vunpack.c.l.b16 %v25
  %v156 = vunpack.c.l.b16 %v26
  %v157 = vunpack.c.l.b16 %v27
  %v158 = vunpack.c.l.b16 %v28
  %v159 = vunpack.c.l.b16 %v29
  %v160 = vunpack.c.l.b16 %v30
  %v161 = vunpack.c.l.b16 %v31
  %v162 = vunpack.c.l.b16 %v32
  %v163 = vunpack.c.l.b16 %v33
  %v164 = vunpack.c.l.b16 %v34
  %v165 = vunpack.c.l.b16 %v35
  %v166 = vunpack.c.l.b16 %v36
  %v167 = vunpack.c.l.b16 %v37
  %v168 = vunpack.c.l.b16 %v38
  %v169 = vunpack.c.l.b16 %v39
  %v170 = vunpack.c.l.b16 %v40
  %v171 = vunpack.c.l.b16 %v41
  %v172 = vunpack.c.l.b16 %v42
  %v173 = vunpack.c.l.b16 %v43
  %v174 = vunpack.c.l.b16 %v44
  %v175 = vunpack.c.l.b16 %v45
  %v176 = vunpack.c.l.b16 %v46
  %v177 = vunpack.c.l.b16 %v47
  %v178 = vunpack.c.l.b16 %v48
  %v179 = vunpack.c.l.b16 %v49
  %v180 = vunpack.c.l.b16 %v50
  %v181 = vunpack.c.l.b16 %v51
  %v182 = vunpack.c.l.b16 %v52
  %v183 = vunpack.c.l.b16 %v53
  %v184 = vunpack.c.l.b16 %v54
  %v185 = vunpack.c.l.b16 %v55
  %v186 = vunpack.c.l.b16 %v56
  %v187 = vunpack.c.l.b16 %v57
  %v188 = vunpack.c.l.b16 %v58
  %v189 = vunpack.c.l.b16 %v59
  %v190 = vunpack.c.l.b16 %v60
  %v191 = vunpack.c.l.b16 %v61
  %v192 = vunpack.c.l.b16 %v62
  %v193 = vunpack.c.l.b16 %v63
  %v194 = vunpack.c.l.b16 %v64
  %v195 = vunpack.c.l.b16 %v65
  %v196 = vunpack.c.l.b16 %v66
  %v197 = vunpack.c.l.b16 %v67
  %v198 = vunpack.c.l.b16 %v68
  %v199 = vunpack.c.l.b16 %v69
  %v200 = vunpack.c.l.b16 %v70
  %v201 = vunpack.c.l.b16 %v71
  %v202 = vunpack.c.l.b16 %v72
  %v203 = vunpack.c.l.b16 %v73
  %v204 = vunpack.c.l.b16 %v74
  %v205 = vunpack.c.l.b16 %v75
  %v206 = vunpack.c.l.b16 %v76
  %v207 = vunpack.c.l.b16 %v77
  %v208 = vpack.c.b16 %v145, %v144
  %v209 = vpack.c.b16 %v147, %v146
  %v210 = vpack.c.b16 %v149, %v148
  %v211 = vpack.c.b16 %v151, %v150
  %v212 = vpack.c.b16 %v153, %v152
  %v213 = vpack.c.b16 %v155, %v154
  %v214 = vpack.c.b16 %v157, %v156
  %v215 = vpack.c.b16 %v159, %v158
  %v216 = vpack.c.b16 %v161, %v160
  %v217 = vpack.c.b16 %v163, %v162
  %v218 = vpack.c.b16 %v165, %v164
  %v219 = vpack.c.b16 %v167, %v166
  %v220 = vpack.c.b16 %v169, %v168
  %v221 = vpack.c.b16 %v171, %v170
  %v222 = vpack.c.b16 %v173, %v172
  %v223 = vpack.c.b16 %v175, %v174
  %v224 = vpack.c.b16 %v177, %v176
  %v225 = vpack.c.b16 %v179, %v178
  %v226 = vpack.c.b16 %v181, %v180
  %v227 = vpack.c.b16 %v183, %v182
  %v228 = vpack.c.b16 %v185, %v184
  %v229 = vpack.c.b16 %v187, %v186
  %v230 = vpack.c.b16 %v189, %v188
  %v231 = vpack.c.b16 %v191, %v190
  %v232 = vpack.c.b16 %v193, %v192
  %v233 = vpack.c.b16 %v195, %v194
  %v234 = vpack.c.b16 %v197, %v196
  %v235 = vpack.c.b16 %v199, %v198
  %v236 = vpack.c.b16 %v201, %v200
  %v237 = vpack.c.b16 %v203, %v202
  %v238 = vpack.c.b16 %v205, %v204
  %v239 = vpack.c.b16 %v207, %v206
  %v242 = vunpack.c.l.b16 %v78
  %v243 = vunpack.c.l.b16 %v79
  %v244 = vpack.c.b16 %v243, %v242
  %vm246 = vcmask 130048
  %v248 = vsel %vm246, %v208, 0
  %v251 = vsel %vm246, %v209, 0
  %v254 = vsel %vm246, %v210, 0
  %v257 = vsel %vm246, %v211, 0
  %v260 = vsel %vm246, %v212, 0
  %v263 = vsel %vm246, %v213, 0
  %v266 = vsel %vm246, %v214, 0
  %v269 = vsel %vm246, %v215, 0
  %v272 = vsel %vm246, %v216, 0
  %v275 = vsel %vm246, %v217, 0
  %v278 = vsel %vm246, %v218, 0
  %v281 = vsel %vm246, %v219, 0
  %v284 = vsel %vm246, %v220, 0
  %v287 = vsel %vm246, %v221, 0
  %v290 = vsel %vm246, %v222, 0
  %v293 = vsel %vm246, %v223, 0
  %v296 = vsel %vm246, %v224, 0
  %v299 = vsel %vm246, %v225, 0
  %v302 = vsel %vm246, %v226, 0
  %v305 = vsel %vm246, %v227, 0
  %v308 = vsel %vm246, %v228, 0
  %v311 = vsel %vm246, %v229, 0
  %v314 = vsel %vm246, %v230, 0
  %v317 = vsel %vm246, %v231, 0
  %v320 = vsel %vm246, %v232, 0
  %v323 = vsel %vm246, %v233, 0
  %v326 = vsel %vm246, %v234, 0
  %v329 = vsel %vm246, %v235, 0
  %v332 = vsel %vm246, %v236, 0
  %v335 = vsel %vm246, %v237, 0
  %v338 = vsel %vm246, %v238, 0
  %v341 = vsel %vm246, %v239, 0
  %343 = vmatpush.bf16.msra.mxu0 0
  %344 = vmatpush.bf16.msra.mxu0 0
  %345 = vmatpush.bf16.msra.mxu0 0
  %346 = vmatpush.bf16.msra.mxu0 0
  %347 = vmatpush.bf16.msra.mxu0 0
  %348 = vmatpush.bf16.msra.mxu0 0
  %349 = vmatpush.bf16.msra.mxu0 0
  %350 = vmatpush.bf16.msra.mxu0 %v244
  %351 = vmatmul.bf16.gmra.mxu0 %v248
  %v352 = vpop.f32.mrf.mxu0
  %v353 = vadd.f32 0.0, %v352
  %v354 = vpop.f32.mrf.mxu0
  %v355 = vadd.f32 0.0, %v354
  %356 = vmatmul.bf16.gmra.mxu0 %v251
  %v357 = vpop.f32.mrf.mxu0
  %v358 = vadd.f32 0.0, %v357
  %v359 = vpop.f32.mrf.mxu0
  %v360 = vadd.f32 0.0, %v359
  %361 = vmatmul.bf16.gmra.mxu0 %v254
  %v362 = vpop.f32.mrf.mxu0
  %v363 = vadd.f32 0.0, %v362
  %v364 = vpop.f32.mrf.mxu0
  %v365 = vadd.f32 0.0, %v364
  %366 = vmatmul.bf16.gmra.mxu0 %v257
  %v367 = vpop.f32.mrf.mxu0
  %v368 = vadd.f32 0.0, %v367
  %v369 = vpop.f32.mrf.mxu0
  %v370 = vadd.f32 0.0, %v369
  %371 = vmatmul.bf16.gmra.mxu0 %v260
  %v372 = vpop.f32.mrf.mxu0
  %v373 = vadd.f32 0.0, %v372
  %v374 = vpop.f32.mrf.mxu0
  %v375 = vadd.f32 0.0, %v374
  %376 = vmatmul.bf16.gmra.mxu0 %v263
  %v377 = vpop.f32.mrf.mxu0
  %v378 = vadd.f32 0.0, %v377
  %v379 = vpop.f32.mrf.mxu0
  %v380 = vadd.f32 0.0, %v379
  %381 = vmatmul.bf16.gmra.mxu0 %v266
  %v382 = vpop.f32.mrf.mxu0
  %v383 = vadd.f32 0.0, %v382
  %v384 = vpop.f32.mrf.mxu0
  %v385 = vadd.f32 0.0, %v384
  %386 = vmatmul.bf16.gmra.mxu0 %v269
  %v387 = vpop.f32.mrf.mxu0
  %v388 = vadd.f32 0.0, %v387
  %v389 = vpop.f32.mrf.mxu0
  %v390 = vadd.f32 0.0, %v389
  %391 = vmatmul.bf16.gmra.mxu0 %v272
  %v392 = vpop.f32.mrf.mxu0
  %v393 = vadd.f32 0.0, %v392
  %v394 = vpop.f32.mrf.mxu0
  %v395 = vadd.f32 0.0, %v394
  %396 = vmatmul.bf16.gmra.mxu0 %v275
  %v397 = vpop.f32.mrf.mxu0
  %v398 = vadd.f32 0.0, %v397
  %v399 = vpop.f32.mrf.mxu0
  %v400 = vadd.f32 0.0, %v399
  %401 = vmatmul.bf16.gmra.mxu0 %v278
  %v402 = vpop.f32.mrf.mxu0
  %v403 = vadd.f32 0.0, %v402
  %v404 = vpop.f32.mrf.mxu0
  %v405 = vadd.f32 0.0, %v404
  %406 = vmatmul.bf16.gmra.mxu0 %v281
  %v407 = vpop.f32.mrf.mxu0
  %v408 = vadd.f32 0.0, %v407
  %v409 = vpop.f32.mrf.mxu0
  %v410 = vadd.f32 0.0, %v409
  %411 = vmatmul.bf16.gmra.mxu0 %v284
  %v412 = vpop.f32.mrf.mxu0
  %v413 = vadd.f32 0.0, %v412
  %v414 = vpop.f32.mrf.mxu0
  %v415 = vadd.f32 0.0, %v414
  %416 = vmatmul.bf16.gmra.mxu0 %v287
  %v417 = vpop.f32.mrf.mxu0
  %v418 = vadd.f32 0.0, %v417
  %v419 = vpop.f32.mrf.mxu0
  %v420 = vadd.f32 0.0, %v419
  %421 = vmatmul.bf16.gmra.mxu0 %v290
  %v422 = vpop.f32.mrf.mxu0
  %v423 = vadd.f32 0.0, %v422
  %v424 = vpop.f32.mrf.mxu0
  %v425 = vadd.f32 0.0, %v424
  %426 = vmatmul.bf16.gmra.mxu0 %v293
  %v427 = vpop.f32.mrf.mxu0
  %v428 = vadd.f32 0.0, %v427
  %v429 = vpop.f32.mrf.mxu0
  %v430 = vadd.f32 0.0, %v429
  %431 = vmatmul.bf16.gmra.mxu0 %v296
  %v432 = vpop.f32.mrf.mxu0
  %v433 = vadd.f32 0.0, %v432
  %v434 = vpop.f32.mrf.mxu0
  %v435 = vadd.f32 0.0, %v434
  %436 = vmatmul.bf16.gmra.mxu0 %v299
  %v437 = vpop.f32.mrf.mxu0
  %v438 = vadd.f32 0.0, %v437
  %v439 = vpop.f32.mrf.mxu0
  %v440 = vadd.f32 0.0, %v439
  %441 = vmatmul.bf16.gmra.mxu0 %v302
  %v442 = vpop.f32.mrf.mxu0
  %v443 = vadd.f32 0.0, %v442
  %v444 = vpop.f32.mrf.mxu0
  %v445 = vadd.f32 0.0, %v444
  %446 = vmatmul.bf16.gmra.mxu0 %v305
  %v447 = vpop.f32.mrf.mxu0
  %v448 = vadd.f32 0.0, %v447
  %v449 = vpop.f32.mrf.mxu0
  %v450 = vadd.f32 0.0, %v449
  %451 = vmatmul.bf16.gmra.mxu0 %v308
  %v452 = vpop.f32.mrf.mxu0
  %v453 = vadd.f32 0.0, %v452
  %v454 = vpop.f32.mrf.mxu0
  %v455 = vadd.f32 0.0, %v454
  %456 = vmatmul.bf16.gmra.mxu0 %v311
  %v457 = vpop.f32.mrf.mxu0
  %v458 = vadd.f32 0.0, %v457
  %v459 = vpop.f32.mrf.mxu0
  %v460 = vadd.f32 0.0, %v459
  %461 = vmatmul.bf16.gmra.mxu0 %v314
  %v462 = vpop.f32.mrf.mxu0
  %v463 = vadd.f32 0.0, %v462
  %v464 = vpop.f32.mrf.mxu0
  %v465 = vadd.f32 0.0, %v464
  %466 = vmatmul.bf16.gmra.mxu0 %v317
  %v467 = vpop.f32.mrf.mxu0
  %v468 = vadd.f32 0.0, %v467
  %v469 = vpop.f32.mrf.mxu0
  %v470 = vadd.f32 0.0, %v469
  %471 = vmatmul.bf16.gmra.mxu0 %v320
  %v472 = vpop.f32.mrf.mxu0
  %v473 = vadd.f32 0.0, %v472
  %v474 = vpop.f32.mrf.mxu0
  %v475 = vadd.f32 0.0, %v474
  %476 = vmatmul.bf16.gmra.mxu0 %v323
  %v477 = vpop.f32.mrf.mxu0
  %v478 = vadd.f32 0.0, %v477
  %v479 = vpop.f32.mrf.mxu0
  %v480 = vadd.f32 0.0, %v479
  %481 = vmatmul.bf16.gmra.mxu0 %v326
  %v482 = vpop.f32.mrf.mxu0
  %v483 = vadd.f32 0.0, %v482
  %v484 = vpop.f32.mrf.mxu0
  %v485 = vadd.f32 0.0, %v484
  %486 = vmatmul.bf16.gmra.mxu0 %v329
  %v487 = vpop.f32.mrf.mxu0
  %v488 = vadd.f32 0.0, %v487
  %v489 = vpop.f32.mrf.mxu0
  %v490 = vadd.f32 0.0, %v489
  %491 = vmatmul.bf16.gmra.mxu0 %v332
  %v492 = vpop.f32.mrf.mxu0
  %v493 = vadd.f32 0.0, %v492
  %v494 = vpop.f32.mrf.mxu0
  %v495 = vadd.f32 0.0, %v494
  %496 = vmatmul.bf16.gmra.mxu0 %v335
  %v497 = vpop.f32.mrf.mxu0
  %v498 = vadd.f32 0.0, %v497
  %v499 = vpop.f32.mrf.mxu0
  %v500 = vadd.f32 0.0, %v499
  %501 = vmatmul.bf16.gmra.mxu0 %v338
  %v502 = vpop.f32.mrf.mxu0
  %v503 = vadd.f32 0.0, %v502
  %v504 = vpop.f32.mrf.mxu0
  %v505 = vadd.f32 0.0, %v504
  %506 = vmatmul.bf16.gmra.mxu0 %v341
  %v507 = vpop.f32.mrf.mxu0
  %v508 = vadd.f32 0.0, %v507
  %v509 = vpop.f32.mrf.mxu0
  %v510 = vadd.f32 0.0, %v509
  %511 = vdwg.mxu0
  %vm512 = vcmask 31744
  %v513 = vsel %vm512, %v353, 0.0
  %v514 = vsel %vm512, %v355, 0.0
  %v515 = vadd.f32 %v513, %v514
  %v516 = vsel %vm512, %v358, 0.0
  %v517 = vadd.f32 %v515, %v516
  %v518 = vsel %vm512, %v360, 0.0
  %v519 = vadd.f32 %v517, %v518
  %v520 = vsel %vm512, %v363, 0.0
  %v521 = vadd.f32 %v519, %v520
  %v522 = vsel %vm512, %v365, 0.0
  %v523 = vadd.f32 %v521, %v522
  %v524 = vsel %vm512, %v368, 0.0
  %v525 = vadd.f32 %v523, %v524
  %v526 = vsel %vm512, %v370, 0.0
  %v527 = vadd.f32 %v525, %v526
  %v528 = vsel %vm512, %v373, 0.0
  %v529 = vadd.f32 %v527, %v528
  %v530 = vsel %vm512, %v375, 0.0
  %v531 = vadd.f32 %v529, %v530
  %v532 = vsel %vm512, %v378, 0.0
  %v533 = vadd.f32 %v531, %v532
  %v534 = vsel %vm512, %v380, 0.0
  %v535 = vadd.f32 %v533, %v534
  %v536 = vsel %vm512, %v383, 0.0
  %v537 = vadd.f32 %v535, %v536
  %v538 = vsel %vm512, %v385, 0.0
  %v539 = vadd.f32 %v537, %v538
  %v540 = vsel %vm512, %v388, 0.0
  %v541 = vadd.f32 %v539, %v540
  %v542 = vsel %vm512, %v390, 0.0
  %v543 = vadd.f32 %v541, %v542
  %v544 = vsel %vm512, %v393, 0.0
  %v545 = vadd.f32 %v543, %v544
  %v546 = vsel %vm512, %v395, 0.0
  %v547 = vadd.f32 %v545, %v546
  %v548 = vsel %vm512, %v398, 0.0
  %v549 = vadd.f32 %v547, %v548
  %v550 = vsel %vm512, %v400, 0.0
  %v551 = vadd.f32 %v549, %v550
  %v552 = vsel %vm512, %v403, 0.0
  %v553 = vadd.f32 %v551, %v552
  %v554 = vsel %vm512, %v405, 0.0
  %v555 = vadd.f32 %v553, %v554
  %v556 = vsel %vm512, %v408, 0.0
  %v557 = vadd.f32 %v555, %v556
  %v558 = vsel %vm512, %v410, 0.0
  %v559 = vadd.f32 %v557, %v558
  %v560 = vsel %vm512, %v413, 0.0
  %v561 = vadd.f32 %v559, %v560
  %v562 = vsel %vm512, %v415, 0.0
  %v563 = vadd.f32 %v561, %v562
  %v564 = vsel %vm512, %v418, 0.0
  %v565 = vadd.f32 %v563, %v564
  %v566 = vsel %vm512, %v420, 0.0
  %v567 = vadd.f32 %v565, %v566
  %v568 = vsel %vm512, %v423, 0.0
  %v569 = vadd.f32 %v567, %v568
  %v570 = vsel %vm512, %v425, 0.0
  %v571 = vadd.f32 %v569, %v570
  %v572 = vsel %vm512, %v428, 0.0
  %v573 = vadd.f32 %v571, %v572
  %v574 = vsel %vm512, %v430, 0.0
  %v575 = vadd.f32 %v573, %v574
  %v576 = vsel %vm512, %v433, 0.0
  %v577 = vadd.f32 %v575, %v576
  %v578 = vsel %vm512, %v435, 0.0
  %v579 = vadd.f32 %v577, %v578
  %v580 = vsel %vm512, %v438, 0.0
  %v581 = vadd.f32 %v579, %v580
  %v582 = vsel %vm512, %v440, 0.0
  %v583 = vadd.f32 %v581, %v582
  %v584 = vsel %vm512, %v443, 0.0
  %v585 = vadd.f32 %v583, %v584
  %v586 = vsel %vm512, %v445, 0.0
  %v587 = vadd.f32 %v585, %v586
  %v588 = vsel %vm512, %v448, 0.0
  %v589 = vadd.f32 %v587, %v588
  %v590 = vsel %vm512, %v450, 0.0
  %v591 = vadd.f32 %v589, %v590
  %v592 = vsel %vm512, %v453, 0.0
  %v593 = vadd.f32 %v591, %v592
  %v594 = vsel %vm512, %v455, 0.0
  %v595 = vadd.f32 %v593, %v594
  %v596 = vsel %vm512, %v458, 0.0
  %v597 = vadd.f32 %v595, %v596
  %v598 = vsel %vm512, %v460, 0.0
  %v599 = vadd.f32 %v597, %v598
  %v600 = vsel %vm512, %v463, 0.0
  %v601 = vadd.f32 %v599, %v600
  %v602 = vsel %vm512, %v465, 0.0
  %v603 = vadd.f32 %v601, %v602
  %v604 = vsel %vm512, %v468, 0.0
  %v605 = vadd.f32 %v603, %v604
  %v606 = vsel %vm512, %v470, 0.0
  %v607 = vadd.f32 %v605, %v606
  %v608 = vsel %vm512, %v473, 0.0
  %v609 = vadd.f32 %v607, %v608
  %v610 = vsel %vm512, %v475, 0.0
  %v611 = vadd.f32 %v609, %v610
  %v612 = vsel %vm512, %v478, 0.0
  %v613 = vadd.f32 %v611, %v612
  %v614 = vsel %vm512, %v480, 0.0
  %v615 = vadd.f32 %v613, %v614
  %v616 = vsel %vm512, %v483, 0.0
  %v617 = vadd.f32 %v615, %v616
  %v618 = vsel %vm512, %v485, 0.0
  %v619 = vadd.f32 %v617, %v618
  %v620 = vsel %vm512, %v488, 0.0
  %v621 = vadd.f32 %v619, %v620
  %v622 = vsel %vm512, %v490, 0.0
  %v623 = vadd.f32 %v621, %v622
  %v624 = vsel %vm512, %v493, 0.0
  %v625 = vadd.f32 %v623, %v624
  %v626 = vsel %vm512, %v495, 0.0
  %v627 = vadd.f32 %v625, %v626
  %v628 = vsel %vm512, %v498, 0.0
  %v629 = vadd.f32 %v627, %v628
  %v630 = vsel %vm512, %v500, 0.0
  %v631 = vadd.f32 %v629, %v630
  %v632 = vsel %vm512, %v503, 0.0
  %v633 = vadd.f32 %v631, %v632
  %v634 = vsel %vm512, %v505, 0.0
  %v635 = vadd.f32 %v633, %v634
  %v636 = vsel %vm512, %v508, 0.0
  %v637 = vadd.f32 %v635, %v636
  %v638 = vsel %vm512, %v510, 0.0
  %v639 = vadd.f32 %v637, %v638
  %v640 = vrot.slane %v639, 4
  %v641 = vadd.f32 %v639, %v640
  %v642 = vrot.slane %v641, 2
  %v643 = vadd.f32 %v641, %v642
  %v644 = vrot.slane %v643, 1
  %v645 = vadd.f32 %v643, %v644
  %vm646 = vcmask 24576
  %647 = vst.msk [vmem:[%s2] sm:$0x1] %vm646, %v645
  %v648 = vmul.f32 %v353, %v353
  %v649 = vmul.f32 %v355, %v355
  %v650 = vmul.f32 %v358, %v358
  %v651 = vmul.f32 %v360, %v360
  %v652 = vmul.f32 %v363, %v363
  %v653 = vmul.f32 %v365, %v365
  %v654 = vmul.f32 %v368, %v368
  %v655 = vmul.f32 %v370, %v370
  %v656 = vmul.f32 %v373, %v373
  %v657 = vmul.f32 %v375, %v375
  %v658 = vmul.f32 %v378, %v378
  %v659 = vmul.f32 %v380, %v380
  %v660 = vmul.f32 %v383, %v383
  %v661 = vmul.f32 %v385, %v385
  %v662 = vmul.f32 %v388, %v388
  %v663 = vmul.f32 %v390, %v390
  %v664 = vmul.f32 %v393, %v393
  %v665 = vmul.f32 %v395, %v395
  %v666 = vmul.f32 %v398, %v398
  %v667 = vmul.f32 %v400, %v400
  %v668 = vmul.f32 %v403, %v403
  %v669 = vmul.f32 %v405, %v405
  %v670 = vmul.f32 %v408, %v408
  %v671 = vmul.f32 %v410, %v410
  %v672 = vmul.f32 %v413, %v413
  %v673 = vmul.f32 %v415, %v415
  %v674 = vmul.f32 %v418, %v418
  %v675 = vmul.f32 %v420, %v420
  %v676 = vmul.f32 %v423, %v423
  %v677 = vmul.f32 %v425, %v425
  %v678 = vmul.f32 %v428, %v428
  %v679 = vmul.f32 %v430, %v430
  %v680 = vmul.f32 %v433, %v433
  %v681 = vmul.f32 %v435, %v435
  %v682 = vmul.f32 %v438, %v438
  %v683 = vmul.f32 %v440, %v440
  %v684 = vmul.f32 %v443, %v443
  %v685 = vmul.f32 %v445, %v445
  %v686 = vmul.f32 %v448, %v448
  %v687 = vmul.f32 %v450, %v450
  %v688 = vmul.f32 %v453, %v453
  %v689 = vmul.f32 %v455, %v455
  %v690 = vmul.f32 %v458, %v458
  %v691 = vmul.f32 %v460, %v460
  %v692 = vmul.f32 %v463, %v463
  %v693 = vmul.f32 %v465, %v465
  %v694 = vmul.f32 %v468, %v468
  %v695 = vmul.f32 %v470, %v470
  %v696 = vmul.f32 %v473, %v473
  %v697 = vmul.f32 %v475, %v475
  %v698 = vmul.f32 %v478, %v478
  %v699 = vmul.f32 %v480, %v480
  %v700 = vmul.f32 %v483, %v483
  %v701 = vmul.f32 %v485, %v485
  %v702 = vmul.f32 %v488, %v488
  %v703 = vmul.f32 %v490, %v490
  %v704 = vmul.f32 %v493, %v493
  %v705 = vmul.f32 %v495, %v495
  %v706 = vmul.f32 %v498, %v498
  %v707 = vmul.f32 %v500, %v500
  %v708 = vmul.f32 %v503, %v503
  %v709 = vmul.f32 %v505, %v505
  %v710 = vmul.f32 %v508, %v508
  %v711 = vmul.f32 %v510, %v510
  %v712 = vsel %vm512, %v648, 0.0
  %v713 = vsel %vm512, %v649, 0.0
  %v714 = vadd.f32 %v712, %v713
  %v715 = vsel %vm512, %v650, 0.0
  %v716 = vadd.f32 %v714, %v715
  %v717 = vsel %vm512, %v651, 0.0
  %v718 = vadd.f32 %v716, %v717
  %v719 = vsel %vm512, %v652, 0.0
  %v720 = vadd.f32 %v718, %v719
  %v721 = vsel %vm512, %v653, 0.0
  %v722 = vadd.f32 %v720, %v721
  %v723 = vsel %vm512, %v654, 0.0
  %v724 = vadd.f32 %v722, %v723
  %v725 = vsel %vm512, %v655, 0.0
  %v726 = vadd.f32 %v724, %v725
  %v727 = vsel %vm512, %v656, 0.0
  %v728 = vadd.f32 %v726, %v727
  %v729 = vsel %vm512, %v657, 0.0
  %v730 = vadd.f32 %v728, %v729
  %v731 = vsel %vm512, %v658, 0.0
  %v732 = vadd.f32 %v730, %v731
  %v733 = vsel %vm512, %v659, 0.0
  %v734 = vadd.f32 %v732, %v733
  %v735 = vsel %vm512, %v660, 0.0
  %v736 = vadd.f32 %v734, %v735
  %v737 = vsel %vm512, %v661, 0.0
  %v738 = vadd.f32 %v736, %v737
  %v739 = vsel %vm512, %v662, 0.0
  %v740 = vadd.f32 %v738, %v739
  %v741 = vsel %vm512, %v663, 0.0
  %v742 = vadd.f32 %v740, %v741
  %v743 = vsel %vm512, %v664, 0.0
  %v744 = vadd.f32 %v742, %v743
  %v745 = vsel %vm512, %v665, 0.0
  %v746 = vadd.f32 %v744, %v745
  %v747 = vsel %vm512, %v666, 0.0
  %v748 = vadd.f32 %v746, %v747
  %v749 = vsel %vm512, %v667, 0.0
  %v750 = vadd.f32 %v748, %v749
  %v751 = vsel %vm512, %v668, 0.0
  %v752 = vadd.f32 %v750, %v751
  %v753 = vsel %vm512, %v669, 0.0
  %v754 = vadd.f32 %v752, %v753
  %v755 = vsel %vm512, %v670, 0.0
  %v756 = vadd.f32 %v754, %v755
  %v757 = vsel %vm512, %v671, 0.0
  %v758 = vadd.f32 %v756, %v757
  %v759 = vsel %vm512, %v672, 0.0
  %v760 = vadd.f32 %v758, %v759
  %v761 = vsel %vm512, %v673, 0.0
  %v762 = vadd.f32 %v760, %v761
  %v763 = vsel %vm512, %v674, 0.0
  %v764 = vadd.f32 %v762, %v763
  %v765 = vsel %vm512, %v675, 0.0
  %v766 = vadd.f32 %v764, %v765
  %v767 = vsel %vm512, %v676, 0.0
  %v768 = vadd.f32 %v766, %v767
  %v769 = vsel %vm512, %v677, 0.0
  %v770 = vadd.f32 %v768, %v769
  %v771 = vsel %vm512, %v678, 0.0
  %v772 = vadd.f32 %v770, %v771
  %v773 = vsel %vm512, %v679, 0.0
  %v774 = vadd.f32 %v772, %v773
  %v775 = vsel %vm512, %v680, 0.0
  %v776 = vadd.f32 %v774, %v775
  %v777 = vsel %vm512, %v681, 0.0
  %v778 = vadd.f32 %v776, %v777
  %v779 = vsel %vm512, %v682, 0.0
  %v780 = vadd.f32 %v778, %v779
  %v781 = vsel %vm512, %v683, 0.0
  %v782 = vadd.f32 %v780, %v781
  %v783 = vsel %vm512, %v684, 0.0
  %v784 = vadd.f32 %v782, %v783
  %v785 = vsel %vm512, %v685, 0.0
  %v786 = vadd.f32 %v784, %v785
  %v787 = vsel %vm512, %v686, 0.0
  %v788 = vadd.f32 %v786, %v787
  %v789 = vsel %vm512, %v687, 0.0
  %v790 = vadd.f32 %v788, %v789
  %v791 = vsel %vm512, %v688, 0.0
  %v792 = vadd.f32 %v790, %v791
  %v793 = vsel %vm512, %v689, 0.0
  %v794 = vadd.f32 %v792, %v793
  %v795 = vsel %vm512, %v690, 0.0
  %v796 = vadd.f32 %v794, %v795
  %v797 = vsel %vm512, %v691, 0.0
  %v798 = vadd.f32 %v796, %v797
  %v799 = vsel %vm512, %v692, 0.0
  %v800 = vadd.f32 %v798, %v799
  %v801 = vsel %vm512, %v693, 0.0
  %v802 = vadd.f32 %v800, %v801
  %v803 = vsel %vm512, %v694, 0.0
  %v804 = vadd.f32 %v802, %v803
  %v805 = vsel %vm512, %v695, 0.0
  %v806 = vadd.f32 %v804, %v805
  %v807 = vsel %vm512, %v696, 0.0
  %v808 = vadd.f32 %v806, %v807
  %v809 = vsel %vm512, %v697, 0.0
  %v810 = vadd.f32 %v808, %v809
  %v811 = vsel %vm512, %v698, 0.0
  %v812 = vadd.f32 %v810, %v811
  %v813 = vsel %vm512, %v699, 0.0
  %v814 = vadd.f32 %v812, %v813
  %v815 = vsel %vm512, %v700, 0.0
  %v816 = vadd.f32 %v814, %v815
  %v817 = vsel %vm512, %v701, 0.0
  %v818 = vadd.f32 %v816, %v817
  %v819 = vsel %vm512, %v702, 0.0
  %v820 = vadd.f32 %v818, %v819
  %v821 = vsel %vm512, %v703, 0.0
  %v822 = vadd.f32 %v820, %v821
  %v823 = vsel %vm512, %v704, 0.0
  %v824 = vadd.f32 %v822, %v823
  %v825 = vsel %vm512, %v705, 0.0
  %v826 = vadd.f32 %v824, %v825
  %v827 = vsel %vm512, %v706, 0.0
  %v828 = vadd.f32 %v826, %v827
  %v829 = vsel %vm512, %v707, 0.0
  %v830 = vadd.f32 %v828, %v829
  %v831 = vsel %vm512, %v708, 0.0
  %v832 = vadd.f32 %v830, %v831
  %v833 = vsel %vm512, %v709, 0.0
  %v834 = vadd.f32 %v832, %v833
  %v835 = vsel %vm512, %v710, 0.0
  %v836 = vadd.f32 %v834, %v835
  %v837 = vsel %vm512, %v711, 0.0
  %v838 = vadd.f32 %v836, %v837
  %v839 = vrot.slane %v838, 4
  %v840 = vadd.f32 %v838, %v839
  %v841 = vrot.slane %v840, 2
  %v842 = vadd.f32 %v840, %v841
  %v843 = vrot.slane %v842, 1
  %v844 = vadd.f32 %v842, %v843
  %845 = vst.msk [vmem:[%s3] sm:$0x1] %vm646, %v844
  // Predicated region
  $region10: #{cnn_attention_forward.6} parent=0 // pred_check
    _
  $region11: #{cnn_attention_forward.6} parent=0 // pred_check_branch
    %847 = sbr.rel (0) target = $region13
  $region12: #{cnn_attention_forward.6} parent=0 // pred_region
    _
  $region13: #{cnn_attention_forward.6} parent=0 // pred_fallthru
    _
  // Predicated region
  $region14: #{cnn_attention_forward.6} parent=0 // pred_check
    _
  $region15: #{cnn_attention_forward.6} parent=0 // pred_check_branch
    %849 = sbr.rel (0) target = $region17
  $region16: #{cnn_attention_forward.6} parent=0 // pred_region
    _
  $region17: #{cnn_attention_forward.6} parent=0 // pred_fallthru
    _
  // Predicated region
  $region18: #{cnn_attention_forward.6} parent=0 // pred_check
    _
  $region19: #{cnn_attention_forward.6} parent=0 // pred_check_branch
    %851 = sbr.rel (0) target = $region21
  $region20: #{cnn_attention_forward.6} parent=0 // pred_region
    _
  $region21: #{cnn_attention_forward.6} parent=0 // pred_fallthru
    _
  // Predicated region
  $region22: #{cnn_attention_forward.6} parent=0 // pred_check
    _
  $region23: #{cnn_attention_forward.6} parent=0 // pred_check_branch
    %853 = sbr.rel (0) target = $region25
  $region24: #{cnn_attention_forward.6} parent=0 // pred_region
    _
  $region25: #{cnn_attention_forward.6} parent=0 // pred_fallthru
    _

// kernel: cnn_attention_forward.7
$region0: #{cnn_attention_forward.7}
  #allocation0 [shape = 'u32[]', space=smem, size = 0x4, offset = 0x4, fixed_abs, tag = 'smem constant byte address 0x4 - core index']
  #allocation1 [shape = 'u32[72,128]{1,0:T(1,128)}', space=vmem, size = 0x9000, scoped, tag = 'internal scratch']
  %s0 = inlined_call_operand.vmem [shape: bf16[512,16], index: 0, kind: input, shape index: {}]
  %s1 = inlined_call_operand.vmem [shape: bf16[16,4], index: 1, kind: input, shape index: {}]
  %s2 = inlined_call_operand.vmem [shape: f32[1,4], index: 2, kind: input, shape index: {}]
  %s3 = inlined_call_operand.vmem [shape: f32[1,4], index: 3, kind: input, shape index: {}]
  %s4 = inlined_call_operand.vmem [shape: f32[512,4], index: 4, kind: output, shape index: {}]
  %s5 = sld [smem:[#allocation0]]
  $region26: #{cnn_attention_forward.7} parent=0
    _
  %s7 = ssub.s32 1, %s5
  %s8 = scalar_select 0, %s7, %s5
  // Predicated region
  $region2: #{cnn_attention_forward.7} parent=0 // pred_check
    _
  $region3: #{cnn_attention_forward.7} parent=0 // pred_check_branch
    %10 = sbr.rel (0) target = $region5
  $region4: #{cnn_attention_forward.7} parent=0 // pred_region
    _
  $region5: #{cnn_attention_forward.7} parent=0 // pred_fallthru
    _
  // Predicated region
  $region6: #{cnn_attention_forward.7} parent=0 // pred_check
    _
  $region7: #{cnn_attention_forward.7} parent=0 // pred_check_branch
    %12 = sbr.rel (0) target = $region9
  $region8: #{cnn_attention_forward.7} parent=0 // pred_region
    _
  $region9: #{cnn_attention_forward.7} parent=0 // pred_fallthru
    _
  // Predicated region
  $region10: #{cnn_attention_forward.7} parent=0 // pred_check
    _
  $region11: #{cnn_attention_forward.7} parent=0 // pred_check_branch
    %14 = sbr.rel (0) target = $region13
  $region12: #{cnn_attention_forward.7} parent=0 // pred_region
    _
  $region13: #{cnn_attention_forward.7} parent=0 // pred_fallthru
    _
  // Predicated region
  $region14: #{cnn_attention_forward.7} parent=0 // pred_check
    _
  $region15: #{cnn_attention_forward.7} parent=0 // pred_check_branch
    %16 = sbr.rel (0) target = $region17
  $region16: #{cnn_attention_forward.7} parent=0 // pred_region
    _
  $region17: #{cnn_attention_forward.7} parent=0 // pred_fallthru
    _
  %v18 = vld [vmem:[%s0] sm:$0xf]
  %v19 = vld [vmem:[%s0 + $0x4] sm:$0xf]
  %v20 = vld [vmem:[%s0 + $0x8] sm:$0xf]
  %v21 = vld [vmem:[%s0 + $0xc] sm:$0xf]
  %v22 = vld [vmem:[%s0 + $0x10] sm:$0xf]
  %v23 = vld [vmem:[%s0 + $0x14] sm:$0xf]
  %v24 = vld [vmem:[%s0 + $0x18] sm:$0xf]
  %v25 = vld [vmem:[%s0 + $0x1c] sm:$0xf]
  %v26 = vld [vmem:[%s0 + $0x20] sm:$0xf]
  %v27 = vld [vmem:[%s0 + $0x24] sm:$0xf]
  %v28 = vld [vmem:[%s0 + $0x28] sm:$0xf]
  %v29 = vld [vmem:[%s0 + $0x2c] sm:$0xf]
  %v30 = vld [vmem:[%s0 + $0x30] sm:$0xf]
  %v31 = vld [vmem:[%s0 + $0x34] sm:$0xf]
  %v32 = vld [vmem:[%s0 + $0x38] sm:$0xf]
  %v33 = vld [vmem:[%s0 + $0x3c] sm:$0xf]
  %v34 = vld [vmem:[%s0 + $0x40] sm:$0xf]
  %v35 = vld [vmem:[%s0 + $0x44] sm:$0xf]
  %v36 = vld [vmem:[%s0 + $0x48] sm:$0xf]
  %v37 = vld [vmem:[%s0 + $0x4c] sm:$0xf]
  %v38 = vld [vmem:[%s0 + $0x50] sm:$0xf]
  %v39 = vld [vmem:[%s0 + $0x54] sm:$0xf]
  %v40 = vld [vmem:[%s0 + $0x58] sm:$0xf]
  %v41 = vld [vmem:[%s0 + $0x5c] sm:$0xf]
  %v42 = vld [vmem:[%s0 + $0x60] sm:$0xf]
  %v43 = vld [vmem:[%s0 + $0x64] sm:$0xf]
  %v44 = vld [vmem:[%s0 + $0x68] sm:$0xf]
  %v45 = vld [vmem:[%s0 + $0x6c] sm:$0xf]
  %v46 = vld [vmem:[%s0 + $0x70] sm:$0xf]
  %v47 = vld [vmem:[%s0 + $0x74] sm:$0xf]
  %v48 = vld [vmem:[%s0 + $0x78] sm:$0xf]
  %v49 = vld [vmem:[%s0 + $0x7c] sm:$0xf]
  %v50 = vld [vmem:[%s0 + $0x80] sm:$0xf]
  %v51 = vld [vmem:[%s0 + $0x84] sm:$0xf]
  %v52 = vld [vmem:[%s0 + $0x88] sm:$0xf]
  %v53 = vld [vmem:[%s0 + $0x8c] sm:$0xf]
  %v54 = vld [vmem:[%s0 + $0x90] sm:$0xf]
  %v55 = vld [vmem:[%s0 + $0x94] sm:$0xf]
  %v56 = vld [vmem:[%s0 + $0x98] sm:$0xf]
  %v57 = vld [vmem:[%s0 + $0x9c] sm:$0xf]
  %v58 = vld [vmem:[%s0 + $0xa0] sm:$0xf]
  %v59 = vld [vmem:[%s0 + $0xa4] sm:$0xf]
  %v60 = vld [vmem:[%s0 + $0xa8] sm:$0xf]
  %v61 = vld [vmem:[%s0 + $0xac] sm:$0xf]
  %v62 = vld [vmem:[%s0 + $0xb0] sm:$0xf]
  %v63 = vld [vmem:[%s0 + $0xb4] sm:$0xf]
  %v64 = vld [vmem:[%s0 + $0xb8] sm:$0xf]
  %v65 = vld [vmem:[%s0 + $0xbc] sm:$0xf]
  %v66 = vld [vmem:[%s0 + $0xc0] sm:$0xf]
  %v67 = vld [vmem:[%s0 + $0xc4] sm:$0xf]
  %v68 = vld [vmem:[%s0 + $0xc8] sm:$0xf]
  %v69 = vld [vmem:[%s0 + $0xcc] sm:$0xf]
  %v70 = vld [vmem:[%s0 + $0xd0] sm:$0xf]
  %v71 = vld [vmem:[%s0 + $0xd4] sm:$0xf]
  %v72 = vld [vmem:[%s0 + $0xd8] sm:$0xf]
  %v73 = vld [vmem:[%s0 + $0xdc] sm:$0xf]
  %v74 = vld [vmem:[%s0 + $0xe0] sm:$0xf]
  %v75 = vld [vmem:[%s0 + $0xe4] sm:$0xf]
  %v76 = vld [vmem:[%s0 + $0xe8] sm:$0xf]
  %v77 = vld [vmem:[%s0 + $0xec] sm:$0xf]
  %v78 = vld [vmem:[%s0 + $0xf0] sm:$0xf]
  %v79 = vld [vmem:[%s0 + $0xf4] sm:$0xf]
  %v80 = vld [vmem:[%s0 + $0xf8] sm:$0xf]
  %v81 = vld [vmem:[%s0 + $0xfc] sm:$0xf]
  %v82 = vld [vmem:[%s1] sm:$0xf]
  %v83 = vld [vmem:[%s1 + $0x4] sm:$0xf]
  %v148 = vunpack.c.l.b16 %v18
  %v149 = vunpack.c.l.b16 %v19
  %v150 = vunpack.c.l.b16 %v20
  %v151 = vunpack.c.l.b16 %v21
  %v152 = vunpack.c.l.b16 %v22
  %v153 = vunpack.c.l.b16 %v23
  %v154 = vunpack.c.l.b16 %v24
  %v155 = vunpack.c.l.b16 %v25
  %v156 = vunpack.c.l.b16 %v26
  %v157 = vunpack.c.l.b16 %v27
  %v158 = vunpack.c.l.b16 %v28
  %v159 = vunpack.c.l.b16 %v29
  %v160 = vunpack.c.l.b16 %v30
  %v161 = vunpack.c.l.b16 %v31
  %v162 = vunpack.c.l.b16 %v32
  %v163 = vunpack.c.l.b16 %v33
  %v164 = vunpack.c.l.b16 %v34
  %v165 = vunpack.c.l.b16 %v35
  %v166 = vunpack.c.l.b16 %v36
  %v167 = vunpack.c.l.b16 %v37
  %v168 = vunpack.c.l.b16 %v38
  %v169 = vunpack.c.l.b16 %v39
  %v170 = vunpack.c.l.b16 %v40
  %v171 = vunpack.c.l.b16 %v41
  %v172 = vunpack.c.l.b16 %v42
  %v173 = vunpack.c.l.b16 %v43
  %v174 = vunpack.c.l.b16 %v44
  %v175 = vunpack.c.l.b16 %v45
  %v176 = vunpack.c.l.b16 %v46
  %v177 = vunpack.c.l.b16 %v47
  %v178 = vunpack.c.l.b16 %v48
  %v179 = vunpack.c.l.b16 %v49
  %v180 = vunpack.c.l.b16 %v50
  %v181 = vunpack.c.l.b16 %v51
  %v182 = vunpack.c.l.b16 %v52
  %v183 = vunpack.c.l.b16 %v53
  %v184 = vunpack.c.l.b16 %v54
  %v185 = vunpack.c.l.b16 %v55
  %v186 = vunpack.c.l.b16 %v56
  %v187 = vunpack.c.l.b16 %v57
  %v188 = vunpack.c.l.b16 %v58
  %v189 = vunpack.c.l.b16 %v59
  %v190 = vunpack.c.l.b16 %v60
  %v191 = vunpack.c.l.b16 %v61
  %v192 = vunpack.c.l.b16 %v62
  %v193 = vunpack.c.l.b16 %v63
  %v194 = vunpack.c.l.b16 %v64
  %v195 = vunpack.c.l.b16 %v65
  %v196 = vunpack.c.l.b16 %v66
  %v197 = vunpack.c.l.b16 %v67
  %v198 = vunpack.c.l.b16 %v68
  %v199 = vunpack.c.l.b16 %v69
  %v200 = vunpack.c.l.b16 %v70
  %v201 = vunpack.c.l.b16 %v71
  %v202 = vunpack.c.l.b16 %v72
  %v203 = vunpack.c.l.b16 %v73
  %v204 = vunpack.c.l.b16 %v74
  %v205 = vunpack.c.l.b16 %v75
  %v206 = vunpack.c.l.b16 %v76
  %v207 = vunpack.c.l.b16 %v77
  %v208 = vunpack.c.l.b16 %v78
  %v209 = vunpack.c.l.b16 %v79
  %v210 = vunpack.c.l.b16 %v80
  %v211 = vunpack.c.l.b16 %v81
  %v212 = vpack.c.b16 %v149, %v148
  %v213 = vpack.c.b16 %v151, %v150
  %v214 = vpack.c.b16 %v153, %v152
  %v215 = vpack.c.b16 %v155, %v154
  %v216 = vpack.c.b16 %v157, %v156
  %v217 = vpack.c.b16 %v159, %v158
  %v218 = vpack.c.b16 %v161, %v160
  %v219 = vpack.c.b16 %v163, %v162
  %v220 = vpack.c.b16 %v165, %v164
  %v221 = vpack.c.b16 %v167, %v166
  %v222 = vpack.c.b16 %v169, %v168
  %v223 = vpack.c.b16 %v171, %v170
  %v224 = vpack.c.b16 %v173, %v172
  %v225 = vpack.c.b16 %v175, %v174
  %v226 = vpack.c.b16 %v177, %v176
  %v227 = vpack.c.b16 %v179, %v178
  %v228 = vpack.c.b16 %v181, %v180
  %v229 = vpack.c.b16 %v183, %v182
  %v230 = vpack.c.b16 %v185, %v184
  %v231 = vpack.c.b16 %v187, %v186
  %v232 = vpack.c.b16 %v189, %v188
  %v233 = vpack.c.b16 %v191, %v190
  %v234 = vpack.c.b16 %v193, %v192
  %v235 = vpack.c.b16 %v195, %v194
  %v236 = vpack.c.b16 %v197, %v196
  %v237 = vpack.c.b16 %v199, %v198
  %v238 = vpack.c.b16 %v201, %v200
  %v239 = vpack.c.b16 %v203, %v202
  %v240 = vpack.c.b16 %v205, %v204
  %v241 = vpack.c.b16 %v207, %v206
  %v242 = vpack.c.b16 %v209, %v208
  %v243 = vpack.c.b16 %v211, %v210
  %v246 = vunpack.c.l.b16 %v82
  %v247 = vunpack.c.l.b16 %v83
  %v248 = vpack.c.b16 %v247, %v246
  %vm250 = vcmask 130048
  %v252 = vsel %vm250, %v212, 0
  %v255 = vsel %vm250, %v213, 0
  %v258 = vsel %vm250, %v214, 0
  %v261 = vsel %vm250, %v215, 0
  %v264 = vsel %vm250, %v216, 0
  %v267 = vsel %vm250, %v217, 0
  %v270 = vsel %vm250, %v218, 0
  %v273 = vsel %vm250, %v219, 0
  %v276 = vsel %vm250, %v220, 0
  %v279 = vsel %vm250, %v221, 0
  %v282 = vsel %vm250, %v222, 0
  %v285 = vsel %vm250, %v223, 0
  %v288 = vsel %vm250, %v224, 0
  %v291 = vsel %vm250, %v225, 0
  %v294 = vsel %vm250, %v226, 0
  %v297 = vsel %vm250, %v227, 0
  %v300 = vsel %vm250, %v228, 0
  %v303 = vsel %vm250, %v229, 0
  %v306 = vsel %vm250, %v230, 0
  %v309 = vsel %vm250, %v231, 0
  %v312 = vsel %vm250, %v232, 0
  %v315 = vsel %vm250, %v233, 0
  %v318 = vsel %vm250, %v234, 0
  %v321 = vsel %vm250, %v235, 0
  %v324 = vsel %vm250, %v236, 0
  %v327 = vsel %vm250, %v237, 0
  %v330 = vsel %vm250, %v238, 0
  %v333 = vsel %vm250, %v239, 0
  %v336 = vsel %vm250, %v240, 0
  %v339 = vsel %vm250, %v241, 0
  %v342 = vsel %vm250, %v242, 0
  %v345 = vsel %vm250, %v243, 0
  %347 = vmatpush.bf16.msra.mxu0 0
  %348 = vmatpush.bf16.msra.mxu0 0
  %349 = vmatpush.bf16.msra.mxu0 0
  %350 = vmatpush.bf16.msra.mxu0 0
  %351 = vmatpush.bf16.msra.mxu0 0
  %352 = vmatpush.bf16.msra.mxu0 0
  %353 = vmatpush.bf16.msra.mxu0 0
  %354 = vmatpush.bf16.msra.mxu0 %v248
  %355 = vmatmul.bf16.gmra.mxu0 %v252
  %v356 = vpop.f32.mrf.mxu0
  %v357 = vadd.f32 0.0, %v356
  %v358 = vpop.f32.mrf.mxu0
  %v359 = vadd.f32 0.0, %v358
  %360 = vmatmul.bf16.gmra.mxu0 %v255
  %v361 = vpop.f32.mrf.mxu0
  %v362 = vadd.f32 0.0, %v361
  %v363 = vpop.f32.mrf.mxu0
  %v364 = vadd.f32 0.0, %v363
  %365 = vmatmul.bf16.gmra.mxu0 %v258
  %v366 = vpop.f32.mrf.mxu0
  %v367 = vadd.f32 0.0, %v366
  %v368 = vpop.f32.mrf.mxu0
  %v369 = vadd.f32 0.0, %v368
  %370 = vmatmul.bf16.gmra.mxu0 %v261
  %v371 = vpop.f32.mrf.mxu0
  %v372 = vadd.f32 0.0, %v371
  %v373 = vpop.f32.mrf.mxu0
  %v374 = vadd.f32 0.0, %v373
  %375 = vmatmul.bf16.gmra.mxu0 %v264
  %v376 = vpop.f32.mrf.mxu0
  %v377 = vadd.f32 0.0, %v376
  %v378 = vpop.f32.mrf.mxu0
  %v379 = vadd.f32 0.0, %v378
  %380 = vmatmul.bf16.gmra.mxu0 %v267
  %v381 = vpop.f32.mrf.mxu0
  %v382 = vadd.f32 0.0, %v381
  %v383 = vpop.f32.mrf.mxu0
  %v384 = vadd.f32 0.0, %v383
  %385 = vmatmul.bf16.gmra.mxu0 %v270
  %v386 = vpop.f32.mrf.mxu0
  %v387 = vadd.f32 0.0, %v386
  %v388 = vpop.f32.mrf.mxu0
  %v389 = vadd.f32 0.0, %v388
  %390 = vmatmul.bf16.gmra.mxu0 %v273
  %v391 = vpop.f32.mrf.mxu0
  %v392 = vadd.f32 0.0, %v391
  %v393 = vpop.f32.mrf.mxu0
  %v394 = vadd.f32 0.0, %v393
  %395 = vmatmul.bf16.gmra.mxu0 %v276
  %v396 = vpop.f32.mrf.mxu0
  %v397 = vadd.f32 0.0, %v396
  %v398 = vpop.f32.mrf.mxu0
  %v399 = vadd.f32 0.0, %v398
  %400 = vmatmul.bf16.gmra.mxu0 %v279
  %v401 = vpop.f32.mrf.mxu0
  %v402 = vadd.f32 0.0, %v401
  %v403 = vpop.f32.mrf.mxu0
  %v404 = vadd.f32 0.0, %v403
  %405 = vmatmul.bf16.gmra.mxu0 %v282
  %v406 = vpop.f32.mrf.mxu0
  %v407 = vadd.f32 0.0, %v406
  %v408 = vpop.f32.mrf.mxu0
  %v409 = vadd.f32 0.0, %v408
  %410 = vmatmul.bf16.gmra.mxu0 %v285
  %v411 = vpop.f32.mrf.mxu0
  %v412 = vadd.f32 0.0, %v411
  %v413 = vpop.f32.mrf.mxu0
  %v414 = vadd.f32 0.0, %v413
  %415 = vmatmul.bf16.gmra.mxu0 %v288
  %v416 = vpop.f32.mrf.mxu0
  %v417 = vadd.f32 0.0, %v416
  %v418 = vpop.f32.mrf.mxu0
  %v419 = vadd.f32 0.0, %v418
  %420 = vmatmul.bf16.gmra.mxu0 %v291
  %v421 = vpop.f32.mrf.mxu0
  %v422 = vadd.f32 0.0, %v421
  %v423 = vpop.f32.mrf.mxu0
  %v424 = vadd.f32 0.0, %v423
  %425 = vmatmul.bf16.gmra.mxu0 %v294
  %v426 = vpop.f32.mrf.mxu0
  %v427 = vadd.f32 0.0, %v426
  %v428 = vpop.f32.mrf.mxu0
  %v429 = vadd.f32 0.0, %v428
  %430 = vmatmul.bf16.gmra.mxu0 %v297
  %v431 = vpop.f32.mrf.mxu0
  %v432 = vadd.f32 0.0, %v431
  %v433 = vpop.f32.mrf.mxu0
  %v434 = vadd.f32 0.0, %v433
  %435 = vmatmul.bf16.gmra.mxu0 %v300
  %v436 = vpop.f32.mrf.mxu0
  %v437 = vadd.f32 0.0, %v436
  %v438 = vpop.f32.mrf.mxu0
  %v439 = vadd.f32 0.0, %v438
  %440 = vmatmul.bf16.gmra.mxu0 %v303
  %v441 = vpop.f32.mrf.mxu0
  %v442 = vadd.f32 0.0, %v441
  %v443 = vpop.f32.mrf.mxu0
  %v444 = vadd.f32 0.0, %v443
  %445 = vmatmul.bf16.gmra.mxu0 %v306
  %v446 = vpop.f32.mrf.mxu0
  %v447 = vadd.f32 0.0, %v446
  %v448 = vpop.f32.mrf.mxu0
  %v449 = vadd.f32 0.0, %v448
  %450 = vmatmul.bf16.gmra.mxu0 %v309
  %v451 = vpop.f32.mrf.mxu0
  %v452 = vadd.f32 0.0, %v451
  %v453 = vpop.f32.mrf.mxu0
  %v454 = vadd.f32 0.0, %v453
  %455 = vmatmul.bf16.gmra.mxu0 %v312
  %v456 = vpop.f32.mrf.mxu0
  %v457 = vadd.f32 0.0, %v456
  %v458 = vpop.f32.mrf.mxu0
  %v459 = vadd.f32 0.0, %v458
  %460 = vmatmul.bf16.gmra.mxu0 %v315
  %v461 = vpop.f32.mrf.mxu0
  %v462 = vadd.f32 0.0, %v461
  %v463 = vpop.f32.mrf.mxu0
  %v464 = vadd.f32 0.0, %v463
  %465 = vmatmul.bf16.gmra.mxu0 %v318
  %v466 = vpop.f32.mrf.mxu0
  %v467 = vadd.f32 0.0, %v466
  %v468 = vpop.f32.mrf.mxu0
  %v469 = vadd.f32 0.0, %v468
  %470 = vmatmul.bf16.gmra.mxu0 %v321
  %v471 = vpop.f32.mrf.mxu0
  %v472 = vadd.f32 0.0, %v471
  %v473 = vpop.f32.mrf.mxu0
  %v474 = vadd.f32 0.0, %v473
  %475 = vmatmul.bf16.gmra.mxu0 %v324
  %v476 = vpop.f32.mrf.mxu0
  %v477 = vadd.f32 0.0, %v476
  %v478 = vpop.f32.mrf.mxu0
  %v479 = vadd.f32 0.0, %v478
  %480 = vmatmul.bf16.gmra.mxu0 %v327
  %v481 = vpop.f32.mrf.mxu0
  %v482 = vadd.f32 0.0, %v481
  %v483 = vpop.f32.mrf.mxu0
  %v484 = vadd.f32 0.0, %v483
  %485 = vmatmul.bf16.gmra.mxu0 %v330
  %v486 = vpop.f32.mrf.mxu0
  %v487 = vadd.f32 0.0, %v486
  %v488 = vpop.f32.mrf.mxu0
  %v489 = vadd.f32 0.0, %v488
  %490 = vmatmul.bf16.gmra.mxu0 %v333
  %v491 = vpop.f32.mrf.mxu0
  %v492 = vadd.f32 0.0, %v491
  %v493 = vpop.f32.mrf.mxu0
  %v494 = vadd.f32 0.0, %v493
  %495 = vmatmul.bf16.gmra.mxu0 %v336
  %v496 = vpop.f32.mrf.mxu0
  %v497 = vadd.f32 0.0, %v496
  %v498 = vpop.f32.mrf.mxu0
  %v499 = vadd.f32 0.0, %v498
  %500 = vmatmul.bf16.gmra.mxu0 %v339
  %v501 = vpop.f32.mrf.mxu0
  %v502 = vadd.f32 0.0, %v501
  %v503 = vpop.f32.mrf.mxu0
  %v504 = vadd.f32 0.0, %v503
  %505 = vmatmul.bf16.gmra.mxu0 %v342
  %v506 = vpop.f32.mrf.mxu0
  %v507 = vadd.f32 0.0, %v506
  %v508 = vpop.f32.mrf.mxu0
  %v509 = vadd.f32 0.0, %v508
  %510 = vmatmul.bf16.gmra.mxu0 %v345
  %v511 = vpop.f32.mrf.mxu0
  %v512 = vadd.f32 0.0, %v511
  %v513 = vpop.f32.mrf.mxu0
  %v514 = vadd.f32 0.0, %v513
  %515 = vdwg.mxu0
  %v516 = vld [vmem:[%s2] sm:$0x1]
  %v518 = vperm.slane %v516, 0
  %v520 = vmul.f32 %v357, %v518
  %v521 = vmul.f32 %v359, %v518
  %v522 = vmul.f32 %v362, %v518
  %v523 = vmul.f32 %v364, %v518
  %v524 = vmul.f32 %v367, %v518
  %v525 = vmul.f32 %v369, %v518
  %v526 = vmul.f32 %v372, %v518
  %v527 = vmul.f32 %v374, %v518
  %v528 = vmul.f32 %v377, %v518
  %v529 = vmul.f32 %v379, %v518
  %v530 = vmul.f32 %v382, %v518
  %v531 = vmul.f32 %v384, %v518
  %v532 = vmul.f32 %v387, %v518
  %v533 = vmul.f32 %v389, %v518
  %v534 = vmul.f32 %v392, %v518
  %v535 = vmul.f32 %v394, %v518
  %v536 = vmul.f32 %v397, %v518
  %v537 = vmul.f32 %v399, %v518
  %v538 = vmul.f32 %v402, %v518
  %v539 = vmul.f32 %v404, %v518
  %v540 = vmul.f32 %v407, %v518
  %v541 = vmul.f32 %v409, %v518
  %v542 = vmul.f32 %v412, %v518
  %v543 = vmul.f32 %v414, %v518
  %v544 = vmul.f32 %v417, %v518
  %v545 = vmul.f32 %v419, %v518
  %v546 = vmul.f32 %v422, %v518
  %v547 = vmul.f32 %v424, %v518
  %v548 = vmul.f32 %v427, %v518
  %v549 = vmul.f32 %v429, %v518
  %v550 = vmul.f32 %v432, %v518
  %v551 = vmul.f32 %v434, %v518
  %v552 = vmul.f32 %v437, %v518
  %v553 = vmul.f32 %v439, %v518
  %v554 = vmul.f32 %v442, %v518
  %v555 = vmul.f32 %v444, %v518
  %v556 = vmul.f32 %v447, %v518
  %v557 = vmul.f32 %v449, %v518
  %v558 = vmul.f32 %v452, %v518
  %v559 = vmul.f32 %v454, %v518
  %v560 = vmul.f32 %v457, %v518
  %v561 = vmul.f32 %v459, %v518
  %v562 = vmul.f32 %v462, %v518
  %v563 = vmul.f32 %v464, %v518
  %v564 = vmul.f32 %v467, %v518
  %v565 = vmul.f32 %v469, %v518
  %v566 = vmul.f32 %v472, %v518
  %v567 = vmul.f32 %v474, %v518
  %v568 = vmul.f32 %v477, %v518
  %v569 = vmul.f32 %v479, %v518
  %v570 = vmul.f32 %v482, %v518
  %v571 = vmul.f32 %v484, %v518
  %v572 = vmul.f32 %v487, %v518
  %v573 = vmul.f32 %v489, %v518
  %v574 = vmul.f32 %v492, %v518
  %v575 = vmul.f32 %v494, %v518
  %v576 = vmul.f32 %v497, %v518
  %v577 = vmul.f32 %v499, %v518
  %v578 = vmul.f32 %v502, %v518
  %v579 = vmul.f32 %v504, %v518
  %v580 = vmul.f32 %v507, %v518
  %v581 = vmul.f32 %v509, %v518
  %v582 = vmul.f32 %v512, %v518
  %v583 = vmul.f32 %v514, %v518
  %v584 = vld [vmem:[%s3] sm:$0x1]
  %v586 = vperm.slane %v584, 0
  %v588 = vadd.f32 %v520, %v586
  %v589 = vadd.f32 %v521, %v586
  %v590 = vadd.f32 %v522, %v586
  %v591 = vadd.f32 %v523, %v586
  %v592 = vadd.f32 %v524, %v586
  %v593 = vadd.f32 %v525, %v586
  %v594 = vadd.f32 %v526, %v586
  %v595 = vadd.f32 %v527, %v586
  %v596 = vadd.f32 %v528, %v586
  %v597 = vadd.f32 %v529, %v586
  %v598 = vadd.f32 %v530, %v586
  %v599 = vadd.f32 %v531, %v586
  %v600 = vadd.f32 %v532, %v586
  %v601 = vadd.f32 %v533, %v586
  %v602 = vadd.f32 %v534, %v586
  %v603 = vadd.f32 %v535, %v586
  %v604 = vadd.f32 %v536, %v586
  %v605 = vadd.f32 %v537, %v586
  %v606 = vadd.f32 %v538, %v586
  %v607 = vadd.f32 %v539, %v586
  %v608 = vadd.f32 %v540, %v586
  %v609 = vadd.f32 %v541, %v586
  %v610 = vadd.f32 %v542, %v586
  %v611 = vadd.f32 %v543, %v586
  %v612 = vadd.f32 %v544, %v586
  %v613 = vadd.f32 %v545, %v586
  %v614 = vadd.f32 %v546, %v586
  %v615 = vadd.f32 %v547, %v586
  %v616 = vadd.f32 %v548, %v586
  %v617 = vadd.f32 %v549, %v586
  %v618 = vadd.f32 %v550, %v586
  %v619 = vadd.f32 %v551, %v586
  %v620 = vadd.f32 %v552, %v586
  %v621 = vadd.f32 %v553, %v586
  %v622 = vadd.f32 %v554, %v586
  %v623 = vadd.f32 %v555, %v586
  %v624 = vadd.f32 %v556, %v586
  %v625 = vadd.f32 %v557, %v586
  %v626 = vadd.f32 %v558, %v586
  %v627 = vadd.f32 %v559, %v586
  %v628 = vadd.f32 %v560, %v586
  %v629 = vadd.f32 %v561, %v586
  %v630 = vadd.f32 %v562, %v586
  %v631 = vadd.f32 %v563, %v586
  %v632 = vadd.f32 %v564, %v586
  %v633 = vadd.f32 %v565, %v586
  %v634 = vadd.f32 %v566, %v586
  %v635 = vadd.f32 %v567, %v586
  %v636 = vadd.f32 %v568, %v586
  %v637 = vadd.f32 %v569, %v586
  %v638 = vadd.f32 %v570, %v586
  %v639 = vadd.f32 %v571, %v586
  %v640 = vadd.f32 %v572, %v586
  %v641 = vadd.f32 %v573, %v586
  %v642 = vadd.f32 %v574, %v586
  %v643 = vadd.f32 %v575, %v586
  %v644 = vadd.f32 %v576, %v586
  %v645 = vadd.f32 %v577, %v586
  %v646 = vadd.f32 %v578, %v586
  %v647 = vadd.f32 %v579, %v586
  %v648 = vadd.f32 %v580, %v586
  %v649 = vadd.f32 %v581, %v586
  %v650 = vadd.f32 %v582, %v586
  %v651 = vadd.f32 %v583, %v586
  %v652 = vmax.f32 %v588, 0.0
  %v653 = vmax.f32 %v589, 0.0
  %v654 = vmax.f32 %v590, 0.0
  %v655 = vmax.f32 %v591, 0.0
  %v656 = vmax.f32 %v592, 0.0
  %v657 = vmax.f32 %v593, 0.0
  %v658 = vmax.f32 %v594, 0.0
  %v659 = vmax.f32 %v595, 0.0
  %v660 = vmax.f32 %v596, 0.0
  %v661 = vmax.f32 %v597, 0.0
  %v662 = vmax.f32 %v598, 0.0
  %v663 = vmax.f32 %v599, 0.0
  %v664 = vmax.f32 %v600, 0.0
  %v665 = vmax.f32 %v601, 0.0
  %v666 = vmax.f32 %v602, 0.0
  %v667 = vmax.f32 %v603, 0.0
  %v668 = vmax.f32 %v604, 0.0
  %v669 = vmax.f32 %v605, 0.0
  %v670 = vmax.f32 %v606, 0.0
  %v671 = vmax.f32 %v607, 0.0
  %v672 = vmax.f32 %v608, 0.0
  %v673 = vmax.f32 %v609, 0.0
  %v674 = vmax.f32 %v610, 0.0
  %v675 = vmax.f32 %v611, 0.0
  %v676 = vmax.f32 %v612, 0.0
  %v677 = vmax.f32 %v613, 0.0
  %v678 = vmax.f32 %v614, 0.0
  %v679 = vmax.f32 %v615, 0.0
  %v680 = vmax.f32 %v616, 0.0
  %v681 = vmax.f32 %v617, 0.0
  %v682 = vmax.f32 %v618, 0.0
  %v683 = vmax.f32 %v619, 0.0
  %v684 = vmax.f32 %v620, 0.0
  %v685 = vmax.f32 %v621, 0.0
  %v686 = vmax.f32 %v622, 0.0
  %v687 = vmax.f32 %v623, 0.0
  %v688 = vmax.f32 %v624, 0.0
  %v689 = vmax.f32 %v625, 0.0
  %v690 = vmax.f32 %v626, 0.0
  %v691 = vmax.f32 %v627, 0.0
  %v692 = vmax.f32 %v628, 0.0
  %v693 = vmax.f32 %v629, 0.0
  %v694 = vmax.f32 %v630, 0.0
  %v695 = vmax.f32 %v631, 0.0
  %v696 = vmax.f32 %v632, 0.0
  %v697 = vmax.f32 %v633, 0.0
  %v698 = vmax.f32 %v634, 0.0
  %v699 = vmax.f32 %v635, 0.0
  %v700 = vmax.f32 %v636, 0.0
  %v701 = vmax.f32 %v637, 0.0
  %v702 = vmax.f32 %v638, 0.0
  %v703 = vmax.f32 %v639, 0.0
  %v704 = vmax.f32 %v640, 0.0
  %v705 = vmax.f32 %v641, 0.0
  %v706 = vmax.f32 %v642, 0.0
  %v707 = vmax.f32 %v643, 0.0
  %v708 = vmax.f32 %v644, 0.0
  %v709 = vmax.f32 %v645, 0.0
  %v710 = vmax.f32 %v646, 0.0
  %v711 = vmax.f32 %v647, 0.0
  %v712 = vmax.f32 %v648, 0.0
  %v713 = vmax.f32 %v649, 0.0
  %v714 = vmax.f32 %v650, 0.0
  %v715 = vmax.f32 %v651, 0.0
  %vm716 = vcmask 31744
  %717 = vst.msk [vmem:[%s4] sm:$0xff] %vm716, %v652
  %718 = vst.msk [vmem:[%s4 + $0x8] sm:$0xff] %vm716, %v653
  %719 = vst.msk [vmem:[%s4 + $0x10] sm:$0xff] %vm716, %v654
  %720 = vst.msk [vmem:[%s4 + $0x18] sm:$0xff] %vm716, %v655
  %721 = vst.msk [vmem:[%s4 + $0x20] sm:$0xff] %vm716, %v656
  %722 = vst.msk [vmem:[%s4 + $0x28] sm:$0xff] %vm716, %v657
  %723 = vst.msk [vmem:[%s4 + $0x30] sm:$0xff] %vm716, %v658
  %724 = vst.msk [vmem:[%s4 + $0x38] sm:$0xff] %vm716, %v659
  %725 = vst.msk [vmem:[%s4 + $0x40] sm:$0xff] %vm716, %v660
  %726 = vst.msk [vmem:[%s4 + $0x48] sm:$0xff] %vm716, %v661
  %727 = vst.msk [vmem:[%s4 + $0x50] sm:$0xff] %vm716, %v662
  %728 = vst.msk [vmem:[%s4 + $0x58] sm:$0xff] %vm716, %v663
  %729 = vst.msk [vmem:[%s4 + $0x60] sm:$0xff] %vm716, %v664
  %730 = vst.msk [vmem:[%s4 + $0x68] sm:$0xff] %vm716, %v665
  %731 = vst.msk [vmem:[%s4 + $0x70] sm:$0xff] %vm716, %v666
  %732 = vst.msk [vmem:[%s4 + $0x78] sm:$0xff] %vm716, %v667
  %733 = vst.msk [vmem:[%s4 + $0x80] sm:$0xff] %vm716, %v668
  %734 = vst.msk [vmem:[%s4 + $0x88] sm:$0xff] %vm716, %v669
  %735 = vst.msk [vmem:[%s4 + $0x90] sm:$0xff] %vm716, %v670
  %736 = vst.msk [vmem:[%s4 + $0x98] sm:$0xff] %vm716, %v671
  %737 = vst.msk [vmem:[%s4 + $0xa0] sm:$0xff] %vm716, %v672
  %738 = vst.msk [vmem:[%s4 + $0xa8] sm:$0xff] %vm716, %v673
  %739 = vst.msk [vmem:[%s4 + $0xb0] sm:$0xff] %vm716, %v674
  %740 = vst.msk [vmem:[%s4 + $0xb8] sm:$0xff] %vm716, %v675
  %741 = vst.msk [vmem:[%s4 + $0xc0] sm:$0xff] %vm716, %v676
  %742 = vst.msk [vmem:[%s4 + $0xc8] sm:$0xff] %vm716, %v677
  %743 = vst.msk [vmem:[%s4 + $0xd0] sm:$0xff] %vm716, %v678
  %744 = vst.msk [vmem:[%s4 + $0xd8] sm:$0xff] %vm716, %v679
  %745 = vst.msk [vmem:[%s4 + $0xe0] sm:$0xff] %vm716, %v680
  %746 = vst.msk [vmem:[%s4 + $0xe8] sm:$0xff] %vm716, %v681
  %747 = vst.msk [vmem:[%s4 + $0xf0] sm:$0xff] %vm716, %v682
  %748 = vst.msk [vmem:[%s4 + $0xf8] sm:$0xff] %vm716, %v683
  %749 = vst.msk [vmem:[%s4 + $0x100] sm:$0xff] %vm716, %v684
  %750 = vst.msk [vmem:[%s4 + $0x108] sm:$0xff] %vm716, %v685
  %751 = vst.msk [vmem:[%s4 + $0x110] sm:$0xff] %vm716, %v686
  %752 = vst.msk [vmem:[%s4 + $0x118] sm:$0xff] %vm716, %v687
  %753 = vst.msk [vmem:[%s4 + $0x120] sm:$0xff] %vm716, %v688
  %754 = vst.msk [vmem:[%s4 + $0x128] sm:$0xff] %vm716, %v689
  %755 = vst.msk [vmem:[%s4 + $0x130] sm:$0xff] %vm716, %v690
  %756 = vst.msk [vmem:[%s4 + $0x138] sm:$0xff] %vm716, %v691
  %757 = vst.msk [vmem:[%s4 + $0x140] sm:$0xff] %vm716, %v692
  %758 = vst.msk [vmem:[%s4 + $0x148] sm:$0xff] %vm716, %v693
  %759 = vst.msk [vmem:[%s4 + $0x150] sm:$0xff] %vm716, %v694
  %760 = vst.msk [vmem:[%s4 + $0x158] sm:$0xff] %vm716, %v695
  %761 = vst.msk [vmem:[%s4 + $0x160] sm:$0xff] %vm716, %v696
  %762 = vst.msk [vmem:[%s4 + $0x168] sm:$0xff] %vm716, %v697
  %763 = vst.msk [vmem:[%s4 + $0x170] sm:$0xff] %vm716, %v698
  %764 = vst.msk [vmem:[%s4 + $0x178] sm:$0xff] %vm716, %v699
  %765 = vst.msk [vmem:[%s4 + $0x180] sm:$0xff] %vm716, %v700
  %766 = vst.msk [vmem:[%s4 + $0x188] sm:$0xff] %vm716, %v701
  %767 = vst.msk [vmem:[%s4 + $0x190] sm:$0xff] %vm716, %v702
  %768 = vst.msk [vmem:[%s4 + $0x198] sm:$0xff] %vm716, %v703
  %769 = vst.msk [vmem:[%s4 + $0x1a0] sm:$0xff] %vm716, %v704
  %770 = vst.msk [vmem:[%s4 + $0x1a8] sm:$0xff] %vm716, %v705
  %771 = vst.msk [vmem:[%s4 + $0x1b0] sm:$0xff] %vm716, %v706
  %772 = vst.msk [vmem:[%s4 + $0x1b8] sm:$0xff] %vm716, %v707
  %773 = vst.msk [vmem:[%s4 + $0x1c0] sm:$0xff] %vm716, %v708
  %774 = vst.msk [vmem:[%s4 + $0x1c8] sm:$0xff] %vm716, %v709
  %775 = vst.msk [vmem:[%s4 + $0x1d0] sm:$0xff] %vm716, %v710
  %776 = vst.msk [vmem:[%s4 + $0x1d8] sm:$0xff] %vm716, %v711
  %777 = vst.msk [vmem:[%s4 + $0x1e0] sm:$0xff] %vm716, %v712
  %778 = vst.msk [vmem:[%s4 + $0x1e8] sm:$0xff] %vm716, %v713
  %779 = vst.msk [vmem:[%s4 + $0x1f0] sm:$0xff] %vm716, %v714
  %780 = vst.msk [vmem:[%s4 + $0x1f8] sm:$0xff] %vm716, %v715
  // Predicated region
  $region18: #{cnn_attention_forward.7} parent=0 // pred_check
    _
  $region19: #{cnn_attention_forward.7} parent=0 // pred_check_branch
    %782 = sbr.rel (0) target = $region21
  $region20: #{cnn_attention_forward.7} parent=0 // pred_region
    _
  $region21: #{cnn_attention_forward.7} parent=0 // pred_fallthru
    _
  // Predicated region
  $region22: #{cnn_attention_forward.7} parent=0 // pred_check
    _
  $region23: #{cnn_attention_forward.7} parent=0 // pred_check_branch
    %784 = sbr.rel (0) target = $region25
  $region24: #{cnn_attention_forward.7} parent=0 // pred_region
    _
  $region25: #{cnn_attention_forward.7} parent=0 // pred_fallthru
    _

// kernel: cnn_attention_forward.5
$region0: #{cnn_attention_forward.5}
  #allocation0 [shape = 'u32[]', space=smem, size = 0x4, offset = 0x4, fixed_abs, tag = 'smem constant byte address 0x4 - core index']
  #allocation1 [shape = 'u32[72,128]{1,0:T(1,128)}', space=vmem, size = 0x9000, scoped, tag = 'internal scratch']
  #allocation2 [shape = 'f32[2,1,256]{2,1,0:T(1,128)}', space=vmem, size = 0x800, scoped, tag = 'scratch operand']
  %s0 = inlined_call_operand.vmem [shape: f32[2], index: 0, kind: input, shape index: {}]
  %s1 = inlined_call_operand.vmem [shape: f32[256,1], index: 1, kind: input, shape index: {}]
  %s2 = inlined_call_operand.vmem [shape: f32[256,1], index: 2, kind: input, shape index: {}]
  %s3 = inlined_call_operand.vmem [shape: f32[1,256], index: 3, kind: input, shape index: {}]
  %s4 = inlined_call_operand.vmem [shape: f32[1,256], index: 4, kind: input, shape index: {}]
  %s5 = inlined_call_operand.vmem [shape: f32[256,2], index: 5, kind: input, shape index: {}]
  %s6 = inlined_call_operand.vmem [shape: bf16[2,256,48], index: 6, kind: input, shape index: {}]
  %s7 = inlined_call_operand.vmem [shape: bf16[2,256,16], index: 7, kind: output, shape index: {}]
  %s8 = sld [smem:[#allocation0]]
  $region69: #{cnn_attention_forward.5} parent=0
    _
  %s10 = ssub.s32 1, %s8
  %s11 = scalar_select 0, %s10, %s8
  $region1: #{cnn_attention_forward.5} parent=0
    #allocation3 [shape = 'u8[512]{0}', space=smem, size = 0x200, scoped, tag = 'input window, operand 0, single buffered']
    #allocation4 [shape = 's32[2]{0}', space=sflag, size = 0x8, scoped, tag = 'scoped memory for cnn_attention_forward.5']
    %12 = vsyncpa [#allocation4], 0
    loop: start=0, step=1, limit=6
    $region2: #{cnn_attention_forward.5} parent=1 // loop_pre_header
      _
    $region3: #{cnn_attention_forward.5} parent=1 // loop_header
      %s14 = sphi 0, %s18
      %p15 = scmp.ge.s32.totalorder %s14, 6
      %s21 = sphi 0, %s33
      %s22 = sphi 0, %s29
      %s23 = sphi 0, %s21
      %s24 = sphi 0, %s22
      %s25 = sphi 0, %s23
      %s26 = sphi 0, %s24
      %s34 = sphi 0, %s34
      %s36 = sphi 0, %s34
      %s37 = sphi 0, %s36
      %s51 = sphi 0, %s37
      %s57 = sphi 0, %s59
      %s60 = sphi 0, %s57
      %s61 = sphi 0, %s60
      %s77 = sphi 0, %s61
      %s83 = sphi 0, %s85
      %s86 = sphi 0, %s83
      %s87 = sphi 0, %s86
      %s103 = sphi 0, %s87
      %s107 = sphi 0, %s107
      %s109 = sphi 0, %s107
      %s110 = sphi 0, %s109
      %s124 = sphi 0, %s110
      %s128 = sphi 0, %s128
      %s130 = sphi 0, %s128
      %s131 = sphi 0, %s130
      %s145 = sphi 0, %s131
      %s151 = sphi 0, %s153
      %s154 = sphi 0, %s151
      %s155 = sphi 0, %s154
      %s171 = sphi 0, %s155
      %s177 = sphi 0, %s179
      %s180 = sphi 0, %s177
      %s181 = sphi 0, %s180
      %s197 = sphi 0, %s181
      %s205 = sphi 0, %s207
      %s208 = sphi 0, %s205
      %s209 = sphi 0, %s208
      %s225 = sphi 0, %s209
    $region4: #{cnn_attention_forward.5} parent=1 // loop_header_branch
      %17 = sbr.rel (%p15) target = $region8
    $region5: #{cnn_attention_forward.5} parent=1 // loop_body
      %s19 = ssub.s32 %s14, 1
      %s20 = ssub.s32 %s14, 2
      %s27 = sadd.s32 1, %s22
      %p28 = scmp.ge.s32.totalorder %s27, 2
      %s29 = scalar_select %p28, 0, %s27
      %s30 = sadd.s32 1, %s21
      %s31 = scalar_select %p28, %s30, %s21
      %p32 = scmp.ge.s32.totalorder %s31, 2
      %s33 = scalar_select %p32, 0, %s31
      %s35 = sadd.s32 %s34, 1
      %p38 = scmp.eq.s32.totalorder %s14, 3
      %p39 = scmp.ne.s32.totalorder %s34, %s36
      %p40 = scmp.eq.s32.totalorder %s14, 0
      %p41 = por %p39, %p40
      %p42 = scmp.ne.s32.totalorder %s34, %s36
      %p43 = scmp.eq.s32.totalorder %s19, 3
      %p44 = por %p42, %p43
      %p45 = scmp.ne.s32.totalorder %s36, %s37
      %p46 = scmp.eq.s32.totalorder %s19, 0
      %p47 = por %p45, %p46
      %p48 = scmp.ne.s32.totalorder %s36, %s37
      %p49 = scmp.eq.s32.totalorder %s20, 3
      %p50 = por %p48, %p49
      %p52 = scmp.ne.s32.totalorder %s37, %s51
      %p53 = scmp.eq.s32.totalorder %s20, 0
      %p54 = por %p52, %p53
      %s55 = ssub.s32 %s22, %s29
      %p56 = scmp.eq.s32.totalorder %s55, 0
      %s58 = sadd.s32 %s57, 1
      %s59 = scalar_select %p56, %s57, %s58
      %p62 = pneg %p56
      %p63 = scmp.eq.s32.totalorder %s14, 3
      %p64 = por %p62, %p63
      %p65 = scmp.ne.s32.totalorder %s57, %s60
      %p66 = scmp.eq.s32.totalorder %s14, 0
      %p67 = por %p65, %p66
      %p68 = scmp.ne.s32.totalorder %s57, %s60
      %p69 = scmp.eq.s32.totalorder %s19, 3
      %p70 = por %p68, %p69
      %p71 = scmp.ne.s32.totalorder %s60, %s61
      %p72 = scmp.eq.s32.totalorder %s19, 0
      %p73 = por %p71, %p72
      %p74 = scmp.ne.s32.totalorder %s60, %s61
      %p75 = scmp.eq.s32.totalorder %s20, 3
      %p76 = por %p74, %p75
      %p78 = scmp.ne.s32.totalorder %s61, %s77
      %p79 = scmp.eq.s32.totalorder %s20, 0
      %p80 = por %p78, %p79
      %s81 = ssub.s32 %s22, %s29
      %p82 = scmp.eq.s32.totalorder %s81, 0
      %s84 = sadd.s32 %s83, 1
      %s85 = scalar_select %p82, %s83, %s84
      %p88 = pneg %p82
      %p89 = scmp.eq.s32.totalorder %s14, 3
      %p90 = por %p88, %p89
      %p91 = scmp.ne.s32.totalorder %s83, %s86
      %p92 = scmp.eq.s32.totalorder %s14, 0
      %p93 = por %p91, %p92
      %p94 = scmp.ne.s32.totalorder %s83, %s86
      %p95 = scmp.eq.s32.totalorder %s19, 3
      %p96 = por %p94, %p95
      %p97 = scmp.ne.s32.totalorder %s86, %s87
      %p98 = scmp.eq.s32.totalorder %s19, 0
      %p99 = por %p97, %p98
      %p100 = scmp.ne.s32.totalorder %s86, %s87
      %p101 = scmp.eq.s32.totalorder %s20, 3
      %p102 = por %p100, %p101
      %p104 = scmp.ne.s32.totalorder %s87, %s103
      %p105 = scmp.eq.s32.totalorder %s20, 0
      %p106 = por %p104, %p105
      %s108 = sadd.s32 %s107, 1
      %p111 = scmp.eq.s32.totalorder %s14, 3
      %p112 = scmp.ne.s32.totalorder %s107, %s109
      %p113 = scmp.eq.s32.totalorder %s14, 0
      %p114 = por %p112, %p113
      %p115 = scmp.ne.s32.totalorder %s107, %s109
      %p116 = scmp.eq.s32.totalorder %s19, 3
      %p117 = por %p115, %p116
      %p118 = scmp.ne.s32.totalorder %s109, %s110
      %p119 = scmp.eq.s32.totalorder %s19, 0
      %p120 = por %p118, %p119
      %p121 = scmp.ne.s32.totalorder %s109, %s110
      %p122 = scmp.eq.s32.totalorder %s20, 3
      %p123 = por %p121, %p122
      %p125 = scmp.ne.s32.totalorder %s110, %s124
      %p126 = scmp.eq.s32.totalorder %s20, 0
      %p127 = por %p125, %p126
      %s129 = sadd.s32 %s128, 1
      %p132 = scmp.eq.s32.totalorder %s14, 3
      %p133 = scmp.ne.s32.totalorder %s128, %s130
      %p134 = scmp.eq.s32.totalorder %s14, 0
      %p135 = por %p133, %p134
      %p136 = scmp.ne.s32.totalorder %s128, %s130
      %p137 = scmp.eq.s32.totalorder %s19, 3
      %p138 = por %p136, %p137
      %p139 = scmp.ne.s32.totalorder %s130, %s131
      %p140 = scmp.eq.s32.totalorder %s19, 0
      %p141 = por %p139, %p140
      %p142 = scmp.ne.s32.totalorder %s130, %s131
      %p143 = scmp.eq.s32.totalorder %s20, 3
      %p144 = por %p142, %p143
      %p146 = scmp.ne.s32.totalorder %s131, %s145
      %p147 = scmp.eq.s32.totalorder %s20, 0
      %p148 = por %p146, %p147
      %s149 = ssub.s32 %s22, %s29
      %p150 = scmp.eq.s32.totalorder %s149, 0
      %s152 = sadd.s32 %s151, 1
      %s153 = scalar_select %p150, %s151, %s152
      %p156 = pneg %p150
      %p157 = scmp.eq.s32.totalorder %s14, 3
      %p158 = por %p156, %p157
      %p159 = scmp.ne.s32.totalorder %s151, %s154
      %p160 = scmp.eq.s32.totalorder %s14, 0
      %p161 = por %p159, %p160
      %p162 = scmp.ne.s32.totalorder %s151, %s154
      %p163 = scmp.eq.s32.totalorder %s19, 3
      %p164 = por %p162, %p163
      %p165 = scmp.ne.s32.totalorder %s154, %s155
      %p166 = scmp.eq.s32.totalorder %s19, 0
      %p167 = por %p165, %p166
      %p168 = scmp.ne.s32.totalorder %s154, %s155
      %p169 = scmp.eq.s32.totalorder %s20, 3
      %p170 = por %p168, %p169
      %p172 = scmp.ne.s32.totalorder %s155, %s171
      %p173 = scmp.eq.s32.totalorder %s20, 0
      %p174 = por %p172, %p173
      %s175 = ssub.s32 %s21, %s33
      %p176 = scmp.eq.s32.totalorder %s175, 0
      %s178 = sadd.s32 %s177, 1
      %s179 = scalar_select %p176, %s177, %s178
      %p182 = pneg %p176
      %p183 = scmp.eq.s32.totalorder %s14, 3
      %p184 = por %p182, %p183
      %p185 = scmp.ne.s32.totalorder %s177, %s180
      %p186 = scmp.eq.s32.totalorder %s14, 0
      %p187 = por %p185, %p186
      %p188 = scmp.ne.s32.totalorder %s177, %s180
      %p189 = scmp.eq.s32.totalorder %s19, 3
      %p190 = por %p188, %p189
      %p191 = scmp.ne.s32.totalorder %s180, %s181
      %p192 = scmp.eq.s32.totalorder %s19, 0
      %p193 = por %p191, %p192
      %p194 = scmp.ne.s32.totalorder %s180, %s181
      %p195 = scmp.eq.s32.totalorder %s20, 3
      %p196 = por %p194, %p195
      %p198 = scmp.ne.s32.totalorder %s181, %s197
      %p199 = scmp.eq.s32.totalorder %s20, 0
      %p200 = por %p198, %p199
      %s201 = ssub.s32 %s21, %s33
      %s202 = ssub.s32 %s22, %s29
      %s203 = sor.u32 %s201, %s202
      %p204 = scmp.eq.s32.totalorder %s203, 0
      %s206 = sadd.s32 %s205, 1
      %s207 = scalar_select %p204, %s205, %s206
      %p210 = pneg %p204
      %p211 = scmp.eq.s32.totalorder %s14, 3
      %p212 = por %p210, %p211
      %p213 = scmp.ne.s32.totalorder %s205, %s208
      %p214 = scmp.eq.s32.totalorder %s14, 0
      %p215 = por %p213, %p214
      %p216 = scmp.ne.s32.totalorder %s205, %s208
      %p217 = scmp.eq.s32.totalorder %s19, 3
      %p218 = por %p216, %p217
      %p219 = scmp.ne.s32.totalorder %s208, %s209
      %p220 = scmp.eq.s32.totalorder %s19, 0
      %p221 = por %p219, %p220
      %p222 = scmp.ne.s32.totalorder %s208, %s209
      %p223 = scmp.eq.s32.totalorder %s20, 3
      %p224 = por %p222, %p223
      %p226 = scmp.ne.s32.totalorder %s209, %s225
      %p227 = scmp.eq.s32.totalorder %s20, 0
      %p228 = por %p226, %p227
      %p229 = scmp.le.s32.totalorder 1, %s14
      %p230 = scmp.lt.s32.totalorder %s14, 5
      %p231 = pnand %p229, %p230
      %p232 = pneg %p231
      // Predicated region
      $region9: #{cnn_attention_forward.5} parent=5 // pred_check
        _
      $region10: #{cnn_attention_forward.5} parent=5 // pred_check_branch
        %234 = sbr.rel (%p231) target = $region12
      $region11: #{cnn_attention_forward.5} parent=5 // pred_region
        %s235 = ssub.s32 %s14, 1
        // Predicated region
        $region13: #{cnn_attention_forward.5} parent=11 // pred_check
          %p236 = pneg %p47
        $region14: #{cnn_attention_forward.5} parent=11 // pred_check_branch
          %238 = sbr.rel (%p236) target = $region16
        $region15: #{cnn_attention_forward.5} parent=11 // pred_region
          %240 = vsyncadd [#allocation4], 0
          %s242 = sshll.u32 %s0, 4
          %s243 = int_to_ptr.vmem [resolvable:$true] %s242
          %245 = dma.vmem_to_smem %s243, 16, [#allocation3], [#allocation4]
        $region16: #{cnn_attention_forward.5} parent=11 // pred_fallthru
          _
        // Predicated region
        $region17: #{cnn_attention_forward.5} parent=11 // pred_check
          %p246 = pneg %p120
        $region18: #{cnn_attention_forward.5} parent=11 // pred_check_branch
          %248 = sbr.rel (%p246) target = $region20
        $region19: #{cnn_attention_forward.5} parent=11 // pred_region
          _
        $region20: #{cnn_attention_forward.5} parent=11 // pred_fallthru
          _
        // Predicated region
        $region21: #{cnn_attention_forward.5} parent=11 // pred_check
          %p249 = pneg %p141
        $region22: #{cnn_attention_forward.5} parent=11 // pred_check_branch
          %251 = sbr.rel (%p249) target = $region24
        $region23: #{cnn_attention_forward.5} parent=11 // pred_region
          _
        $region24: #{cnn_attention_forward.5} parent=11 // pred_fallthru
          _
      $region12: #{cnn_attention_forward.5} parent=5 // pred_fallthru
        _
      %p252 = scmp.lt.s32.totalorder %s14, 4
      // Predicated region
      $region25: #{cnn_attention_forward.5} parent=5 // pred_check
        %p253 = pneg %p252
      $region26: #{cnn_attention_forward.5} parent=5 // pred_check_branch
        %255 = sbr.rel (%p253) target = $region28
      $region27: #{cnn_attention_forward.5} parent=5 // pred_region
        // Predicated region
        $region29: #{cnn_attention_forward.5} parent=27 // pred_check
          %p256 = pneg %p67
        $region30: #{cnn_attention_forward.5} parent=27 // pred_check_branch
          %258 = sbr.rel (%p256) target = $region32
        $region31: #{cnn_attention_forward.5} parent=27 // pred_region
          %s259 = smul.u32 16, %s22
          %p260 = scmp.lt.s32.totalorder %s259, 31
          %s261 = scalar_select %p260, %s259, 31
          %s262 = smul.addr %s261, 8
          %s263 = scalar_lea.vmem %s1, %s262
          %s264 = smul.u32 16, %s22
        $region32: #{cnn_attention_forward.5} parent=27 // pred_fallthru
          _
        // Predicated region
        $region33: #{cnn_attention_forward.5} parent=27 // pred_check
          %p265 = pneg %p93
        $region34: #{cnn_attention_forward.5} parent=27 // pred_check_branch
          %267 = sbr.rel (%p265) target = $region36
        $region35: #{cnn_attention_forward.5} parent=27 // pred_region
          %s268 = smul.u32 16, %s22
          %p269 = scmp.lt.s32.totalorder %s268, 31
          %s270 = scalar_select %p269, %s268, 31
          %s271 = smul.addr %s270, 8
          %s272 = scalar_lea.vmem %s2, %s271
          %s273 = smul.u32 16, %s22
        $region36: #{cnn_attention_forward.5} parent=27 // pred_fallthru
          _
        // Predicated region
        $region37: #{cnn_attention_forward.5} parent=27 // pred_check
          %p274 = pneg %p161
        $region38: #{cnn_attention_forward.5} parent=27 // pred_check_branch
          %276 = sbr.rel (%p274) target = $region40
        $region39: #{cnn_attention_forward.5} parent=27 // pred_region
          %s277 = smul.u32 16, %s22
          %p278 = scmp.lt.s32.totalorder %s277, 31
          %s279 = scalar_select %p278, %s277, 31
          %s280 = smul.addr %s279, 8
          %s281 = scalar_lea.vmem %s5, %s280
          %s282 = smul.u32 16, %s22
        $region40: #{cnn_attention_forward.5} parent=27 // pred_fallthru
          _
        // Predicated region
        $region41: #{cnn_attention_forward.5} parent=27 // pred_check
          %p283 = pneg %p187
        $region42: #{cnn_attention_forward.5} parent=27 // pred_check_branch
          %285 = sbr.rel (%p283) target = $region44
        $region43: #{cnn_attention_forward.5} parent=27 // pred_region
          %p286 = scmp.lt.s32.totalorder %s21, 1
          %s287 = scalar_select %p286, %s21, 1
          %s288 = smul.addr %s287, 32
          %s289 = smul.addr %s288, 4
          %s290 = scalar_lea.vmem %s6, %s289
        $region44: #{cnn_attention_forward.5} parent=27 // pred_fallthru
          _
      $region28: #{cnn_attention_forward.5} parent=5 // pred_fallthru
        _
      %p291 = scmp.le.s32.totalorder 1, %s14
      %p292 = scmp.lt.s32.totalorder %s14, 5
      %p293 = pnand %p291, %p292
      %p294 = pneg %p293
      // Predicated region
      $region45: #{cnn_attention_forward.5} parent=5 // pred_check
        _
      $region46: #{cnn_attention_forward.5} parent=5 // pred_check_branch
        %296 = sbr.rel (%p293) target = $region48
      $region47: #{cnn_attention_forward.5} parent=5 // pred_region
        %s297 = ssub.s32 %s14, 1
        // Predicated region
        $region49: #{cnn_attention_forward.5} parent=47 // pred_check
          %p298 = pneg %p47
        $region50: #{cnn_attention_forward.5} parent=47 // pred_check_branch
          %300 = sbr.rel (%p298) target = $region52
        $region51: #{cnn_attention_forward.5} parent=47 // pred_region
          %302 = dma.done [#allocation4], 16
        $region52: #{cnn_attention_forward.5} parent=47 // pred_fallthru
          _
        %303 = sfence
        %p304 = pneg %p47
        %p305 = pneg %p44
        %s306 = smul.u32 16, %s24
        %p307 = scmp.lt.s32.totalorder %s306, 31
        %s308 = scalar_select %p307, %s306, 31
        %s309 = smul.addr %s308, 8
        %s310 = scalar_lea.vmem %s1, %s309
        %p311 = pneg %p73
        %p312 = pneg %p70
        %s313 = smul.u32 16, %s24
        %p314 = scmp.lt.s32.totalorder %s313, 31
        %s315 = scalar_select %p314, %s313, 31
        %s316 = smul.addr %s315, 8
        %s317 = scalar_lea.vmem %s2, %s316
        %p318 = pneg %p99
        %p319 = pneg %p96
        %p320 = pneg %p120
        %p321 = pneg %p117
        %p322 = pneg %p141
        %p323 = pneg %p138
        %s324 = smul.u32 16, %s24
        %p325 = scmp.lt.s32.totalorder %s324, 31
        %s326 = scalar_select %p325, %s324, 31
        %s327 = smul.addr %s326, 8
        %s328 = scalar_lea.vmem %s5, %s327
        %p329 = pneg %p167
        %p330 = pneg %p164
        %p331 = scmp.lt.s32.totalorder %s23, 1
        %s332 = scalar_select %p331, %s23, 1
        %s333 = smul.addr %s332, 32
        %s334 = smul.addr %s333, 4
        %s335 = scalar_lea.vmem %s6, %s334
        %p336 = pneg %p193
        %p337 = pneg %p190
        %p338 = pneg %p221
        %p339 = pneg %p218
        %s340 = smul.u32 16, %s24
        %p341 = scmp.lt.s32.totalorder %s23, 1
        %s342 = scalar_select %p341, %s23, 1
        %p343 = scmp.lt.s32.totalorder %s340, 31
        %s344 = scalar_select %p343, %s340, 31
        %s345 = smul.addr %s342, 32
        %s346 = sadd.s32 %s344, %s345
        %s347 = smul.addr %s346, 4
        %s348 = scalar_lea.vmem %s7, %s347
        %s349 = smul.u32 16, %s24
        %p350 = scmp.lt.s32.totalorder %s349, 31
        %s351 = scalar_select %p350, %s349, 31
        %s352 = smul.addr %s351, 8
        %s353 = scalar_lea.vmem %s1, %s352
        %s354 = smul.u32 16, %s24
        %s355 = smul.u32 16, %s24
        %p356 = scmp.lt.s32.totalorder %s355, 31
        %s357 = scalar_select %p356, %s355, 31
        %s358 = smul.addr %s357, 8
        %s359 = scalar_lea.vmem %s2, %s358
        %s360 = smul.u32 16, %s24
        %s361 = smul.u32 16, %s24
        %p362 = scmp.lt.s32.totalorder %s361, 31
        %s363 = scalar_select %p362, %s361, 31
        %s364 = smul.addr %s363, 8
        %s365 = scalar_lea.vmem %s5, %s364
        %s366 = smul.u32 16, %s24
        %p367 = scmp.lt.s32.totalorder %s23, 1
        %s368 = scalar_select %p367, %s23, 1
        %s369 = smul.addr %s368, 32
        %s370 = smul.addr %s369, 4
        %s371 = scalar_lea.vmem %s6, %s370
        %s372 = smul.u32 16, %s24
        %p373 = scmp.lt.s32.totalorder %s23, 1
        %s374 = scalar_select %p373, %s23, 1
        %p375 = scmp.lt.s32.totalorder %s372, 31
        %s376 = scalar_select %p375, %s372, 31
        %s377 = smul.addr %s374, 32
        %s378 = sadd.s32 %s376, %s377
        %s379 = smul.addr %s378, 4
        %s380 = scalar_lea.vmem %s7, %s379
        %s381 = smul.u32 16, %s24
        %p382 = scmp.eq.s32.totalorder %s24, 0
        // Predicated region
        $region53: #{cnn_attention_forward.5} parent=47 // pred_check
          %p383 = pneg %p382
        $region54: #{cnn_attention_forward.5} parent=47 // pred_check_branch
          %385 = sbr.rel (%p383) target = $region56
        $region55: #{cnn_attention_forward.5} parent=47 // pred_region
          %v386 = vld [vmem:[%s371] sm:$0xf]
          %v387 = vld [vmem:[%s371 + $0x4] sm:$0xf]
          %v388 = vld [vmem:[%s371 + $0x8] sm:$0xf]
          %v389 = vld [vmem:[%s371 + $0xc] sm:$0xf]
          %v390 = vld [vmem:[%s371 + $0x10] sm:$0xf]
          %v391 = vld [vmem:[%s371 + $0x14] sm:$0xf]
          %v392 = vld [vmem:[%s371 + $0x18] sm:$0xf]
          %v393 = vld [vmem:[%s371 + $0x1c] sm:$0xf]
          %v394 = vld [vmem:[%s371 + $0x20] sm:$0xf]
          %v395 = vld [vmem:[%s371 + $0x24] sm:$0xf]
          %v396 = vld [vmem:[%s371 + $0x28] sm:$0xf]
          %v397 = vld [vmem:[%s371 + $0x2c] sm:$0xf]
          %v398 = vld [vmem:[%s371 + $0x30] sm:$0xf]
          %v399 = vld [vmem:[%s371 + $0x34] sm:$0xf]
          %v400 = vld [vmem:[%s371 + $0x38] sm:$0xf]
          %v401 = vld [vmem:[%s371 + $0x3c] sm:$0xf]
          %v402 = vld [vmem:[%s371 + $0x40] sm:$0xf]
          %v403 = vld [vmem:[%s371 + $0x44] sm:$0xf]
          %v404 = vld [vmem:[%s371 + $0x48] sm:$0xf]
          %v405 = vld [vmem:[%s371 + $0x4c] sm:$0xf]
          %v406 = vld [vmem:[%s371 + $0x50] sm:$0xf]
          %v407 = vld [vmem:[%s371 + $0x54] sm:$0xf]
          %v408 = vld [vmem:[%s371 + $0x58] sm:$0xf]
          %v409 = vld [vmem:[%s371 + $0x5c] sm:$0xf]
          %v410 = vld [vmem:[%s371 + $0x60] sm:$0xf]
          %v411 = vld [vmem:[%s371 + $0x64] sm:$0xf]
          %v412 = vld [vmem:[%s371 + $0x68] sm:$0xf]
          %v413 = vld [vmem:[%s371 + $0x6c] sm:$0xf]
          %v414 = vld [vmem:[%s371 + $0x70] sm:$0xf]
          %v415 = vld [vmem:[%s371 + $0x74] sm:$0xf]
          %v416 = vld [vmem:[%s371 + $0x78] sm:$0xf]
          %v417 = vld [vmem:[%s371 + $0x7c] sm:$0xf]
          %v418 = vunpack.c.l.bf16 %v386
          %v419 = vunpack.c.l.bf16 %v387
          %v420 = vunpack.c.l.bf16 %v388
          %v421 = vunpack.c.l.bf16 %v389
          %v422 = vunpack.c.l.bf16 %v390
          %v423 = vunpack.c.l.bf16 %v391
          %v424 = vunpack.c.l.bf16 %v392
          %v425 = vunpack.c.l.bf16 %v393
          %v426 = vunpack.c.l.bf16 %v394
          %v427 = vunpack.c.l.bf16 %v395
          %v428 = vunpack.c.l.bf16 %v396
          %v429 = vunpack.c.l.bf16 %v397
          %v430 = vunpack.c.l.bf16 %v398
          %v431 = vunpack.c.l.bf16 %v399
          %v432 = vunpack.c.l.bf16 %v400
          %v433 = vunpack.c.l.bf16 %v401
          %v434 = vunpack.c.l.bf16 %v402
          %v435 = vunpack.c.l.bf16 %v403
          %v436 = vunpack.c.l.bf16 %v404
          %v437 = vunpack.c.l.bf16 %v405
          %v438 = vunpack.c.l.bf16 %v406
          %v439 = vunpack.c.l.bf16 %v407
          %v440 = vunpack.c.l.bf16 %v408
          %v441 = vunpack.c.l.bf16 %v409
          %v442 = vunpack.c.l.bf16 %v410
          %v443 = vunpack.c.l.bf16 %v411
          %v444 = vunpack.c.l.bf16 %v412
          %v445 = vunpack.c.l.bf16 %v413
          %v446 = vunpack.c.l.bf16 %v414
          %v447 = vunpack.c.l.bf16 %v415
          %v448 = vunpack.c.l.bf16 %v416
          %v449 = vunpack.c.l.bf16 %v417
          %v450 = vmul.f32 %v418, %v418
          %v451 = vmul.f32 %v419, %v419
          %v452 = vmul.f32 %v420, %v420
          %v453 = vmul.f32 %v421, %v421
          %v454 = vmul.f32 %v422, %v422
          %v455 = vmul.f32 %v423, %v423
          %v456 = vmul.f32 %v424, %v424
          %v457 = vmul.f32 %v425, %v425
          %v458 = vmul.f32 %v426, %v426
          %v459 = vmul.f32 %v427, %v427
          %v460 = vmul.f32 %v428, %v428
          %v461 = vmul.f32 %v429, %v429
          %v462 = vmul.f32 %v430, %v430
          %v463 = vmul.f32 %v431, %v431
          %v464 = vmul.f32 %v432, %v432
          %v465 = vmul.f32 %v433, %v433
          %v466 = vmul.f32 %v434, %v434
          %v467 = vmul.f32 %v435, %v435
          %v468 = vmul.f32 %v436, %v436
          %v469 = vmul.f32 %v437, %v437
          %v470 = vmul.f32 %v438, %v438
          %v471 = vmul.f32 %v439, %v439
          %v472 = vmul.f32 %v440, %v440
          %v473 = vmul.f32 %v441, %v441
          %v474 = vmul.f32 %v442, %v442
          %v475 = vmul.f32 %v443, %v443
          %v476 = vmul.f32 %v444, %v444
          %v477 = vmul.f32 %v445, %v445
          %v478 = vmul.f32 %v446, %v446
          %v479 = vmul.f32 %v447, %v447
          %v480 = vmul.f32 %v448, %v448
          %v481 = vmul.f32 %v449, %v449
          %514 = vrot.lane.b32.xlu0 %v450, 112
          %v515 = vpop.permute.xlu0 %514
          %516 = vrot.lane.b32.xlu0 %v451, 112
          %v517 = vpop.permute.xlu0 %516
          %518 = vrot.lane.b32.xlu0 %v452, 112
          %v519 = vpop.permute.xlu0 %518
          %520 = vrot.lane.b32.xlu0 %v453, 112
          %v521 = vpop.permute.xlu0 %520
          %522 = vrot.lane.b32.xlu0 %v454, 112
          %v523 = vpop.permute.xlu0 %522
          %524 = vrot.lane.b32.xlu0 %v455, 112
          %v525 = vpop.permute.xlu0 %524
          %526 = vrot.lane.b32.xlu0 %v456, 112
          %v527 = vpop.permute.xlu0 %526
          %528 = vrot.lane.b32.xlu0 %v457, 112
          %v529 = vpop.permute.xlu0 %528
          %530 = vrot.lane.b32.xlu0 %v458, 112
          %v531 = vpop.permute.xlu0 %530
          %532 = vrot.lane.b32.xlu0 %v459, 112
          %v533 = vpop.permute.xlu0 %532
          %534 = vrot.lane.b32.xlu0 %v460, 112
          %v535 = vpop.permute.xlu0 %534
          %536 = vrot.lane.b32.xlu0 %v461, 112
          %v537 = vpop.permute.xlu0 %536
          %538 = vrot.lane.b32.xlu0 %v462, 112
          %v539 = vpop.permute.xlu0 %538
          %540 = vrot.lane.b32.xlu0 %v463, 112
          %v541 = vpop.permute.xlu0 %540
          %542 = vrot.lane.b32.xlu0 %v464, 112
          %v543 = vpop.permute.xlu0 %542
          %544 = vrot.lane.b32.xlu0 %v465, 112
          %v545 = vpop.permute.xlu0 %544
          %546 = vrot.lane.b32.xlu0 %v466, 112
          %v547 = vpop.permute.xlu0 %546
          %548 = vrot.lane.b32.xlu0 %v467, 112
          %v549 = vpop.permute.xlu0 %548
          %550 = vrot.lane.b32.xlu0 %v468, 112
          %v551 = vpop.permute.xlu0 %550
          %552 = vrot.lane.b32.xlu0 %v469, 112
          %v553 = vpop.permute.xlu0 %552
          %554 = vrot.lane.b32.xlu0 %v470, 112
          %v555 = vpop.permute.xlu0 %554
          %556 = vrot.lane.b32.xlu0 %v471, 112
          %v557 = vpop.permute.xlu0 %556
          %558 = vrot.lane.b32.xlu0 %v472, 112
          %v559 = vpop.permute.xlu0 %558
          %560 = vrot.lane.b32.xlu0 %v473, 112
          %v561 = vpop.permute.xlu0 %560
          %562 = vrot.lane.b32.xlu0 %v474, 112
          %v563 = vpop.permute.xlu0 %562
          %564 = vrot.lane.b32.xlu0 %v475, 112
          %v565 = vpop.permute.xlu0 %564
          %566 = vrot.lane.b32.xlu0 %v476, 112
          %v567 = vpop.permute.xlu0 %566
          %568 = vrot.lane.b32.xlu0 %v477, 112
          %v569 = vpop.permute.xlu0 %568
          %570 = vrot.lane.b32.xlu0 %v478, 112
          %v571 = vpop.permute.xlu0 %570
          %572 = vrot.lane.b32.xlu0 %v479, 112
          %v573 = vpop.permute.xlu0 %572
          %574 = vrot.lane.b32.xlu0 %v480, 112
          %v575 = vpop.permute.xlu0 %574
          %576 = vrot.lane.b32.xlu0 %v481, 112
          %v577 = vpop.permute.xlu0 %576
          %vm578 = vcmask 64512
          %v580 = vsel %vm578, 1.0, 0
          %v582 = vsel %vm578, %v515, 0
          %v584 = vsel %vm578, %v517, 0
          %v586 = vsel %vm578, %v519, 0
          %v588 = vsel %vm578, %v521, 0
          %v590 = vsel %vm578, %v523, 0
          %v592 = vsel %vm578, %v525, 0
          %v594 = vsel %vm578, %v527, 0
          %v596 = vsel %vm578, %v529, 0
          %v598 = vsel %vm578, %v531, 0
          %v600 = vsel %vm578, %v533, 0
          %v602 = vsel %vm578, %v535, 0
          %v604 = vsel %vm578, %v537, 0
          %v606 = vsel %vm578, %v539, 0
          %v608 = vsel %vm578, %v541, 0
          %v610 = vsel %vm578, %v543, 0
          %v612 = vsel %vm578, %v545, 0
          %v614 = vsel %vm578, %v547, 0
          %v616 = vsel %vm578, %v549, 0
          %v618 = vsel %vm578, %v551, 0
          %v620 = vsel %vm578, %v553, 0
          %v622 = vsel %vm578, %v555, 0
          %v624 = vsel %vm578, %v557, 0
          %v626 = vsel %vm578, %v559, 0
          %v628 = vsel %vm578, %v561, 0
          %v630 = vsel %vm578, %v563, 0
          %v632 = vsel %vm578, %v565, 0
          %v634 = vsel %vm578, %v567, 0
          %v636 = vsel %vm578, %v569, 0
          %v638 = vsel %vm578, %v571, 0
          %v640 = vsel %vm578, %v573, 0
          %v642 = vsel %vm578, %v575, 0
          %v644 = vsel %vm578, %v577, 0
          %646 = vmatpush.xpose.msra.mxu0 %v612
          %647 = vmatpush.xpose.msra.mxu0 %v610
          %648 = vmatpush.xpose.msra.mxu0 %v608
          %649 = vmatpush.xpose.msra.mxu0 %v606
          %650 = vmatpush.xpose.msra.mxu0 %v604
          %651 = vmatpush.xpose.msra.mxu0 %v602
          %652 = vmatpush.xpose.msra.mxu0 %v600
          %653 = vmatpush.xpose.msra.mxu0 %v598
          %654 = vmatpush.xpose.msra.mxu0 %v596
          %655 = vmatpush.xpose.msra.mxu0 %v594
          %656 = vmatpush.xpose.msra.mxu0 %v592
          %657 = vmatpush.xpose.msra.mxu0 %v590
          %658 = vmatpush.xpose.msra.mxu0 %v588
          %659 = vmatpush.xpose.msra.mxu0 %v586
          %660 = vmatpush.xpose.msra.mxu0 %v584
          %661 = vmatpush.xpose.msra.mxu0 %v582
          %662 = vmatmul.f32.gmra.mxu0 %v580
          %v663 = vpop.f32.mrf.mxu0
          %v664 = vadd.f32 0.0001, %v663
          %665 = vdwg.mxu0
          %666 = vmatpush.xpose.msra.mxu0 %v644
          %667 = vmatpush.xpose.msra.mxu0 %v642
          %668 = vmatpush.xpose.msra.mxu0 %v640
          %669 = vmatpush.xpose.msra.mxu0 %v638
          %670 = vmatpush.xpose.msra.mxu0 %v636
          %671 = vmatpush.xpose.msra.mxu0 %v634
          %672 = vmatpush.xpose.msra.mxu0 %v632
          %673 = vmatpush.xpose.msra.mxu0 %v630
          %674 = vmatpush.xpose.msra.mxu0 %v628
          %675 = vmatpush.xpose.msra.mxu0 %v626
          %676 = vmatpush.xpose.msra.mxu0 %v624
          %677 = vmatpush.xpose.msra.mxu0 %v622
          %678 = vmatpush.xpose.msra.mxu0 %v620
          %679 = vmatpush.xpose.msra.mxu0 %v618
          %680 = vmatpush.xpose.msra.mxu0 %v616
          %681 = vmatpush.xpose.msra.mxu0 %v614
          %682 = vmatmul.f32.gmra.mxu0 %v580
          %v683 = vpop.f32.mrf.mxu0
          %v684 = vadd.f32 0.0001, %v683
          %685 = vdwg.mxu0
          %v686 = vrsqrt.pop %v664
          %v687 = vmul.f32 %v686, %v664
          %v688 = vmul.f32 %v687, %v686
          %v689 = vmul.f32 0.5, %v688
          %v690 = vsub.f32 1.5, %v689
          %v691 = vmul.f32 %v686, %v690
          %vm692 = vweird.f32 %v664
          %vm693 = vweird.f32 %v686
          %vm694 = vmor %vm692, %vm693
          %v695 = vsel %vm694, %v686, %v691
          %v696 = vrsqrt.pop %v684
          %v697 = vmul.f32 %v696, %v684
          %v698 = vmul.f32 %v697, %v696
          %v699 = vmul.f32 0.5, %v698
          %v700 = vsub.f32 1.5, %v699
          %v701 = vmul.f32 %v696, %v700
          %vm702 = vweird.f32 %v684
          %vm703 = vweird.f32 %v696
          %vm704 = vmor %vm702, %vm703
          %v705 = vsel %vm704, %v696, %v701
          %v708 = vrot.slane %v705, 7
          %vm709 = vcmask 1040384
          %v710 = vsel %vm709, %v695, %v708
          %v712 = vlaneseq
          %vm713 = vcmp.ge.s32.totalorder %v712, 0
          %vm714 = vcmp.lt.s32.totalorder %v712, 256
          %vm715 = vmand %vm713, %vm714
          %716 = vst.msk [vmem:[#allocation2] sm:$0x3] %vm715, %v710
          %v717 = vld [vmem:[%s371] sm:$0xf]
          %v718 = vld [vmem:[%s371 + $0x4] sm:$0xf]
          %v719 = vld [vmem:[%s371 + $0x8] sm:$0xf]
          %v720 = vld [vmem:[%s371 + $0xc] sm:$0xf]
          %v721 = vld [vmem:[%s371 + $0x10] sm:$0xf]
          %v722 = vld [vmem:[%s371 + $0x14] sm:$0xf]
          %v723 = vld [vmem:[%s371 + $0x18] sm:$0xf]
          %v724 = vld [vmem:[%s371 + $0x1c] sm:$0xf]
          %v725 = vld [vmem:[%s371 + $0x20] sm:$0xf]
          %v726 = vld [vmem:[%s371 + $0x24] sm:$0xf]
          %v727 = vld [vmem:[%s371 + $0x28] sm:$0xf]
          %v728 = vld [vmem:[%s371 + $0x2c] sm:$0xf]
          %v729 = vld [vmem:[%s371 + $0x30] sm:$0xf]
          %v730 = vld [vmem:[%s371 + $0x34] sm:$0xf]
          %v731 = vld [vmem:[%s371 + $0x38] sm:$0xf]
          %v732 = vld [vmem:[%s371 + $0x3c] sm:$0xf]
          %v733 = vld [vmem:[%s371 + $0x40] sm:$0xf]
          %v734 = vld [vmem:[%s371 + $0x44] sm:$0xf]
          %v735 = vld [vmem:[%s371 + $0x48] sm:$0xf]
          %v736 = vld [vmem:[%s371 + $0x4c] sm:$0xf]
          %v737 = vld [vmem:[%s371 + $0x50] sm:$0xf]
          %v738 = vld [vmem:[%s371 + $0x54] sm:$0xf]
          %v739 = vld [vmem:[%s371 + $0x58] sm:$0xf]
          %v740 = vld [vmem:[%s371 + $0x5c] sm:$0xf]
          %v741 = vld [vmem:[%s371 + $0x60] sm:$0xf]
          %v742 = vld [vmem:[%s371 + $0x64] sm:$0xf]
          %v743 = vld [vmem:[%s371 + $0x68] sm:$0xf]
          %v744 = vld [vmem:[%s371 + $0x6c] sm:$0xf]
          %v745 = vld [vmem:[%s371 + $0x70] sm:$0xf]
          %v746 = vld [vmem:[%s371 + $0x74] sm:$0xf]
          %v747 = vld [vmem:[%s371 + $0x78] sm:$0xf]
          %v748 = vld [vmem:[%s371 + $0x7c] sm:$0xf]
          %v749 = vunpack.c.l.bf16 %v717
          %v750 = vunpack.c.l.bf16 %v718
          %v751 = vunpack.c.l.bf16 %v719
          %v752 = vunpack.c.l.bf16 %v720
          %v753 = vunpack.c.l.bf16 %v721
          %v754 = vunpack.c.l.bf16 %v722
          %v755 = vunpack.c.l.bf16 %v723
          %v756 = vunpack.c.l.bf16 %v724
          %v757 = vunpack.c.l.bf16 %v725
          %v758 = vunpack.c.l.bf16 %v726
          %v759 = vunpack.c.l.bf16 %v727
          %v760 = vunpack.c.l.bf16 %v728
          %v761 = vunpack.c.l.bf16 %v729
          %v762 = vunpack.c.l.bf16 %v730
          %v763 = vunpack.c.l.bf16 %v731
          %v764 = vunpack.c.l.bf16 %v732
          %v765 = vunpack.c.l.bf16 %v733
          %v766 = vunpack.c.l.bf16 %v734
          %v767 = vunpack.c.l.bf16 %v735
          %v768 = vunpack.c.l.bf16 %v736
          %v769 = vunpack.c.l.bf16 %v737
          %v770 = vunpack.c.l.bf16 %v738
          %v771 = vunpack.c.l.bf16 %v739
          %v772 = vunpack.c.l.bf16 %v740
          %v773 = vunpack.c.l.bf16 %v741
          %v774 = vunpack.c.l.bf16 %v742
          %v775 = vunpack.c.l.bf16 %v743
          %v776 = vunpack.c.l.bf16 %v744
          %v777 = vunpack.c.l.bf16 %v745
          %v778 = vunpack.c.l.bf16 %v746
          %v779 = vunpack.c.l.bf16 %v747
          %v780 = vunpack.c.l.bf16 %v748
          %v781 = vmul.f32 %v749, %v749
          %v782 = vmul.f32 %v750, %v750
          %v783 = vmul.f32 %v751, %v751
          %v784 = vmul.f32 %v752, %v752
          %v785 = vmul.f32 %v753, %v753
          %v786 = vmul.f32 %v754, %v754
          %v787 = vmul.f32 %v755, %v755
          %v788 = vmul.f32 %v756, %v756
          %v789 = vmul.f32 %v757, %v757
          %v790 = vmul.f32 %v758, %v758
          %v791 = vmul.f32 %v759, %v759
          %v792 = vmul.f32 %v760, %v760
          %v793 = vmul.f32 %v761, %v761
          %v794 = vmul.f32 %v762, %v762
          %v795 = vmul.f32 %v763, %v763
          %v796 = vmul.f32 %v764, %v764
          %v797 = vmul.f32 %v765, %v765
          %v798 = vmul.f32 %v766, %v766
          %v799 = vmul.f32 %v767, %v767
          %v800 = vmul.f32 %v768, %v768
          %v801 = vmul.f32 %v769, %v769
          %v802 = vmul.f32 %v770, %v770
          %v803 = vmul.f32 %v771, %v771
          %v804 = vmul.f32 %v772, %v772
          %v805 = vmul.f32 %v773, %v773
          %v806 = vmul.f32 %v774, %v774
          %v807 = vmul.f32 %v775, %v775
          %v808 = vmul.f32 %v776, %v776
          %v809 = vmul.f32 %v777, %v777
          %v810 = vmul.f32 %v778, %v778
          %v811 = vmul.f32 %v779, %v779
          %v812 = vmul.f32 %v780, %v780
          %845 = vrot.lane.b32.xlu0 %v781, 104
          %v846 = vpop.permute.xlu0 %845
          %847 = vrot.lane.b32.xlu0 %v782, 104
          %v848 = vpop.permute.xlu0 %847
          %849 = vrot.lane.b32.xlu0 %v783, 104
          %v850 = vpop.permute.xlu0 %849
          %851 = vrot.lane.b32.xlu0 %v784, 104
          %v852 = vpop.permute.xlu0 %851
          %853 = vrot.lane.b32.xlu0 %v785, 104
          %v854 = vpop.permute.xlu0 %853
          %855 = vrot.lane.b32.xlu0 %v786, 104
          %v856 = vpop.permute.xlu0 %855
          %857 = vrot.lane.b32.xlu0 %v787, 104
          %v858 = vpop.permute.xlu0 %857
          %859 = vrot.lane.b32.xlu0 %v788, 104
          %v860 = vpop.permute.xlu0 %859
          %861 = vrot.lane.b32.xlu0 %v789, 104
          %v862 = vpop.permute.xlu0 %861
          %863 = vrot.lane.b32.xlu0 %v790, 104
          %v864 = vpop.permute.xlu0 %863
          %865 = vrot.lane.b32.xlu0 %v791, 104
          %v866 = vpop.permute.xlu0 %865
          %867 = vrot.lane.b32.xlu0 %v792, 104
          %v868 = vpop.permute.xlu0 %867
          %869 = vrot.lane.b32.xlu0 %v793, 104
          %v870 = vpop.permute.xlu0 %869
          %871 = vrot.lane.b32.xlu0 %v794, 104
          %v872 = vpop.permute.xlu0 %871
          %873 = vrot.lane.b32.xlu0 %v795, 104
          %v874 = vpop.permute.xlu0 %873
          %875 = vrot.lane.b32.xlu0 %v796, 104
          %v876 = vpop.permute.xlu0 %875
          %877 = vrot.lane.b32.xlu0 %v797, 104
          %v878 = vpop.permute.xlu0 %877
          %879 = vrot.lane.b32.xlu0 %v798, 104
          %v880 = vpop.permute.xlu0 %879
          %881 = vrot.lane.b32.xlu0 %v799, 104
          %v882 = vpop.permute.xlu0 %881
          %883 = vrot.lane.b32.xlu0 %v800, 104
          %v884 = vpop.permute.xlu0 %883
          %885 = vrot.lane.b32.xlu0 %v801, 104
          %v886 = vpop.permute.xlu0 %885
          %887 = vrot.lane.b32.xlu0 %v802, 104
          %v888 = vpop.permute.xlu0 %887
          %889 = vrot.lane.b32.xlu0 %v803, 104
          %v890 = vpop.permute.xlu0 %889
          %891 = vrot.lane.b32.xlu0 %v804, 104
          %v892 = vpop.permute.xlu0 %891
          %893 = vrot.lane.b32.xlu0 %v805, 104
          %v894 = vpop.permute.xlu0 %893
          %895 = vrot.lane.b32.xlu0 %v806, 104
          %v896 = vpop.permute.xlu0 %895
          %897 = vrot.lane.b32.xlu0 %v807, 104
          %v898 = vpop.permute.xlu0 %897
          %899 = vrot.lane.b32.xlu0 %v808, 104
          %v900 = vpop.permute.xlu0 %899
          %901 = vrot.lane.b32.xlu0 %v809, 104
          %v902 = vpop.permute.xlu0 %901
          %903 = vrot.lane.b32.xlu0 %v810, 104
          %v904 = vpop.permute.xlu0 %903
          %905 = vrot.lane.b32.xlu0 %v811, 104
          %v906 = vpop.permute.xlu0 %905
          %907 = vrot.lane.b32.xlu0 %v812, 104
          %v908 = vpop.permute.xlu0 %907
          %v909 = vsel %vm578, %v846, 0
          %v911 = vsel %vm578, %v848, 0
          %v913 = vsel %vm578, %v850, 0
          %v915 = vsel %vm578, %v852, 0
          %v917 = vsel %vm578, %v854, 0
          %v919 = vsel %vm578, %v856, 0
          %v921 = vsel %vm578, %v858, 0
          %v923 = vsel %vm578, %v860, 0
          %v925 = vsel %vm578, %v862, 0
          %v927 = vsel %vm578, %v864, 0
          %v929 = vsel %vm578, %v866, 0
          %v931 = vsel %vm578, %v868, 0
          %v933 = vsel %vm578, %v870, 0
          %v935 = vsel %vm578, %v872, 0
          %v937 = vsel %vm578, %v874, 0
          %v939 = vsel %vm578, %v876, 0
          %v941 = vsel %vm578, %v878, 0
          %v943 = vsel %vm578, %v880, 0
          %v945 = vsel %vm578, %v882, 0
          %v947 = vsel %vm578, %v884, 0
          %v949 = vsel %vm578, %v886, 0
          %v951 = vsel %vm578, %v888, 0
          %v953 = vsel %vm578, %v890, 0
          %v955 = vsel %vm578, %v892, 0
          %v957 = vsel %vm578, %v894, 0
          %v959 = vsel %vm578, %v896, 0
          %v961 = vsel %vm578, %v898, 0
          %v963 = vsel %vm578, %v900, 0
          %v965 = vsel %vm578, %v902, 0
          %v967 = vsel %vm578, %v904, 0
          %v969 = vsel %vm578, %v906, 0
          %v971 = vsel %vm578, %v908, 0
          %973 = vmatpush.xpose.msra.mxu0 %v939
          %974 = vmatpush.xpose.msra.mxu0 %v937
          %975 = vmatpush.xpose.msra.mxu0 %v935
          %976 = vmatpush.xpose.msra.mxu0 %v933
          %977 = vmatpush.xpose.msra.mxu0 %v931
          %978 = vmatpush.xpose.msra.mxu0 %v929
          %979 = vmatpush.xpose.msra.mxu0 %v927
          %980 = vmatpush.xpose.msra.mxu0 %v925
          %981 = vmatpush.xpose.msra.mxu0 %v923
          %982 = vmatpush.xpose.msra.mxu0 %v921
          %983 = vmatpush.xpose.msra.mxu0 %v919
          %984 = vmatpush.xpose.msra.mxu0 %v917
          %985 = vmatpush.xpose.msra.mxu0 %v915
          %986 = vmatpush.xpose.msra.mxu0 %v913
          %987 = vmatpush.xpose.msra.mxu0 %v911
          %988 = vmatpush.xpose.msra.mxu0 %v909
          %989 = vmatmul.f32.gmra.mxu0 %v580
          %v990 = vpop.f32.mrf.mxu0
          %v991 = vadd.f32 0.0001, %v990
          %992 = vdwg.mxu0
          %993 = vmatpush.xpose.msra.mxu0 %v971
          %994 = vmatpush.xpose.msra.mxu0 %v969
          %995 = vmatpush.xpose.msra.mxu0 %v967
          %996 = vmatpush.xpose.msra.mxu0 %v965
          %997 = vmatpush.xpose.msra.mxu0 %v963
          %998 = vmatpush.xpose.msra.mxu0 %v961
          %999 = vmatpush.xpose.msra.mxu0 %v959
          %1000 = vmatpush.xpose.msra.mxu0 %v957
          %1001 = vmatpush.xpose.msra.mxu0 %v955
          %1002 = vmatpush.xpose.msra.mxu0 %v953
          %1003 = vmatpush.xpose.msra.mxu0 %v951
          %1004 = vmatpush.xpose.msra.mxu0 %v949
          %1005 = vmatpush.xpose.msra.mxu0 %v947
          %1006 = vmatpush.xpose.msra.mxu0 %v945
          %1007 = vmatpush.xpose.msra.mxu0 %v943
          %1008 = vmatpush.xpose.msra.mxu0 %v941
          %1009 = vmatmul.f32.gmra.mxu0 %v580
          %v1010 = vpop.f32.mrf.mxu0
          %v1011 = vadd.f32 0.0001, %v1010
          %1012 = vdwg.mxu0
          %v1013 = vrsqrt.pop %v991
          %v1014 = vmul.f32 %v1013, %v991
          %v1015 = vmul.f32 %v1014, %v1013
          %v1016 = vmul.f32 0.5, %v1015
          %v1017 = vsub.f32 1.5, %v1016
          %v1018 = vmul.f32 %v1013, %v1017
          %vm1019 = vweird.f32 %v991
          %vm1020 = vweird.f32 %v1013
          %vm1021 = vmor %vm1019, %vm1020
          %v1022 = vsel %vm1021, %v1013, %v1018
          %v1023 = vrsqrt.pop %v1011
          %v1024 = vmul.f32 %v1023, %v1011
          %v1025 = vmul.f32 %v1024, %v1023
          %v1026 = vmul.f32 0.5, %v1025
          %v1027 = vsub.f32 1.5, %v1026
          %v1028 = vmul.f32 %v1023, %v1027
          %vm1029 = vweird.f32 %v1011
          %vm1030 = vweird.f32 %v1023
          %vm1031 = vmor %vm1029, %vm1030
          %v1032 = vsel %vm1031, %v1023, %v1028
          %v1035 = vrot.slane %v1032, 7
          %v1036 = vsel %vm709, %v1022, %v1035
          %s1038 = scalar_lea.vmem [#allocation2], 2
          %1039 = vst.msk [vmem:[%s1038] sm:$0x3] %vm715, %v1036
        $region56: #{cnn_attention_forward.5} parent=47 // pred_fallthru
          _
        %v1040 = vld [vmem:[%s353] sm:$0xff]
        %v1041 = vld [vmem:[%s353 + $0x8] sm:$0xff]
        %v1042 = vld [vmem:[%s353 + $0x10] sm:$0xff]
        %v1043 = vld [vmem:[%s353 + $0x18] sm:$0xff]
        %v1044 = vld [vmem:[%s353 + $0x20] sm:$0xff]
        %v1045 = vld [vmem:[%s353 + $0x28] sm:$0xff]
        %v1046 = vld [vmem:[%s353 + $0x30] sm:$0xff]
        %v1047 = vld [vmem:[%s353 + $0x38] sm:$0xff]
        %v1048 = vld [vmem:[%s353 + $0x40] sm:$0xff]
        %v1049 = vld [vmem:[%s353 + $0x48] sm:$0xff]
        %v1050 = vld [vmem:[%s353 + $0x50] sm:$0xff]
        %v1051 = vld [vmem:[%s353 + $0x58] sm:$0xff]
        %v1052 = vld [vmem:[%s353 + $0x60] sm:$0xff]
        %v1053 = vld [vmem:[%s353 + $0x68] sm:$0xff]
        %v1054 = vld [vmem:[%s353 + $0x70] sm:$0xff]
        %v1055 = vld [vmem:[%s353 + $0x78] sm:$0xff]
        %v1056 = vld [vmem:[%s3] sm:$0x3]
        %1058 = vset.pattern.permute.xlu0 0
        %1059 = vperm.xlu0 %1058, %v1040
        %v1060 = vpop.permute.xlu0 %1059
        %1063 = vset.pattern.permute.xlu0 0
        %1064 = vperm.xlu0 %1063, %v1041
        %v1065 = vpop.permute.xlu0 %1064
        %1068 = vset.pattern.permute.xlu0 0
        %1069 = vperm.xlu0 %1068, %v1042
        %v1070 = vpop.permute.xlu0 %1069
        %1073 = vset.pattern.permute.xlu0 0
        %1074 = vperm.xlu0 %1073, %v1043
        %v1075 = vpop.permute.xlu0 %1074
        %1078 = vset.pattern.permute.xlu0 0
        %1079 = vperm.xlu0 %1078, %v1044
        %v1080 = vpop.permute.xlu0 %1079
        %1083 = vset.pattern.permute.xlu0 0
        %1084 = vperm.xlu0 %1083, %v1045
        %v1085 = vpop.permute.xlu0 %1084
        %1088 = vset.pattern.permute.xlu0 0
        %1089 = vperm.xlu0 %1088, %v1046
        %v1090 = vpop.permute.xlu0 %1089
        %1093 = vset.pattern.permute.xlu0 0
        %1094 = vperm.xlu0 %1093, %v1047
        %v1095 = vpop.permute.xlu0 %1094
        %1098 = vset.pattern.permute.xlu0 0
        %1099 = vperm.xlu0 %1098, %v1048
        %v1100 = vpop.permute.xlu0 %1099
        %1103 = vset.pattern.permute.xlu0 0
        %1104 = vperm.xlu0 %1103, %v1049
        %v1105 = vpop.permute.xlu0 %1104
        %1108 = vset.pattern.permute.xlu0 0
        %1109 = vperm.xlu0 %1108, %v1050
        %v1110 = vpop.permute.xlu0 %1109
        %1113 = vset.pattern.permute.xlu0 0
        %1114 = vperm.xlu0 %1113, %v1051
        %v1115 = vpop.permute.xlu0 %1114
        %1118 = vset.pattern.permute.xlu0 0
        %1119 = vperm.xlu0 %1118, %v1052
        %v1120 = vpop.permute.xlu0 %1119
        %1123 = vset.pattern.permute.xlu0 0
        %1124 = vperm.xlu0 %1123, %v1053
        %v1125 = vpop.permute.xlu0 %1124
        %1128 = vset.pattern.permute.xlu0 0
        %1129 = vperm.xlu0 %1128, %v1054
        %v1130 = vpop.permute.xlu0 %1129
        %1133 = vset.pattern.permute.xlu0 0
        %1134 = vperm.xlu0 %1133, %v1055
        %v1135 = vpop.permute.xlu0 %1134
        %v1138 = vperm.slane %v1056, 0
        %v1139 = vperm.slane %v1056, 1
        %v1142 = vsub.f32 %v1060, %v1138
        %v1143 = vsub.f32 %v1060, %v1139
        %v1144 = vsub.f32 %v1065, %v1138
        %v1145 = vsub.f32 %v1065, %v1139
        %v1146 = vsub.f32 %v1070, %v1138
        %v1147 = vsub.f32 %v1070, %v1139
        %v1148 = vsub.f32 %v1075, %v1138
        %v1149 = vsub.f32 %v1075, %v1139
        %v1150 = vsub.f32 %v1080, %v1138
        %v1151 = vsub.f32 %v1080, %v1139
        %v1152 = vsub.f32 %v1085, %v1138
        %v1153 = vsub.f32 %v1085, %v1139
        %v1154 = vsub.f32 %v1090, %v1138
        %v1155 = vsub.f32 %v1090, %v1139
        %v1156 = vsub.f32 %v1095, %v1138
        %v1157 = vsub.f32 %v1095, %v1139
        %v1158 = vsub.f32 %v1100, %v1138
        %v1159 = vsub.f32 %v1100, %v1139
        %v1160 = vsub.f32 %v1105, %v1138
        %v1161 = vsub.f32 %v1105, %v1139
        %v1162 = vsub.f32 %v1110, %v1138
        %v1163 = vsub.f32 %v1110, %v1139
        %v1164 = vsub.f32 %v1115, %v1138
        %v1165 = vsub.f32 %v1115, %v1139
        %v1166 = vsub.f32 %v1120, %v1138
        %v1167 = vsub.f32 %v1120, %v1139
        %v1168 = vsub.f32 %v1125, %v1138
        %v1169 = vsub.f32 %v1125, %v1139
        %v1170 = vsub.f32 %v1130, %v1138
        %v1171 = vsub.f32 %v1130, %v1139
        %v1172 = vsub.f32 %v1135, %v1138
        %v1173 = vsub.f32 %v1135, %v1139
        %v1174 = vld [vmem:[%s359] sm:$0xff]
        %v1175 = vld [vmem:[%s359 + $0x8] sm:$0xff]
        %v1176 = vld [vmem:[%s359 + $0x10] sm:$0xff]
        %v1177 = vld [vmem:[%s359 + $0x18] sm:$0xff]
        %v1178 = vld [vmem:[%s359 + $0x20] sm:$0xff]
        %v1179 = vld [vmem:[%s359 + $0x28] sm:$0xff]
        %v1180 = vld [vmem:[%s359 + $0x30] sm:$0xff]
        %v1181 = vld [vmem:[%s359 + $0x38] sm:$0xff]
        %v1182 = vld [vmem:[%s359 + $0x40] sm:$0xff]
        %v1183 = vld [vmem:[%s359 + $0x48] sm:$0xff]
        %v1184 = vld [vmem:[%s359 + $0x50] sm:$0xff]
        %v1185 = vld [vmem:[%s359 + $0x58] sm:$0xff]
        %v1186 = vld [vmem:[%s359 + $0x60] sm:$0xff]
        %v1187 = vld [vmem:[%s359 + $0x68] sm:$0xff]
        %v1188 = vld [vmem:[%s359 + $0x70] sm:$0xff]
        %v1189 = vld [vmem:[%s359 + $0x78] sm:$0xff]
        %v1190 = vld [vmem:[%s4] sm:$0x3]
        %1192 = vset.pattern.permute.xlu0 0
        %1193 = vperm.xlu0 %1192, %v1174
        %v1194 = vpop.permute.xlu0 %1193
        %1197 = vset.pattern.permute.xlu0 0
        %1198 = vperm.xlu0 %1197, %v1175
        %v1199 = vpop.permute.xlu0 %1198
        %1202 = vset.pattern.permute.xlu0 0
        %1203 = vperm.xlu0 %1202, %v1176
        %v1204 = vpop.permute.xlu0 %1203
        %1207 = vset.pattern.permute.xlu0 0
        %1208 = vperm.xlu0 %1207, %v1177
        %v1209 = vpop.permute.xlu0 %1208
        %1212 = vset.pattern.permute.xlu0 0
        %1213 = vperm.xlu0 %1212, %v1178
        %v1214 = vpop.permute.xlu0 %1213
        %1217 = vset.pattern.permute.xlu0 0
        %1218 = vperm.xlu0 %1217, %v1179
        %v1219 = vpop.permute.xlu0 %1218
        %1222 = vset.pattern.permute.xlu0 0
        %1223 = vperm.xlu0 %1222, %v1180
        %v1224 = vpop.permute.xlu0 %1223
        %1227 = vset.pattern.permute.xlu0 0
        %1228 = vperm.xlu0 %1227, %v1181
        %v1229 = vpop.permute.xlu0 %1228
        %1232 = vset.pattern.permute.xlu0 0
        %1233 = vperm.xlu0 %1232, %v1182
        %v1234 = vpop.permute.xlu0 %1233
        %1237 = vset.pattern.permute.xlu0 0
        %1238 = vperm.xlu0 %1237, %v1183
        %v1239 = vpop.permute.xlu0 %1238
        %1242 = vset.pattern.permute.xlu0 0
        %1243 = vperm.xlu0 %1242, %v1184
        %v1244 = vpop.permute.xlu0 %1243
        %1247 = vset.pattern.permute.xlu0 0
        %1248 = vperm.xlu0 %1247, %v1185
        %v1249 = vpop.permute.xlu0 %1248
        %1252 = vset.pattern.permute.xlu0 0
        %1253 = vperm.xlu0 %1252, %v1186
        %v1254 = vpop.permute.xlu0 %1253
        %1257 = vset.pattern.permute.xlu0 0
        %1258 = vperm.xlu0 %1257, %v1187
        %v1259 = vpop.permute.xlu0 %1258
        %1262 = vset.pattern.permute.xlu0 0
        %1263 = vperm.xlu0 %1262, %v1188
        %v1264 = vpop.permute.xlu0 %1263
        %1267 = vset.pattern.permute.xlu0 0
        %1268 = vperm.xlu0 %1267, %v1189
        %v1269 = vpop.permute.xlu0 %1268
        %v1272 = vperm.slane %v1190, 0
        %v1273 = vperm.slane %v1190, 1
        %v1276 = vsub.f32 %v1194, %v1272
        %v1277 = vsub.f32 %v1194, %v1273
        %v1278 = vsub.f32 %v1199, %v1272
        %v1279 = vsub.f32 %v1199, %v1273
        %v1280 = vsub.f32 %v1204, %v1272
        %v1281 = vsub.f32 %v1204, %v1273
        %v1282 = vsub.f32 %v1209, %v1272
        %v1283 = vsub.f32 %v1209, %v1273
        %v1284 = vsub.f32 %v1214, %v1272
        %v1285 = vsub.f32 %v1214, %v1273
        %v1286 = vsub.f32 %v1219, %v1272
        %v1287 = vsub.f32 %v1219, %v1273
        %v1288 = vsub.f32 %v1224, %v1272
        %v1289 = vsub.f32 %v1224, %v1273
        %v1290 = vsub.f32 %v1229, %v1272
        %v1291 = vsub.f32 %v1229, %v1273
        %v1292 = vsub.f32 %v1234, %v1272
        %v1293 = vsub.f32 %v1234, %v1273
        %v1294 = vsub.f32 %v1239, %v1272
        %v1295 = vsub.f32 %v1239, %v1273
        %v1296 = vsub.f32 %v1244, %v1272
        %v1297 = vsub.f32 %v1244, %v1273
        %v1298 = vsub.f32 %v1249, %v1272
        %v1299 = vsub.f32 %v1249, %v1273
        %v1300 = vsub.f32 %v1254, %v1272
        %v1301 = vsub.f32 %v1254, %v1273
        %v1302 = vsub.f32 %v1259, %v1272
        %v1303 = vsub.f32 %v1259, %v1273
        %v1304 = vsub.f32 %v1264, %v1272
        %v1305 = vsub.f32 %v1264, %v1273
        %v1306 = vsub.f32 %v1269, %v1272
        %v1307 = vsub.f32 %v1269, %v1273
        %v1308 = vmul.f32 %v1142, %v1142
        %v1309 = vmul.f32 %v1143, %v1143
        %v1310 = vmul.f32 %v1144, %v1144
        %v1311 = vmul.f32 %v1145, %v1145
        %v1312 = vmul.f32 %v1146, %v1146
        %v1313 = vmul.f32 %v1147, %v1147
        %v1314 = vmul.f32 %v1148, %v1148
        %v1315 = vmul.f32 %v1149, %v1149
        %v1316 = vmul.f32 %v1150, %v1150
        %v1317 = vmul.f32 %v1151, %v1151
        %v1318 = vmul.f32 %v1152, %v1152
        %v1319 = vmul.f32 %v1153, %v1153
        %v1320 = vmul.f32 %v1154, %v1154
        %v1321 = vmul.f32 %v1155, %v1155
        %v1322 = vmul.f32 %v1156, %v1156
        %v1323 = vmul.f32 %v1157, %v1157
        %v1324 = vmul.f32 %v1158, %v1158
        %v1325 = vmul.f32 %v1159, %v1159
        %v1326 = vmul.f32 %v1160, %v1160
        %v1327 = vmul.f32 %v1161, %v1161
        %v1328 = vmul.f32 %v1162, %v1162
        %v1329 = vmul.f32 %v1163, %v1163
        %v1330 = vmul.f32 %v1164, %v1164
        %v1331 = vmul.f32 %v1165, %v1165
        %v1332 = vmul.f32 %v1166, %v1166
        %v1333 = vmul.f32 %v1167, %v1167
        %v1334 = vmul.f32 %v1168, %v1168
        %v1335 = vmul.f32 %v1169, %v1169
        %v1336 = vmul.f32 %v1170, %v1170
        %v1337 = vmul.f32 %v1171, %v1171
        %v1338 = vmul.f32 %v1172, %v1172
        %v1339 = vmul.f32 %v1173, %v1173
        %v1340 = vmul.f32 %v1276, %v1276
        %v1341 = vmul.f32 %v1277, %v1277
        %v1342 = vmul.f32 %v1278, %v1278
        %v1343 = vmul.f32 %v1279, %v1279
        %v1344 = vmul.f32 %v1280, %v1280
        %v1345 = vmul.f32 %v1281, %v1281
        %v1346 = vmul.f32 %v1282, %v1282
        %v1347 = vmul.f32 %v1283, %v1283
        %v1348 = vmul.f32 %v1284, %v1284
        %v1349 = vmul.f32 %v1285, %v1285
        %v1350 = vmul.f32 %v1286, %v1286
        %v1351 = vmul.f32 %v1287, %v1287
        %v1352 = vmul.f32 %v1288, %v1288
        %v1353 = vmul.f32 %v1289, %v1289
        %v1354 = vmul.f32 %v1290, %v1290
        %v1355 = vmul.f32 %v1291, %v1291
        %v1356 = vmul.f32 %v1292, %v1292
        %v1357 = vmul.f32 %v1293, %v1293
        %v1358 = vmul.f32 %v1294, %v1294
        %v1359 = vmul.f32 %v1295, %v1295
        %v1360 = vmul.f32 %v1296, %v1296
        %v1361 = vmul.f32 %v1297, %v1297
        %v1362 = vmul.f32 %v1298, %v1298
        %v1363 = vmul.f32 %v1299, %v1299
        %v1364 = vmul.f32 %v1300, %v1300
        %v1365 = vmul.f32 %v1301, %v1301
        %v1366 = vmul.f32 %v1302, %v1302
        %v1367 = vmul.f32 %v1303, %v1303
        %v1368 = vmul.f32 %v1304, %v1304
        %v1369 = vmul.f32 %v1305, %v1305
        %v1370 = vmul.f32 %v1306, %v1306
        %v1371 = vmul.f32 %v1307, %v1307
        %v1372 = vadd.f32 %v1308, %v1340
        %v1373 = vadd.f32 %v1309, %v1341
        %v1374 = vadd.f32 %v1310, %v1342
        %v1375 = vadd.f32 %v1311, %v1343
        %v1376 = vadd.f32 %v1312, %v1344
        %v1377 = vadd.f32 %v1313, %v1345
        %v1378 = vadd.f32 %v1314, %v1346
        %v1379 = vadd.f32 %v1315, %v1347
        %v1380 = vadd.f32 %v1316, %v1348
        %v1381 = vadd.f32 %v1317, %v1349
        %v1382 = vadd.f32 %v1318, %v1350
        %v1383 = vadd.f32 %v1319, %v1351
        %v1384 = vadd.f32 %v1320, %v1352
        %v1385 = vadd.f32 %v1321, %v1353
        %v1386 = vadd.f32 %v1322, %v1354
        %v1387 = vadd.f32 %v1323, %v1355
        %v1388 = vadd.f32 %v1324, %v1356
        %v1389 = vadd.f32 %v1325, %v1357
        %v1390 = vadd.f32 %v1326, %v1358
        %v1391 = vadd.f32 %v1327, %v1359
        %v1392 = vadd.f32 %v1328, %v1360
        %v1393 = vadd.f32 %v1329, %v1361
        %v1394 = vadd.f32 %v1330, %v1362
        %v1395 = vadd.f32 %v1331, %v1363
        %v1396 = vadd.f32 %v1332, %v1364
        %v1397 = vadd.f32 %v1333, %v1365
        %v1398 = vadd.f32 %v1334, %v1366
        %v1399 = vadd.f32 %v1335, %v1367
        %v1400 = vadd.f32 %v1336, %v1368
        %v1401 = vadd.f32 %v1337, %v1369
        %v1402 = vadd.f32 %v1338, %v1370
        %v1403 = vadd.f32 %v1339, %v1371
        %s1404 = smul.u32 %s24, 128
        %s1405 = sshra.s32 %s1404, 3
        %s1406 = sand.u32 %s1404, 7
        %s1407 = smul.addr %s1405, 4
        %s1408 = scalar_lea.vmem %s371, %s1407
        %v1409 = vld [vmem:[%s1408] sm:$0xf]
        %v1410 = vld [vmem:[%s1408 + $0x4] sm:$0xf]
        %v1411 = vld [vmem:[%s1408 + $0x8] sm:$0xf]
        %v1412 = vld [vmem:[%s1408 + $0xc] sm:$0xf]
        %v1413 = vld [vmem:[%s1408 + $0x10] sm:$0xf]
        %v1414 = vld [vmem:[%s1408 + $0x14] sm:$0xf]
        %v1415 = vld [vmem:[%s1408 + $0x18] sm:$0xf]
        %v1416 = vld [vmem:[%s1408 + $0x1c] sm:$0xf]
        %v1417 = vld [vmem:[%s1408 + $0x20] sm:$0xf]
        %v1418 = vld [vmem:[%s1408 + $0x24] sm:$0xf]
        %v1419 = vld [vmem:[%s1408 + $0x28] sm:$0xf]
        %v1420 = vld [vmem:[%s1408 + $0x2c] sm:$0xf]
        %v1421 = vld [vmem:[%s1408 + $0x30] sm:$0xf]
        %v1422 = vld [vmem:[%s1408 + $0x34] sm:$0xf]
        %v1423 = vld [vmem:[%s1408 + $0x38] sm:$0xf]
        %v1424 = vld [vmem:[%s1408 + $0x3c] sm:$0xf]
        %v1425 = vld [vmem:[%s371] sm:$0xf]
        %v1426 = vld [vmem:[%s371 + $0x4] sm:$0xf]
        %v1427 = vld [vmem:[%s371 + $0x8] sm:$0xf]
        %v1428 = vld [vmem:[%s371 + $0xc] sm:$0xf]
        %v1429 = vld [vmem:[%s371 + $0x10] sm:$0xf]
        %v1430 = vld [vmem:[%s371 + $0x14] sm:$0xf]
        %v1431 = vld [vmem:[%s371 + $0x18] sm:$0xf]
        %v1432 = vld [vmem:[%s371 + $0x1c] sm:$0xf]
        %v1433 = vld [vmem:[%s371 + $0x20] sm:$0xf]
        %v1434 = vld [vmem:[%s371 + $0x24] sm:$0xf]
        %v1435 = vld [vmem:[%s371 + $0x28] sm:$0xf]
        %v1436 = vld [vmem:[%s371 + $0x2c] sm:$0xf]
        %v1437 = vld [vmem:[%s371 + $0x30] sm:$0xf]
        %v1438 = vld [vmem:[%s371 + $0x34] sm:$0xf]
        %v1439 = vld [vmem:[%s371 + $0x38] sm:$0xf]
        %v1440 = vld [vmem:[%s371 + $0x3c] sm:$0xf]
        %v1441 = vld [vmem:[%s371 + $0x40] sm:$0xf]
        %v1442 = vld [vmem:[%s371 + $0x44] sm:$0xf]
        %v1443 = vld [vmem:[%s371 + $0x48] sm:$0xf]
        %v1444 = vld [vmem:[%s371 + $0x4c] sm:$0xf]
        %v1445 = vld [vmem:[%s371 + $0x50] sm:$0xf]
        %v1446 = vld [vmem:[%s371 + $0x54] sm:$0xf]
        %v1447 = vld [vmem:[%s371 + $0x58] sm:$0xf]
        %v1448 = vld [vmem:[%s371 + $0x5c] sm:$0xf]
        %v1449 = vld [vmem:[%s371 + $0x60] sm:$0xf]
        %v1450 = vld [vmem:[%s371 + $0x64] sm:$0xf]
        %v1451 = vld [vmem:[%s371 + $0x68] sm:$0xf]
        %v1452 = vld [vmem:[%s371 + $0x6c] sm:$0xf]
        %v1453 = vld [vmem:[%s371 + $0x70] sm:$0xf]
        %v1454 = vld [vmem:[%s371 + $0x74] sm:$0xf]
        %v1455 = vld [vmem:[%s371 + $0x78] sm:$0xf]
        %v1456 = vld [vmem:[%s371 + $0x7c] sm:$0xf]
        %v1473 = vunpack.c.l.b16 %v1409
        %v1474 = vunpack.c.l.b16 %v1410
        %v1475 = vunpack.c.l.b16 %v1411
        %v1476 = vunpack.c.l.b16 %v1412
        %v1477 = vunpack.c.l.b16 %v1413
        %v1478 = vunpack.c.l.b16 %v1414
        %v1479 = vunpack.c.l.b16 %v1415
        %v1480 = vunpack.c.l.b16 %v1416
        %v1481 = vunpack.c.l.b16 %v1417
        %v1482 = vunpack.c.l.b16 %v1418
        %v1483 = vunpack.c.l.b16 %v1419
        %v1484 = vunpack.c.l.b16 %v1420
        %v1485 = vunpack.c.l.b16 %v1421
        %v1486 = vunpack.c.l.b16 %v1422
        %v1487 = vunpack.c.l.b16 %v1423
        %v1488 = vunpack.c.l.b16 %v1424
        %v1489 = vpack.c.b16 %v1474, %v1473
        %v1490 = vpack.c.b16 %v1476, %v1475
        %v1491 = vpack.c.b16 %v1478, %v1477
        %v1492 = vpack.c.b16 %v1480, %v1479
        %v1493 = vpack.c.b16 %v1482, %v1481
        %v1494 = vpack.c.b16 %v1484, %v1483
        %v1495 = vpack.c.b16 %v1486, %v1485
        %v1496 = vpack.c.b16 %v1488, %v1487
        %v1529 = vunpack.c.l.b16 %v1425
        %v1530 = vunpack.c.l.b16 %v1426
        %v1531 = vunpack.c.l.b16 %v1427
        %v1532 = vunpack.c.l.b16 %v1428
        %v1533 = vunpack.c.l.b16 %v1429
        %v1534 = vunpack.c.l.b16 %v1430
        %v1535 = vunpack.c.l.b16 %v1431
        %v1536 = vunpack.c.l.b16 %v1432
        %v1537 = vunpack.c.l.b16 %v1433
        %v1538 = vunpack.c.l.b16 %v1434
        %v1539 = vunpack.c.l.b16 %v1435
        %v1540 = vunpack.c.l.b16 %v1436
        %v1541 = vunpack.c.l.b16 %v1437
        %v1542 = vunpack.c.l.b16 %v1438
        %v1543 = vunpack.c.l.b16 %v1439
        %v1544 = vunpack.c.l.b16 %v1440
        %v1545 = vunpack.c.l.b16 %v1441
        %v1546 = vunpack.c.l.b16 %v1442
        %v1547 = vunpack.c.l.b16 %v1443
        %v1548 = vunpack.c.l.b16 %v1444
        %v1549 = vunpack.c.l.b16 %v1445
        %v1550 = vunpack.c.l.b16 %v1446
        %v1551 = vunpack.c.l.b16 %v1447
        %v1552 = vunpack.c.l.b16 %v1448
        %v1553 = vunpack.c.l.b16 %v1449
        %v1554 = vunpack.c.l.b16 %v1450
        %v1555 = vunpack.c.l.b16 %v1451
        %v1556 = vunpack.c.l.b16 %v1452
        %v1557 = vunpack.c.l.b16 %v1453
        %v1558 = vunpack.c.l.b16 %v1454
        %v1559 = vunpack.c.l.b16 %v1455
        %v1560 = vunpack.c.l.b16 %v1456
        %v1561 = vpack.c.b16 %v1530, %v1529
        %v1562 = vpack.c.b16 %v1532, %v1531
        %v1563 = vpack.c.b16 %v1534, %v1533
        %v1564 = vpack.c.b16 %v1536, %v1535
        %v1565 = vpack.c.b16 %v1538, %v1537
        %v1566 = vpack.c.b16 %v1540, %v1539
        %v1567 = vpack.c.b16 %v1542, %v1541
        %v1568 = vpack.c.b16 %v1544, %v1543
        %v1569 = vpack.c.b16 %v1546, %v1545
        %v1570 = vpack.c.b16 %v1548, %v1547
        %v1571 = vpack.c.b16 %v1550, %v1549
        %v1572 = vpack.c.b16 %v1552, %v1551
        %v1573 = vpack.c.b16 %v1554, %v1553
        %v1574 = vpack.c.b16 %v1556, %v1555
        %v1575 = vpack.c.b16 %v1558, %v1557
        %v1576 = vpack.c.b16 %v1560, %v1559
        %1577 = vrot.lane.b32.xlu0 %v1561, 112
        %v1578 = vpop.permute.xlu0 %1577
        %1579 = vrot.lane.b32.xlu0 %v1562, 112
        %v1580 = vpop.permute.xlu0 %1579
        %1581 = vrot.lane.b32.xlu0 %v1563, 112
        %v1582 = vpop.permute.xlu0 %1581
        %1583 = vrot.lane.b32.xlu0 %v1564, 112
        %v1584 = vpop.permute.xlu0 %1583
        %1585 = vrot.lane.b32.xlu0 %v1565, 112
        %v1586 = vpop.permute.xlu0 %1585
        %1587 = vrot.lane.b32.xlu0 %v1566, 112
        %v1588 = vpop.permute.xlu0 %1587
        %1589 = vrot.lane.b32.xlu0 %v1567, 112
        %v1590 = vpop.permute.xlu0 %1589
        %1591 = vrot.lane.b32.xlu0 %v1568, 112
        %v1592 = vpop.permute.xlu0 %1591
        %1593 = vrot.lane.b32.xlu0 %v1569, 112
        %v1594 = vpop.permute.xlu0 %1593
        %1595 = vrot.lane.b32.xlu0 %v1570, 112
        %v1596 = vpop.permute.xlu0 %1595
        %1597 = vrot.lane.b32.xlu0 %v1571, 112
        %v1598 = vpop.permute.xlu0 %1597
        %1599 = vrot.lane.b32.xlu0 %v1572, 112
        %v1600 = vpop.permute.xlu0 %1599
        %1601 = vrot.lane.b32.xlu0 %v1573, 112
        %v1602 = vpop.permute.xlu0 %1601
        %1603 = vrot.lane.b32.xlu0 %v1574, 112
        %v1604 = vpop.permute.xlu0 %1603
        %1605 = vrot.lane.b32.xlu0 %v1575, 112
        %v1606 = vpop.permute.xlu0 %1605
        %1607 = vrot.lane.b32.xlu0 %v1576, 112
        %v1608 = vpop.permute.xlu0 %1607
        %vm1609 = vcmask 64512
        %v1611 = vsel %vm1609, %v1489, 0
        %v1614 = vsel %vm1609, %v1490, 0
        %v1617 = vsel %vm1609, %v1491, 0
        %v1620 = vsel %vm1609, %v1492, 0
        %v1623 = vsel %vm1609, %v1493, 0
        %v1626 = vsel %vm1609, %v1494, 0
        %v1629 = vsel %vm1609, %v1495, 0
        %v1632 = vsel %vm1609, %v1496, 0
        %v1635 = vsel %vm1609, %v1578, 0
        %v1638 = vsel %vm1609, %v1580, 0
        %v1641 = vsel %vm1609, %v1582, 0
        %v1644 = vsel %vm1609, %v1584, 0
        %v1647 = vsel %vm1609, %v1586, 0
        %v1650 = vsel %vm1609, %v1588, 0
        %v1653 = vsel %vm1609, %v1590, 0
        %v1656 = vsel %vm1609, %v1592, 0
        %v1659 = vsel %vm1609, %v1594, 0
        %v1662 = vsel %vm1609, %v1596, 0
        %v1665 = vsel %vm1609, %v1598, 0
        %v1668 = vsel %vm1609, %v1600, 0
        %v1671 = vsel %vm1609, %v1602, 0
        %v1674 = vsel %vm1609, %v1604, 0
        %v1677 = vsel %vm1609, %v1606, 0
        %v1680 = vsel %vm1609, %v1608, 0
        %1682 = vmatpush.bf16.xpose.msra.mxu0 %v1656
        %1683 = vmatpush.bf16.xpose.msra.mxu0 %v1653
        %1684 = vmatpush.bf16.xpose.msra.mxu0 %v1650
        %1685 = vmatpush.bf16.xpose.msra.mxu0 %v1647
        %1686 = vmatpush.bf16.xpose.msra.mxu0 %v1644
        %1687 = vmatpush.bf16.xpose.msra.mxu0 %v1641
        %1688 = vmatpush.bf16.xpose.msra.mxu0 %v1638
        %1689 = vmatpush.bf16.xpose.msra.mxu0 %v1635
        %1690 = vmatmul.bf16.gmra.mxu0 %v1611
        %v1691 = vpop.f32.mrf.mxu0
        %v1692 = vadd.f32 0.0, %v1691
        %v1693 = vpop.f32.mrf.mxu0
        %v1694 = vadd.f32 0.0, %v1693
        %1695 = vmatmul.bf16.gmra.mxu0 %v1614
        %v1696 = vpop.f32.mrf.mxu0
        %v1697 = vadd.f32 0.0, %v1696
        %v1698 = vpop.f32.mrf.mxu0
        %v1699 = vadd.f32 0.0, %v1698
        %1700 = vmatmul.bf16.gmra.mxu0 %v1617
        %v1701 = vpop.f32.mrf.mxu0
        %v1702 = vadd.f32 0.0, %v1701
        %v1703 = vpop.f32.mrf.mxu0
        %v1704 = vadd.f32 0.0, %v1703
        %1705 = vmatmul.bf16.gmra.mxu0 %v1620
        %v1706 = vpop.f32.mrf.mxu0
        %v1707 = vadd.f32 0.0, %v1706
        %v1708 = vpop.f32.mrf.mxu0
        %v1709 = vadd.f32 0.0, %v1708
        %1710 = vmatmul.bf16.gmra.mxu0 %v1623
        %v1711 = vpop.f32.mrf.mxu0
        %v1712 = vadd.f32 0.0, %v1711
        %v1713 = vpop.f32.mrf.mxu0
        %v1714 = vadd.f32 0.0, %v1713
        %1715 = vmatmul.bf16.gmra.mxu0 %v1626
        %v1716 = vpop.f32.mrf.mxu0
        %v1717 = vadd.f32 0.0, %v1716
        %v1718 = vpop.f32.mrf.mxu0
        %v1719 = vadd.f32 0.0, %v1718
        %1720 = vmatmul.bf16.gmra.mxu0 %v1629
        %v1721 = vpop.f32.mrf.mxu0
        %v1722 = vadd.f32 0.0, %v1721
        %v1723 = vpop.f32.mrf.mxu0
        %v1724 = vadd.f32 0.0, %v1723
        %1725 = vmatmul.bf16.gmra.mxu0 %v1632
        %v1726 = vpop.f32.mrf.mxu0
        %v1727 = vadd.f32 0.0, %v1726
        %v1728 = vpop.f32.mrf.mxu0
        %v1729 = vadd.f32 0.0, %v1728
        %1730 = vdwg.mxu0
        %1731 = vmatpush.bf16.xpose.msra.mxu0 %v1680
        %1732 = vmatpush.bf16.xpose.msra.mxu0 %v1677
        %1733 = vmatpush.bf16.xpose.msra.mxu0 %v1674
        %1734 = vmatpush.bf16.xpose.msra.mxu0 %v1671
        %1735 = vmatpush.bf16.xpose.msra.mxu0 %v1668
        %1736 = vmatpush.bf16.xpose.msra.mxu0 %v1665
        %1737 = vmatpush.bf16.xpose.msra.mxu0 %v1662
        %1738 = vmatpush.bf16.xpose.msra.mxu0 %v1659
        %1739 = vmatmul.bf16.gmra.mxu0 %v1611
        %v1740 = vpop.f32.mrf.mxu0
        %v1741 = vadd.f32 0.0, %v1740
        %v1742 = vpop.f32.mrf.mxu0
        %v1743 = vadd.f32 0.0, %v1742
        %1744 = vmatmul.bf16.gmra.mxu0 %v1614
        %v1745 = vpop.f32.mrf.mxu0
        %v1746 = vadd.f32 0.0, %v1745
        %v1747 = vpop.f32.mrf.mxu0
        %v1748 = vadd.f32 0.0, %v1747
        %1749 = vmatmul.bf16.gmra.mxu0 %v1617
        %v1750 = vpop.f32.mrf.mxu0
        %v1751 = vadd.f32 0.0, %v1750
        %v1752 = vpop.f32.mrf.mxu0
        %v1753 = vadd.f32 0.0, %v1752
        %1754 = vmatmul.bf16.gmra.mxu0 %v1620
        %v1755 = vpop.f32.mrf.mxu0
        %v1756 = vadd.f32 0.0, %v1755
        %v1757 = vpop.f32.mrf.mxu0
        %v1758 = vadd.f32 0.0, %v1757
        %1759 = vmatmul.bf16.gmra.mxu0 %v1623
        %v1760 = vpop.f32.mrf.mxu0
        %v1761 = vadd.f32 0.0, %v1760
        %v1762 = vpop.f32.mrf.mxu0
        %v1763 = vadd.f32 0.0, %v1762
        %1764 = vmatmul.bf16.gmra.mxu0 %v1626
        %v1765 = vpop.f32.mrf.mxu0
        %v1766 = vadd.f32 0.0, %v1765
        %v1767 = vpop.f32.mrf.mxu0
        %v1768 = vadd.f32 0.0, %v1767
        %1769 = vmatmul.bf16.gmra.mxu0 %v1629
        %v1770 = vpop.f32.mrf.mxu0
        %v1771 = vadd.f32 0.0, %v1770
        %v1772 = vpop.f32.mrf.mxu0
        %v1773 = vadd.f32 0.0, %v1772
        %1774 = vmatmul.bf16.gmra.mxu0 %v1632
        %v1775 = vpop.f32.mrf.mxu0
        %v1776 = vadd.f32 0.0, %v1775
        %v1777 = vpop.f32.mrf.mxu0
        %v1778 = vadd.f32 0.0, %v1777
        %1779 = vdwg.mxu0
        %v1780 = vunpack.c.l.bf16 %v1409
        %v1781 = vunpack.c.l.bf16 %v1410
        %v1782 = vunpack.c.l.bf16 %v1411
        %v1783 = vunpack.c.l.bf16 %v1412
        %v1784 = vunpack.c.l.bf16 %v1413
        %v1785 = vunpack.c.l.bf16 %v1414
        %v1786 = vunpack.c.l.bf16 %v1415
        %v1787 = vunpack.c.l.bf16 %v1416
        %v1788 = vunpack.c.l.bf16 %v1417
        %v1789 = vunpack.c.l.bf16 %v1418
        %v1790 = vunpack.c.l.bf16 %v1419
        %v1791 = vunpack.c.l.bf16 %v1420
        %v1792 = vunpack.c.l.bf16 %v1421
        %v1793 = vunpack.c.l.bf16 %v1422
        %v1794 = vunpack.c.l.bf16 %v1423
        %v1795 = vunpack.c.l.bf16 %v1424
        %v1796 = vmul.f32 %v1780, %v1780
        %v1797 = vmul.f32 %v1781, %v1781
        %v1798 = vmul.f32 %v1782, %v1782
        %v1799 = vmul.f32 %v1783, %v1783
        %v1800 = vmul.f32 %v1784, %v1784
        %v1801 = vmul.f32 %v1785, %v1785
        %v1802 = vmul.f32 %v1786, %v1786
        %v1803 = vmul.f32 %v1787, %v1787
        %v1804 = vmul.f32 %v1788, %v1788
        %v1805 = vmul.f32 %v1789, %v1789
        %v1806 = vmul.f32 %v1790, %v1790
        %v1807 = vmul.f32 %v1791, %v1791
        %v1808 = vmul.f32 %v1792, %v1792
        %v1809 = vmul.f32 %v1793, %v1793
        %v1810 = vmul.f32 %v1794, %v1794
        %v1811 = vmul.f32 %v1795, %v1795
        %v1812 = vsel %vm1609, %v1796, 0.0
        %1813 = vadd.xlane.f32.xlu0 %v1812
        %v1814 = vpop.xlane.xlu0 %1813
        %v1815 = vsel %vm1609, %v1797, 0.0
        %1816 = vadd.xlane.f32.xlu0 %v1815
        %v1817 = vpop.xlane.xlu0 %1816
        %v1818 = vsel %vm1609, %v1798, 0.0
        %1819 = vadd.xlane.f32.xlu0 %v1818
        %v1820 = vpop.xlane.xlu0 %1819
        %v1821 = vsel %vm1609, %v1799, 0.0
        %1822 = vadd.xlane.f32.xlu0 %v1821
        %v1823 = vpop.xlane.xlu0 %1822
        %v1824 = vsel %vm1609, %v1800, 0.0
        %1825 = vadd.xlane.f32.xlu0 %v1824
        %v1826 = vpop.xlane.xlu0 %1825
        %v1827 = vsel %vm1609, %v1801, 0.0
        %1828 = vadd.xlane.f32.xlu0 %v1827
        %v1829 = vpop.xlane.xlu0 %1828
        %v1830 = vsel %vm1609, %v1802, 0.0
        %1831 = vadd.xlane.f32.xlu0 %v1830
        %v1832 = vpop.xlane.xlu0 %1831
        %v1833 = vsel %vm1609, %v1803, 0.0
        %1834 = vadd.xlane.f32.xlu0 %v1833
        %v1835 = vpop.xlane.xlu0 %1834
        %v1836 = vsel %vm1609, %v1804, 0.0
        %1837 = vadd.xlane.f32.xlu0 %v1836
        %v1838 = vpop.xlane.xlu0 %1837
        %v1839 = vsel %vm1609, %v1805, 0.0
        %1840 = vadd.xlane.f32.xlu0 %v1839
        %v1841 = vpop.xlane.xlu0 %1840
        %v1842 = vsel %vm1609, %v1806, 0.0
        %1843 = vadd.xlane.f32.xlu0 %v1842
        %v1844 = vpop.xlane.xlu0 %1843
        %v1845 = vsel %vm1609, %v1807, 0.0
        %1846 = vadd.xlane.f32.xlu0 %v1845
        %v1847 = vpop.xlane.xlu0 %1846
        %v1848 = vsel %vm1609, %v1808, 0.0
        %1849 = vadd.xlane.f32.xlu0 %v1848
        %v1850 = vpop.xlane.xlu0 %1849
        %v1851 = vsel %vm1609, %v1809, 0.0
        %1852 = vadd.xlane.f32.xlu0 %v1851
        %v1853 = vpop.xlane.xlu0 %1852
        %v1854 = vsel %vm1609, %v1810, 0.0
        %1855 = vadd.xlane.f32.xlu0 %v1854
        %v1856 = vpop.xlane.xlu0 %1855
        %v1857 = vsel %vm1609, %v1811, 0.0
        %1858 = vadd.xlane.f32.xlu0 %v1857
        %v1859 = vpop.xlane.xlu0 %1858
        %v1860 = vadd.f32 %v1814, 0.0001
        %v1861 = vadd.f32 %v1817, 0.0001
        %v1862 = vadd.f32 %v1820, 0.0001
        %v1863 = vadd.f32 %v1823, 0.0001
        %v1864 = vadd.f32 %v1826, 0.0001
        %v1865 = vadd.f32 %v1829, 0.0001
        %v1866 = vadd.f32 %v1832, 0.0001
        %v1867 = vadd.f32 %v1835, 0.0001
        %v1868 = vadd.f32 %v1838, 0.0001
        %v1869 = vadd.f32 %v1841, 0.0001
        %v1870 = vadd.f32 %v1844, 0.0001
        %v1871 = vadd.f32 %v1847, 0.0001
        %v1872 = vadd.f32 %v1850, 0.0001
        %v1873 = vadd.f32 %v1853, 0.0001
        %v1874 = vadd.f32 %v1856, 0.0001
        %v1875 = vadd.f32 %v1859, 0.0001
        %v1876 = vrsqrt.pop %v1860
        %v1877 = vmul.f32 %v1876, %v1860
        %v1878 = vmul.f32 %v1877, %v1876
        %v1879 = vmul.f32 0.5, %v1878
        %v1880 = vsub.f32 1.5, %v1879
        %v1881 = vmul.f32 %v1876, %v1880
        %vm1882 = vweird.f32 %v1860
        %vm1883 = vweird.f32 %v1876
        %vm1884 = vmor %vm1882, %vm1883
        %v1885 = vsel %vm1884, %v1876, %v1881
        %v1886 = vrsqrt.pop %v1861
        %v1887 = vmul.f32 %v1886, %v1861
        %v1888 = vmul.f32 %v1887, %v1886
        %v1889 = vmul.f32 0.5, %v1888
        %v1890 = vsub.f32 1.5, %v1889
        %v1891 = vmul.f32 %v1886, %v1890
        %vm1892 = vweird.f32 %v1861
        %vm1893 = vweird.f32 %v1886
        %vm1894 = vmor %vm1892, %vm1893
        %v1895 = vsel %vm1894, %v1886, %v1891
        %v1896 = vrsqrt.pop %v1862
        %v1897 = vmul.f32 %v1896, %v1862
        %v1898 = vmul.f32 %v1897, %v1896
        %v1899 = vmul.f32 0.5, %v1898
        %v1900 = vsub.f32 1.5, %v1899
        %v1901 = vmul.f32 %v1896, %v1900
        %vm1902 = vweird.f32 %v1862
        %vm1903 = vweird.f32 %v1896
        %vm1904 = vmor %vm1902, %vm1903
        %v1905 = vsel %vm1904, %v1896, %v1901
        %v1906 = vrsqrt.pop %v1863
        %v1907 = vmul.f32 %v1906, %v1863
        %v1908 = vmul.f32 %v1907, %v1906
        %v1909 = vmul.f32 0.5, %v1908
        %v1910 = vsub.f32 1.5, %v1909
        %v1911 = vmul.f32 %v1906, %v1910
        %vm1912 = vweird.f32 %v1863
        %vm1913 = vweird.f32 %v1906
        %vm1914 = vmor %vm1912, %vm1913
        %v1915 = vsel %vm1914, %v1906, %v1911
        %v1916 = vrsqrt.pop %v1864
        %v1917 = vmul.f32 %v1916, %v1864
        %v1918 = vmul.f32 %v1917, %v1916
        %v1919 = vmul.f32 0.5, %v1918
        %v1920 = vsub.f32 1.5, %v1919
        %v1921 = vmul.f32 %v1916, %v1920
        %vm1922 = vweird.f32 %v1864
        %vm1923 = vweird.f32 %v1916
        %vm1924 = vmor %vm1922, %vm1923
        %v1925 = vsel %vm1924, %v1916, %v1921
        %v1926 = vrsqrt.pop %v1865
        %v1927 = vmul.f32 %v1926, %v1865
        %v1928 = vmul.f32 %v1927, %v1926
        %v1929 = vmul.f32 0.5, %v1928
        %v1930 = vsub.f32 1.5, %v1929
        %v1931 = vmul.f32 %v1926, %v1930
        %vm1932 = vweird.f32 %v1865
        %vm1933 = vweird.f32 %v1926
        %vm1934 = vmor %vm1932, %vm1933
        %v1935 = vsel %vm1934, %v1926, %v1931
        %v1936 = vrsqrt.pop %v1866
        %v1937 = vmul.f32 %v1936, %v1866
        %v1938 = vmul.f32 %v1937, %v1936
        %v1939 = vmul.f32 0.5, %v1938
        %v1940 = vsub.f32 1.5, %v1939
        %v1941 = vmul.f32 %v1936, %v1940
        %vm1942 = vweird.f32 %v1866
        %vm1943 = vweird.f32 %v1936
        %vm1944 = vmor %vm1942, %vm1943
        %v1945 = vsel %vm1944, %v1936, %v1941
        %v1946 = vrsqrt.pop %v1867
        %v1947 = vmul.f32 %v1946, %v1867
        %v1948 = vmul.f32 %v1947, %v1946
        %v1949 = vmul.f32 0.5, %v1948
        %v1950 = vsub.f32 1.5, %v1949
        %v1951 = vmul.f32 %v1946, %v1950
        %vm1952 = vweird.f32 %v1867
        %vm1953 = vweird.f32 %v1946
        %vm1954 = vmor %vm1952, %vm1953
        %v1955 = vsel %vm1954, %v1946, %v1951
        %v1956 = vrsqrt.pop %v1868
        %v1957 = vmul.f32 %v1956, %v1868
        %v1958 = vmul.f32 %v1957, %v1956
        %v1959 = vmul.f32 0.5, %v1958
        %v1960 = vsub.f32 1.5, %v1959
        %v1961 = vmul.f32 %v1956, %v1960
        %vm1962 = vweird.f32 %v1868
        %vm1963 = vweird.f32 %v1956
        %vm1964 = vmor %vm1962, %vm1963
        %v1965 = vsel %vm1964, %v1956, %v1961
        %v1966 = vrsqrt.pop %v1869
        %v1967 = vmul.f32 %v1966, %v1869
        %v1968 = vmul.f32 %v1967, %v1966
        %v1969 = vmul.f32 0.5, %v1968
        %v1970 = vsub.f32 1.5, %v1969
        %v1971 = vmul.f32 %v1966, %v1970
        %vm1972 = vweird.f32 %v1869
        %vm1973 = vweird.f32 %v1966
        %vm1974 = vmor %vm1972, %vm1973
        %v1975 = vsel %vm1974, %v1966, %v1971
        %v1976 = vrsqrt.pop %v1870
        %v1977 = vmul.f32 %v1976, %v1870
        %v1978 = vmul.f32 %v1977, %v1976
        %v1979 = vmul.f32 0.5, %v1978
        %v1980 = vsub.f32 1.5, %v1979
        %v1981 = vmul.f32 %v1976, %v1980
        %vm1982 = vweird.f32 %v1870
        %vm1983 = vweird.f32 %v1976
        %vm1984 = vmor %vm1982, %vm1983
        %v1985 = vsel %vm1984, %v1976, %v1981
        %v1986 = vrsqrt.pop %v1871
        %v1987 = vmul.f32 %v1986, %v1871
        %v1988 = vmul.f32 %v1987, %v1986
        %v1989 = vmul.f32 0.5, %v1988
        %v1990 = vsub.f32 1.5, %v1989
        %v1991 = vmul.f32 %v1986, %v1990
        %vm1992 = vweird.f32 %v1871
        %vm1993 = vweird.f32 %v1986
        %vm1994 = vmor %vm1992, %vm1993
        %v1995 = vsel %vm1994, %v1986, %v1991
        %v1996 = vrsqrt.pop %v1872
        %v1997 = vmul.f32 %v1996, %v1872
        %v1998 = vmul.f32 %v1997, %v1996
        %v1999 = vmul.f32 0.5, %v1998
        %v2000 = vsub.f32 1.5, %v1999
        %v2001 = vmul.f32 %v1996, %v2000
        %vm2002 = vweird.f32 %v1872
        %vm2003 = vweird.f32 %v1996
        %vm2004 = vmor %vm2002, %vm2003
        %v2005 = vsel %vm2004, %v1996, %v2001
        %v2006 = vrsqrt.pop %v1873
        %v2007 = vmul.f32 %v2006, %v1873
        %v2008 = vmul.f32 %v2007, %v2006
        %v2009 = vmul.f32 0.5, %v2008
        %v2010 = vsub.f32 1.5, %v2009
        %v2011 = vmul.f32 %v2006, %v2010
        %vm2012 = vweird.f32 %v1873
        %vm2013 = vweird.f32 %v2006
        %vm2014 = vmor %vm2012, %vm2013
        %v2015 = vsel %vm2014, %v2006, %v2011
        %v2016 = vrsqrt.pop %v1874
        %v2017 = vmul.f32 %v2016, %v1874
        %v2018 = vmul.f32 %v2017, %v2016
        %v2019 = vmul.f32 0.5, %v2018
        %v2020 = vsub.f32 1.5, %v2019
        %v2021 = vmul.f32 %v2016, %v2020
        %vm2022 = vweird.f32 %v1874
        %vm2023 = vweird.f32 %v2016
        %vm2024 = vmor %vm2022, %vm2023
        %v2025 = vsel %vm2024, %v2016, %v2021
        %v2026 = vrsqrt.pop %v1875
        %v2027 = vmul.f32 %v2026, %v1875
        %v2028 = vmul.f32 %v2027, %v2026
        %v2029 = vmul.f32 0.5, %v2028
        %v2030 = vsub.f32 1.5, %v2029
        %v2031 = vmul.f32 %v2026, %v2030
        %vm2032 = vweird.f32 %v1875
        %vm2033 = vweird.f32 %v2026
        %vm2034 = vmor %vm2032, %vm2033
        %v2035 = vsel %vm2034, %v2026, %v2031
        %v2036 = vld [vmem:[#allocation2] sm:$0x3]
        %v2038 = vperm.slane %v2036, 0
        %v2039 = vperm.slane %v2036, 1
        %v2042 = vmul.f32 %v1885, %v2038
        %v2043 = vmul.f32 %v1885, %v2039
        %v2044 = vmul.f32 %v1895, %v2038
        %v2045 = vmul.f32 %v1895, %v2039
        %v2046 = vmul.f32 %v1905, %v2038
        %v2047 = vmul.f32 %v1905, %v2039
        %v2048 = vmul.f32 %v1915, %v2038
        %v2049 = vmul.f32 %v1915, %v2039
        %v2050 = vmul.f32 %v1925, %v2038
        %v2051 = vmul.f32 %v1925, %v2039
        %v2052 = vmul.f32 %v1935, %v2038
        %v2053 = vmul.f32 %v1935, %v2039
        %v2054 = vmul.f32 %v1945, %v2038
        %v2055 = vmul.f32 %v1945, %v2039
        %v2056 = vmul.f32 %v1955, %v2038
        %v2057 = vmul.f32 %v1955, %v2039
        %v2058 = vmul.f32 %v1965, %v2038
        %v2059 = vmul.f32 %v1965, %v2039
        %v2060 = vmul.f32 %v1975, %v2038
        %v2061 = vmul.f32 %v1975, %v2039
        %v2062 = vmul.f32 %v1985, %v2038
        %v2063 = vmul.f32 %v1985, %v2039
        %v2064 = vmul.f32 %v1995, %v2038
        %v2065 = vmul.f32 %v1995, %v2039
        %v2066 = vmul.f32 %v2005, %v2038
        %v2067 = vmul.f32 %v2005, %v2039
        %v2068 = vmul.f32 %v2015, %v2038
        %v2069 = vmul.f32 %v2015, %v2039
        %v2070 = vmul.f32 %v2025, %v2038
        %v2071 = vmul.f32 %v2025, %v2039
        %v2072 = vmul.f32 %v2035, %v2038
        %v2073 = vmul.f32 %v2035, %v2039
        %s2074 = sld [smem:[#allocation3]]
        %s2075 = ssub.f32 0.0, %s2074
        %v2076 = vstv %s2075
        %v2077 = vmul.f32 %v2076, %v1372
        %v2078 = vmul.f32 %v2076, %v1373
        %v2079 = vmul.f32 %v2076, %v1374
        %v2080 = vmul.f32 %v2076, %v1375
        %v2081 = vmul.f32 %v2076, %v1376
        %v2082 = vmul.f32 %v2076, %v1377
        %v2083 = vmul.f32 %v2076, %v1378
        %v2084 = vmul.f32 %v2076, %v1379
        %v2085 = vmul.f32 %v2076, %v1380
        %v2086 = vmul.f32 %v2076, %v1381
        %v2087 = vmul.f32 %v2076, %v1382
        %v2088 = vmul.f32 %v2076, %v1383
        %v2089 = vmul.f32 %v2076, %v1384
        %v2090 = vmul.f32 %v2076, %v1385
        %v2091 = vmul.f32 %v2076, %v1386
        %v2092 = vmul.f32 %v2076, %v1387
        %v2093 = vmul.f32 %v2076, %v1388
        %v2094 = vmul.f32 %v2076, %v1389
        %v2095 = vmul.f32 %v2076, %v1390
        %v2096 = vmul.f32 %v2076, %v1391
        %v2097 = vmul.f32 %v2076, %v1392
        %v2098 = vmul.f32 %v2076, %v1393
        %v2099 = vmul.f32 %v2076, %v1394
        %v2100 = vmul.f32 %v2076, %v1395
        %v2101 = vmul.f32 %v2076, %v1396
        %v2102 = vmul.f32 %v2076, %v1397
        %v2103 = vmul.f32 %v2076, %v1398
        %v2104 = vmul.f32 %v2076, %v1399
        %v2105 = vmul.f32 %v2076, %v1400
        %v2106 = vmul.f32 %v2076, %v1401
        %v2107 = vmul.f32 %v2076, %v1402
        %v2108 = vmul.f32 %v2076, %v1403
        %v2109 = vmul.f32 %v2077, 1.442695
        %v2110 = vpow.pop %v2109
        %v2111 = vmul.f32 %v2078, 1.442695
        %v2112 = vpow.pop %v2111
        %v2113 = vmul.f32 %v2079, 1.442695
        %v2114 = vpow.pop %v2113
        %v2115 = vmul.f32 %v2080, 1.442695
        %v2116 = vpow.pop %v2115
        %v2117 = vmul.f32 %v2081, 1.442695
        %v2118 = vpow.pop %v2117
        %v2119 = vmul.f32 %v2082, 1.442695
        %v2120 = vpow.pop %v2119
        %v2121 = vmul.f32 %v2083, 1.442695
        %v2122 = vpow.pop %v2121
        %v2123 = vmul.f32 %v2084, 1.442695
        %v2124 = vpow.pop %v2123
        %v2125 = vmul.f32 %v2085, 1.442695
        %v2126 = vpow.pop %v2125
        %v2127 = vmul.f32 %v2086, 1.442695
        %v2128 = vpow.pop %v2127
        %v2129 = vmul.f32 %v2087, 1.442695
        %v2130 = vpow.pop %v2129
        %v2131 = vmul.f32 %v2088, 1.442695
        %v2132 = vpow.pop %v2131
        %v2133 = vmul.f32 %v2089, 1.442695
        %v2134 = vpow.pop %v2133
        %v2135 = vmul.f32 %v2090, 1.442695
        %v2136 = vpow.pop %v2135
        %v2137 = vmul.f32 %v2091, 1.442695
        %v2138 = vpow.pop %v2137
        %v2139 = vmul.f32 %v2092, 1.442695
        %v2140 = vpow.pop %v2139
        %v2141 = vmul.f32 %v2093, 1.442695
        %v2142 = vpow.pop %v2141
        %v2143 = vmul.f32 %v2094, 1.442695
        %v2144 = vpow.pop %v2143
        %v2145 = vmul.f32 %v2095, 1.442695
        %v2146 = vpow.pop %v2145
        %v2147 = vmul.f32 %v2096, 1.442695
        %v2148 = vpow.pop %v2147
        %v2149 = vmul.f32 %v2097, 1.442695
        %v2150 = vpow.pop %v2149
        %v2151 = vmul.f32 %v2098, 1.442695
        %v2152 = vpow.pop %v2151
        %v2153 = vmul.f32 %v2099, 1.442695
        %v2154 = vpow.pop %v2153
        %v2155 = vmul.f32 %v2100, 1.442695
        %v2156 = vpow.pop %v2155
        %v2157 = vmul.f32 %v2101, 1.442695
        %v2158 = vpow.pop %v2157
        %v2159 = vmul.f32 %v2102, 1.442695
        %v2160 = vpow.pop %v2159
        %v2161 = vmul.f32 %v2103, 1.442695
        %v2162 = vpow.pop %v2161
        %v2163 = vmul.f32 %v2104, 1.442695
        %v2164 = vpow.pop %v2163
        %v2165 = vmul.f32 %v2105, 1.442695
        %v2166 = vpow.pop %v2165
        %v2167 = vmul.f32 %v2106, 1.442695
        %v2168 = vpow.pop %v2167
        %v2169 = vmul.f32 %v2107, 1.442695
        %v2170 = vpow.pop %v2169
        %v2171 = vmul.f32 %v2108, 1.442695
        %v2172 = vpow.pop %v2171
        %v2173 = vld [vmem:[%s365] sm:$0xff]
        %v2174 = vld [vmem:[%s365 + $0x8] sm:$0xff]
        %v2175 = vld [vmem:[%s365 + $0x10] sm:$0xff]
        %v2176 = vld [vmem:[%s365 + $0x18] sm:$0xff]
        %v2177 = vld [vmem:[%s365 + $0x20] sm:$0xff]
        %v2178 = vld [vmem:[%s365 + $0x28] sm:$0xff]
        %v2179 = vld [vmem:[%s365 + $0x30] sm:$0xff]
        %v2180 = vld [vmem:[%s365 + $0x38] sm:$0xff]
        %v2181 = vld [vmem:[%s365 + $0x40] sm:$0xff]
        %v2182 = vld [vmem:[%s365 + $0x48] sm:$0xff]
        %v2183 = vld [vmem:[%s365 + $0x50] sm:$0xff]
        %v2184 = vld [vmem:[%s365 + $0x58] sm:$0xff]
        %v2185 = vld [vmem:[%s365 + $0x60] sm:$0xff]
        %v2186 = vld [vmem:[%s365 + $0x68] sm:$0xff]
        %v2187 = vld [vmem:[%s365 + $0x70] sm:$0xff]
        %v2188 = vld [vmem:[%s365 + $0x78] sm:$0xff]
        %2190 = vset.pattern.permute.xlu0 0
        %2191 = vperm.xlu0 %2190, %v2173
        %v2192 = vpop.permute.xlu0 %2191
        %2195 = vset.pattern.permute.xlu0 0
        %2196 = vperm.xlu0 %2195, %v2174
        %v2197 = vpop.permute.xlu0 %2196
        %2200 = vset.pattern.permute.xlu0 0
        %2201 = vperm.xlu0 %2200, %v2175
        %v2202 = vpop.permute.xlu0 %2201
        %2205 = vset.pattern.permute.xlu0 0
        %2206 = vperm.xlu0 %2205, %v2176
        %v2207 = vpop.permute.xlu0 %2206
        %2210 = vset.pattern.permute.xlu0 0
        %2211 = vperm.xlu0 %2210, %v2177
        %v2212 = vpop.permute.xlu0 %2211
        %2215 = vset.pattern.permute.xlu0 0
        %2216 = vperm.xlu0 %2215, %v2178
        %v2217 = vpop.permute.xlu0 %2216
        %2220 = vset.pattern.permute.xlu0 0
        %2221 = vperm.xlu0 %2220, %v2179
        %v2222 = vpop.permute.xlu0 %2221
        %2225 = vset.pattern.permute.xlu0 0
        %2226 = vperm.xlu0 %2225, %v2180
        %v2227 = vpop.permute.xlu0 %2226
        %2230 = vset.pattern.permute.xlu0 0
        %2231 = vperm.xlu0 %2230, %v2181
        %v2232 = vpop.permute.xlu0 %2231
        %2235 = vset.pattern.permute.xlu0 0
        %2236 = vperm.xlu0 %2235, %v2182
        %v2237 = vpop.permute.xlu0 %2236
        %2240 = vset.pattern.permute.xlu0 0
        %2241 = vperm.xlu0 %2240, %v2183
        %v2242 = vpop.permute.xlu0 %2241
        %2245 = vset.pattern.permute.xlu0 0
        %2246 = vperm.xlu0 %2245, %v2184
        %v2247 = vpop.permute.xlu0 %2246
        %2250 = vset.pattern.permute.xlu0 0
        %2251 = vperm.xlu0 %2250, %v2185
        %v2252 = vpop.permute.xlu0 %2251
        %2255 = vset.pattern.permute.xlu0 0
        %2256 = vperm.xlu0 %2255, %v2186
        %v2257 = vpop.permute.xlu0 %2256
        %2260 = vset.pattern.permute.xlu0 0
        %2261 = vperm.xlu0 %2260, %v2187
        %v2262 = vpop.permute.xlu0 %2261
        %2265 = vset.pattern.permute.xlu0 0
        %2266 = vperm.xlu0 %2265, %v2188
        %v2267 = vpop.permute.xlu0 %2266
        %v2269 = vmul.f32 %v2110, %v2192
        %v2270 = vmul.f32 %v2112, %v2192
        %v2271 = vmul.f32 %v2114, %v2197
        %v2272 = vmul.f32 %v2116, %v2197
        %v2273 = vmul.f32 %v2118, %v2202
        %v2274 = vmul.f32 %v2120, %v2202
        %v2275 = vmul.f32 %v2122, %v2207
        %v2276 = vmul.f32 %v2124, %v2207
        %v2277 = vmul.f32 %v2126, %v2212
        %v2278 = vmul.f32 %v2128, %v2212
        %v2279 = vmul.f32 %v2130, %v2217
        %v2280 = vmul.f32 %v2132, %v2217
        %v2281 = vmul.f32 %v2134, %v2222
        %v2282 = vmul.f32 %v2136, %v2222
        %v2283 = vmul.f32 %v2138, %v2227
        %v2284 = vmul.f32 %v2140, %v2227
        %v2285 = vmul.f32 %v2142, %v2232
        %v2286 = vmul.f32 %v2144, %v2232
        %v2287 = vmul.f32 %v2146, %v2237
        %v2288 = vmul.f32 %v2148, %v2237
        %v2289 = vmul.f32 %v2150, %v2242
        %v2290 = vmul.f32 %v2152, %v2242
        %v2291 = vmul.f32 %v2154, %v2247
        %v2292 = vmul.f32 %v2156, %v2247
        %v2293 = vmul.f32 %v2158, %v2252
        %v2294 = vmul.f32 %v2160, %v2252
        %v2295 = vmul.f32 %v2162, %v2257
        %v2296 = vmul.f32 %v2164, %v2257
        %v2297 = vmul.f32 %v2166, %v2262
        %v2298 = vmul.f32 %v2168, %v2262
        %v2299 = vmul.f32 %v2170, %v2267
        %v2300 = vmul.f32 %v2172, %v2267
        %v2301 = vmul.f32 %v1692, %v2042
        %v2302 = vmul.f32 %v1741, %v2043
        %v2303 = vmul.f32 %v1694, %v2044
        %v2304 = vmul.f32 %v1743, %v2045
        %v2305 = vmul.f32 %v1697, %v2046
        %v2306 = vmul.f32 %v1746, %v2047
        %v2307 = vmul.f32 %v1699, %v2048
        %v2308 = vmul.f32 %v1748, %v2049
        %v2309 = vmul.f32 %v1702, %v2050
        %v2310 = vmul.f32 %v1751, %v2051
        %v2311 = vmul.f32 %v1704, %v2052
        %v2312 = vmul.f32 %v1753, %v2053
        %v2313 = vmul.f32 %v1707, %v2054
        %v2314 = vmul.f32 %v1756, %v2055
        %v2315 = vmul.f32 %v1709, %v2056
        %v2316 = vmul.f32 %v1758, %v2057
        %v2317 = vmul.f32 %v1712, %v2058
        %v2318 = vmul.f32 %v1761, %v2059
        %v2319 = vmul.f32 %v1714, %v2060
        %v2320 = vmul.f32 %v1763, %v2061
        %v2321 = vmul.f32 %v1717, %v2062
        %v2322 = vmul.f32 %v1766, %v2063
        %v2323 = vmul.f32 %v1719, %v2064
        %v2324 = vmul.f32 %v1768, %v2065
        %v2325 = vmul.f32 %v1722, %v2066
        %v2326 = vmul.f32 %v1771, %v2067
        %v2327 = vmul.f32 %v1724, %v2068
        %v2328 = vmul.f32 %v1773, %v2069
        %v2329 = vmul.f32 %v1727, %v2070
        %v2330 = vmul.f32 %v1776, %v2071
        %v2331 = vmul.f32 %v1729, %v2072
        %v2332 = vmul.f32 %v1778, %v2073
        %v2333 = vmul.f32 %v2301, %v2269
        %v2334 = vmul.f32 %v2302, %v2270
        %v2335 = vmul.f32 %v2303, %v2271
        %v2336 = vmul.f32 %v2304, %v2272
        %v2337 = vmul.f32 %v2305, %v2273
        %v2338 = vmul.f32 %v2306, %v2274
        %v2339 = vmul.f32 %v2307, %v2275
        %v2340 = vmul.f32 %v2308, %v2276
        %v2341 = vmul.f32 %v2309, %v2277
        %v2342 = vmul.f32 %v2310, %v2278
        %v2343 = vmul.f32 %v2311, %v2279
        %v2344 = vmul.f32 %v2312, %v2280
        %v2345 = vmul.f32 %v2313, %v2281
        %v2346 = vmul.f32 %v2314, %v2282
        %v2347 = vmul.f32 %v2315, %v2283
        %v2348 = vmul.f32 %v2316, %v2284
        %v2349 = vmul.f32 %v2317, %v2285
        %v2350 = vmul.f32 %v2318, %v2286
        %v2351 = vmul.f32 %v2319, %v2287
        %v2352 = vmul.f32 %v2320, %v2288
        %v2353 = vmul.f32 %v2321, %v2289
        %v2354 = vmul.f32 %v2322, %v2290
        %v2355 = vmul.f32 %v2323, %v2291
        %v2356 = vmul.f32 %v2324, %v2292
        %v2357 = vmul.f32 %v2325, %v2293
        %v2358 = vmul.f32 %v2326, %v2294
        %v2359 = vmul.f32 %v2327, %v2295
        %v2360 = vmul.f32 %v2328, %v2296
        %v2361 = vmul.f32 %v2329, %v2297
        %v2362 = vmul.f32 %v2330, %v2298
        %v2363 = vmul.f32 %v2331, %v2299
        %v2364 = vmul.f32 %v2332, %v2300
        %v2365 = vpack.c.bf16 %v2335, %v2333
        %v2366 = vpack.c.bf16 %v2336, %v2334
        %v2367 = vpack.c.bf16 %v2339, %v2337
        %v2368 = vpack.c.bf16 %v2340, %v2338
        %v2369 = vpack.c.bf16 %v2343, %v2341
        %v2370 = vpack.c.bf16 %v2344, %v2342
        %v2371 = vpack.c.bf16 %v2347, %v2345
        %v2372 = vpack.c.bf16 %v2348, %v2346
        %v2373 = vpack.c.bf16 %v2351, %v2349
        %v2374 = vpack.c.bf16 %v2352, %v2350
        %v2375 = vpack.c.bf16 %v2355, %v2353
        %v2376 = vpack.c.bf16 %v2356, %v2354
        %v2377 = vpack.c.bf16 %v2359, %v2357
        %v2378 = vpack.c.bf16 %v2360, %v2358
        %v2379 = vpack.c.bf16 %v2363, %v2361
        %v2380 = vpack.c.bf16 %v2364, %v2362
        %2381 = vrot.lane.b32.xlu0 %v1561, 96
        %v2382 = vpop.permute.xlu0 %2381
        %2383 = vrot.lane.b32.xlu0 %v1562, 96
        %v2384 = vpop.permute.xlu0 %2383
        %2385 = vrot.lane.b32.xlu0 %v1563, 96
        %v2386 = vpop.permute.xlu0 %2385
        %2387 = vrot.lane.b32.xlu0 %v1564, 96
        %v2388 = vpop.permute.xlu0 %2387
        %2389 = vrot.lane.b32.xlu0 %v1565, 96
        %v2390 = vpop.permute.xlu0 %2389
        %2391 = vrot.lane.b32.xlu0 %v1566, 96
        %v2392 = vpop.permute.xlu0 %2391
        %2393 = vrot.lane.b32.xlu0 %v1567, 96
        %v2394 = vpop.permute.xlu0 %2393
        %2395 = vrot.lane.b32.xlu0 %v1568, 96
        %v2396 = vpop.permute.xlu0 %2395
        %2397 = vrot.lane.b32.xlu0 %v1569, 96
        %v2398 = vpop.permute.xlu0 %2397
        %2399 = vrot.lane.b32.xlu0 %v1570, 96
        %v2400 = vpop.permute.xlu0 %2399
        %2401 = vrot.lane.b32.xlu0 %v1571, 96
        %v2402 = vpop.permute.xlu0 %2401
        %2403 = vrot.lane.b32.xlu0 %v1572, 96
        %v2404 = vpop.permute.xlu0 %2403
        %2405 = vrot.lane.b32.xlu0 %v1573, 96
        %v2406 = vpop.permute.xlu0 %2405
        %2407 = vrot.lane.b32.xlu0 %v1574, 96
        %v2408 = vpop.permute.xlu0 %2407
        %2409 = vrot.lane.b32.xlu0 %v1575, 96
        %v2410 = vpop.permute.xlu0 %2409
        %2411 = vrot.lane.b32.xlu0 %v1576, 96
        %v2412 = vpop.permute.xlu0 %2411
        %2429 = vmatpush.bf16.msra.mxu0 %v2396
        %2430 = vmatpush.bf16.msra.mxu0 %v2394
        %2431 = vmatpush.bf16.msra.mxu0 %v2392
        %2432 = vmatpush.bf16.msra.mxu0 %v2390
        %2433 = vmatpush.bf16.msra.mxu0 %v2388
        %2434 = vmatpush.bf16.msra.mxu0 %v2386
        %2435 = vmatpush.bf16.msra.mxu0 %v2384
        %2436 = vmatpush.bf16.msra.mxu0 %v2382
        %2437 = vmatmul.bf16.gmra.mxu0 %v2365
        %v2438 = vpop.f32.mrf.mxu0
        %v2439 = vadd.f32 0.0, %v2438
        %v2440 = vpop.f32.mrf.mxu0
        %v2441 = vadd.f32 0.0, %v2440
        %2442 = vmatmul.bf16.gmra.mxu0 %v2367
        %v2443 = vpop.f32.mrf.mxu0
        %v2444 = vadd.f32 0.0, %v2443
        %v2445 = vpop.f32.mrf.mxu0
        %v2446 = vadd.f32 0.0, %v2445
        %2447 = vmatmul.bf16.gmra.mxu0 %v2369
        %v2448 = vpop.f32.mrf.mxu0
        %v2449 = vadd.f32 0.0, %v2448
        %v2450 = vpop.f32.mrf.mxu0
        %v2451 = vadd.f32 0.0, %v2450
        %2452 = vmatmul.bf16.gmra.mxu0 %v2371
        %v2453 = vpop.f32.mrf.mxu0
        %v2454 = vadd.f32 0.0, %v2453
        %v2455 = vpop.f32.mrf.mxu0
        %v2456 = vadd.f32 0.0, %v2455
        %2457 = vmatmul.bf16.gmra.mxu0 %v2373
        %v2458 = vpop.f32.mrf.mxu0
        %v2459 = vadd.f32 0.0, %v2458
        %v2460 = vpop.f32.mrf.mxu0
        %v2461 = vadd.f32 0.0, %v2460
        %2462 = vmatmul.bf16.gmra.mxu0 %v2375
        %v2463 = vpop.f32.mrf.mxu0
        %v2464 = vadd.f32 0.0, %v2463
        %v2465 = vpop.f32.mrf.mxu0
        %v2466 = vadd.f32 0.0, %v2465
        %2467 = vmatmul.bf16.gmra.mxu0 %v2377
        %v2468 = vpop.f32.mrf.mxu0
        %v2469 = vadd.f32 0.0, %v2468
        %v2470 = vpop.f32.mrf.mxu0
        %v2471 = vadd.f32 0.0, %v2470
        %2472 = vmatmul.bf16.gmra.mxu0 %v2379
        %v2473 = vpop.f32.mrf.mxu0
        %v2474 = vadd.f32 0.0, %v2473
        %v2475 = vpop.f32.mrf.mxu0
        %v2476 = vadd.f32 0.0, %v2475
        %2477 = vdwg.mxu0
        %2478 = vmatpush.bf16.msra.mxu0 %v2412
        %2479 = vmatpush.bf16.msra.mxu0 %v2410
        %2480 = vmatpush.bf16.msra.mxu0 %v2408
        %2481 = vmatpush.bf16.msra.mxu0 %v2406
        %2482 = vmatpush.bf16.msra.mxu0 %v2404
        %2483 = vmatpush.bf16.msra.mxu0 %v2402
        %2484 = vmatpush.bf16.msra.mxu0 %v2400
        %2485 = vmatpush.bf16.msra.mxu0 %v2398
        %2486 = vmatmul.bf16.gmra.mxu0 %v2366
        %v2487 = vpop.f32.mrf.mxu0
        %v2488 = vadd.f32 %v2439, %v2487
        %v2489 = vpop.f32.mrf.mxu0
        %v2490 = vadd.f32 %v2441, %v2489
        %2491 = vmatmul.bf16.gmra.mxu0 %v2368
        %v2492 = vpop.f32.mrf.mxu0
        %v2493 = vadd.f32 %v2444, %v2492
        %v2494 = vpop.f32.mrf.mxu0
        %v2495 = vadd.f32 %v2446, %v2494
        %2496 = vmatmul.bf16.gmra.mxu0 %v2370
        %v2497 = vpop.f32.mrf.mxu0
        %v2498 = vadd.f32 %v2449, %v2497
        %v2499 = vpop.f32.mrf.mxu0
        %v2500 = vadd.f32 %v2451, %v2499
        %2501 = vmatmul.bf16.gmra.mxu0 %v2372
        %v2502 = vpop.f32.mrf.mxu0
        %v2503 = vadd.f32 %v2454, %v2502
        %v2504 = vpop.f32.mrf.mxu0
        %v2505 = vadd.f32 %v2456, %v2504
        %2506 = vmatmul.bf16.gmra.mxu0 %v2374
        %v2507 = vpop.f32.mrf.mxu0
        %v2508 = vadd.f32 %v2459, %v2507
        %v2509 = vpop.f32.mrf.mxu0
        %v2510 = vadd.f32 %v2461, %v2509
        %2511 = vmatmul.bf16.gmra.mxu0 %v2376
        %v2512 = vpop.f32.mrf.mxu0
        %v2513 = vadd.f32 %v2464, %v2512
        %v2514 = vpop.f32.mrf.mxu0
        %v2515 = vadd.f32 %v2466, %v2514
        %2516 = vmatmul.bf16.gmra.mxu0 %v2378
        %v2517 = vpop.f32.mrf.mxu0
        %v2518 = vadd.f32 %v2469, %v2517
        %v2519 = vpop.f32.mrf.mxu0
        %v2520 = vadd.f32 %v2471, %v2519
        %2521 = vmatmul.bf16.gmra.mxu0 %v2380
        %v2522 = vpop.f32.mrf.mxu0
        %v2523 = vadd.f32 %v2474, %v2522
        %v2524 = vpop.f32.mrf.mxu0
        %v2525 = vadd.f32 %v2476, %v2524
        %2526 = vdwg.mxu0
        %v2527 = vpack.c.bf16 %v2488, %v2488
        %v2528 = vpack.c.bf16 %v2490, %v2490
        %v2529 = vpack.c.bf16 %v2493, %v2493
        %v2530 = vpack.c.bf16 %v2495, %v2495
        %v2531 = vpack.c.bf16 %v2498, %v2498
        %v2532 = vpack.c.bf16 %v2500, %v2500
        %v2533 = vpack.c.bf16 %v2503, %v2503
        %v2534 = vpack.c.bf16 %v2505, %v2505
        %v2535 = vpack.c.bf16 %v2508, %v2508
        %v2536 = vpack.c.bf16 %v2510, %v2510
        %v2537 = vpack.c.bf16 %v2513, %v2513
        %v2538 = vpack.c.bf16 %v2515, %v2515
        %v2539 = vpack.c.bf16 %v2518, %v2518
        %v2540 = vpack.c.bf16 %v2520, %v2520
        %v2541 = vpack.c.bf16 %v2523, %v2523
        %v2542 = vpack.c.bf16 %v2525, %v2525
        %vm2543 = vcmask 60416
        %2544 = vst.msk [vmem:[%s380] sm:$0xf] %vm2543, %v2527
        %2545 = vst.msk [vmem:[%s380 + $0x4] sm:$0xf] %vm2543, %v2528
        %2546 = vst.msk [vmem:[%s380 + $0x8] sm:$0xf] %vm2543, %v2529
        %2547 = vst.msk [vmem:[%s380 + $0xc] sm:$0xf] %vm2543, %v2530
        %2548 = vst.msk [vmem:[%s380 + $0x10] sm:$0xf] %vm2543, %v2531
        %2549 = vst.msk [vmem:[%s380 + $0x14] sm:$0xf] %vm2543, %v2532
        %2550 = vst.msk [vmem:[%s380 + $0x18] sm:$0xf] %vm2543, %v2533
        %2551 = vst.msk [vmem:[%s380 + $0x1c] sm:$0xf] %vm2543, %v2534
        %2552 = vst.msk [vmem:[%s380 + $0x20] sm:$0xf] %vm2543, %v2535
        %2553 = vst.msk [vmem:[%s380 + $0x24] sm:$0xf] %vm2543, %v2536
        %2554 = vst.msk [vmem:[%s380 + $0x28] sm:$0xf] %vm2543, %v2537
        %2555 = vst.msk [vmem:[%s380 + $0x2c] sm:$0xf] %vm2543, %v2538
        %2556 = vst.msk [vmem:[%s380 + $0x30] sm:$0xf] %vm2543, %v2539
        %2557 = vst.msk [vmem:[%s380 + $0x34] sm:$0xf] %vm2543, %v2540
        %2558 = vst.msk [vmem:[%s380 + $0x38] sm:$0xf] %vm2543, %v2541
        %2559 = vst.msk [vmem:[%s380 + $0x3c] sm:$0xf] %vm2543, %v2542
        %v2560 = vld [vmem:[%s1408] sm:$0xf]
        %v2561 = vld [vmem:[%s1408 + $0x4] sm:$0xf]
        %v2562 = vld [vmem:[%s1408 + $0x8] sm:$0xf]
        %v2563 = vld [vmem:[%s1408 + $0xc] sm:$0xf]
        %v2564 = vld [vmem:[%s1408 + $0x10] sm:$0xf]
        %v2565 = vld [vmem:[%s1408 + $0x14] sm:$0xf]
        %v2566 = vld [vmem:[%s1408 + $0x18] sm:$0xf]
        %v2567 = vld [vmem:[%s1408 + $0x1c] sm:$0xf]
        %v2568 = vld [vmem:[%s1408 + $0x20] sm:$0xf]
        %v2569 = vld [vmem:[%s1408 + $0x24] sm:$0xf]
        %v2570 = vld [vmem:[%s1408 + $0x28] sm:$0xf]
        %v2571 = vld [vmem:[%s1408 + $0x2c] sm:$0xf]
        %v2572 = vld [vmem:[%s1408 + $0x30] sm:$0xf]
        %v2573 = vld [vmem:[%s1408 + $0x34] sm:$0xf]
        %v2574 = vld [vmem:[%s1408 + $0x38] sm:$0xf]
        %v2575 = vld [vmem:[%s1408 + $0x3c] sm:$0xf]
        %v2576 = vld [vmem:[%s371] sm:$0xf]
        %v2577 = vld [vmem:[%s371 + $0x4] sm:$0xf]
        %v2578 = vld [vmem:[%s371 + $0x8] sm:$0xf]
        %v2579 = vld [vmem:[%s371 + $0xc] sm:$0xf]
        %v2580 = vld [vmem:[%s371 + $0x10] sm:$0xf]
        %v2581 = vld [vmem:[%s371 + $0x14] sm:$0xf]
        %v2582 = vld [vmem:[%s371 + $0x18] sm:$0xf]
        %v2583 = vld [vmem:[%s371 + $0x1c] sm:$0xf]
        %v2584 = vld [vmem:[%s371 + $0x20] sm:$0xf]
        %v2585 = vld [vmem:[%s371 + $0x24] sm:$0xf]
        %v2586 = vld [vmem:[%s371 + $0x28] sm:$0xf]
        %v2587 = vld [vmem:[%s371 + $0x2c] sm:$0xf]
        %v2588 = vld [vmem:[%s371 + $0x30] sm:$0xf]
        %v2589 = vld [vmem:[%s371 + $0x34] sm:$0xf]
        %v2590 = vld [vmem:[%s371 + $0x38] sm:$0xf]
        %v2591 = vld [vmem:[%s371 + $0x3c] sm:$0xf]
        %v2592 = vld [vmem:[%s371 + $0x40] sm:$0xf]
        %v2593 = vld [vmem:[%s371 + $0x44] sm:$0xf]
        %v2594 = vld [vmem:[%s371 + $0x48] sm:$0xf]
        %v2595 = vld [vmem:[%s371 + $0x4c] sm:$0xf]
        %v2596 = vld [vmem:[%s371 + $0x50] sm:$0xf]
        %v2597 = vld [vmem:[%s371 + $0x54] sm:$0xf]
        %v2598 = vld [vmem:[%s371 + $0x58] sm:$0xf]
        %v2599 = vld [vmem:[%s371 + $0x5c] sm:$0xf]
        %v2600 = vld [vmem:[%s371 + $0x60] sm:$0xf]
        %v2601 = vld [vmem:[%s371 + $0x64] sm:$0xf]
        %v2602 = vld [vmem:[%s371 + $0x68] sm:$0xf]
        %v2603 = vld [vmem:[%s371 + $0x6c] sm:$0xf]
        %v2604 = vld [vmem:[%s371 + $0x70] sm:$0xf]
        %v2605 = vld [vmem:[%s371 + $0x74] sm:$0xf]
        %v2606 = vld [vmem:[%s371 + $0x78] sm:$0xf]
        %v2607 = vld [vmem:[%s371 + $0x7c] sm:$0xf]
        %v2624 = vunpack.c.l.b16 %v2560
        %v2625 = vunpack.c.l.b16 %v2561
        %v2626 = vunpack.c.l.b16 %v2562
        %v2627 = vunpack.c.l.b16 %v2563
        %v2628 = vunpack.c.l.b16 %v2564
        %v2629 = vunpack.c.l.b16 %v2565
        %v2630 = vunpack.c.l.b16 %v2566
        %v2631 = vunpack.c.l.b16 %v2567
        %v2632 = vunpack.c.l.b16 %v2568
        %v2633 = vunpack.c.l.b16 %v2569
        %v2634 = vunpack.c.l.b16 %v2570
        %v2635 = vunpack.c.l.b16 %v2571
        %v2636 = vunpack.c.l.b16 %v2572
        %v2637 = vunpack.c.l.b16 %v2573
        %v2638 = vunpack.c.l.b16 %v2574
        %v2639 = vunpack.c.l.b16 %v2575
        %v2640 = vpack.c.b16 %v2625, %v2624
        %v2641 = vpack.c.b16 %v2627, %v2626
        %v2642 = vpack.c.b16 %v2629, %v2628
        %v2643 = vpack.c.b16 %v2631, %v2630
        %v2644 = vpack.c.b16 %v2633, %v2632
        %v2645 = vpack.c.b16 %v2635, %v2634
        %v2646 = vpack.c.b16 %v2637, %v2636
        %v2647 = vpack.c.b16 %v2639, %v2638
        %2648 = vrot.lane.b32.xlu0 %v2640, 120
        %v2649 = vpop.permute.xlu0 %2648
        %2650 = vrot.lane.b32.xlu0 %v2641, 120
        %v2651 = vpop.permute.xlu0 %2650
        %2652 = vrot.lane.b32.xlu0 %v2642, 120
        %v2653 = vpop.permute.xlu0 %2652
        %2654 = vrot.lane.b32.xlu0 %v2643, 120
        %v2655 = vpop.permute.xlu0 %2654
        %2656 = vrot.lane.b32.xlu0 %v2644, 120
        %v2657 = vpop.permute.xlu0 %2656
        %2658 = vrot.lane.b32.xlu0 %v2645, 120
        %v2659 = vpop.permute.xlu0 %2658
        %2660 = vrot.lane.b32.xlu0 %v2646, 120
        %v2661 = vpop.permute.xlu0 %2660
        %2662 = vrot.lane.b32.xlu0 %v2647, 120
        %v2663 = vpop.permute.xlu0 %2662
        %v2696 = vunpack.c.l.b16 %v2576
        %v2697 = vunpack.c.l.b16 %v2577
        %v2698 = vunpack.c.l.b16 %v2578
        %v2699 = vunpack.c.l.b16 %v2579
        %v2700 = vunpack.c.l.b16 %v2580
        %v2701 = vunpack.c.l.b16 %v2581
        %v2702 = vunpack.c.l.b16 %v2582
        %v2703 = vunpack.c.l.b16 %v2583
        %v2704 = vunpack.c.l.b16 %v2584
        %v2705 = vunpack.c.l.b16 %v2585
        %v2706 = vunpack.c.l.b16 %v2586
        %v2707 = vunpack.c.l.b16 %v2587
        %v2708 = vunpack.c.l.b16 %v2588
        %v2709 = vunpack.c.l.b16 %v2589
        %v2710 = vunpack.c.l.b16 %v2590
        %v2711 = vunpack.c.l.b16 %v2591
        %v2712 = vunpack.c.l.b16 %v2592
        %v2713 = vunpack.c.l.b16 %v2593
        %v2714 = vunpack.c.l.b16 %v2594
        %v2715 = vunpack.c.l.b16 %v2595
        %v2716 = vunpack.c.l.b16 %v2596
        %v2717 = vunpack.c.l.b16 %v2597
        %v2718 = vunpack.c.l.b16 %v2598
        %v2719 = vunpack.c.l.b16 %v2599
        %v2720 = vunpack.c.l.b16 %v2600
        %v2721 = vunpack.c.l.b16 %v2601
        %v2722 = vunpack.c.l.b16 %v2602
        %v2723 = vunpack.c.l.b16 %v2603
        %v2724 = vunpack.c.l.b16 %v2604
        %v2725 = vunpack.c.l.b16 %v2605
        %v2726 = vunpack.c.l.b16 %v2606
        %v2727 = vunpack.c.l.b16 %v2607
        %v2728 = vpack.c.b16 %v2697, %v2696
        %v2729 = vpack.c.b16 %v2699, %v2698
        %v2730 = vpack.c.b16 %v2701, %v2700
        %v2731 = vpack.c.b16 %v2703, %v2702
        %v2732 = vpack.c.b16 %v2705, %v2704
        %v2733 = vpack.c.b16 %v2707, %v2706
        %v2734 = vpack.c.b16 %v2709, %v2708
        %v2735 = vpack.c.b16 %v2711, %v2710
        %v2736 = vpack.c.b16 %v2713, %v2712
        %v2737 = vpack.c.b16 %v2715, %v2714
        %v2738 = vpack.c.b16 %v2717, %v2716
        %v2739 = vpack.c.b16 %v2719, %v2718
        %v2740 = vpack.c.b16 %v2721, %v2720
        %v2741 = vpack.c.b16 %v2723, %v2722
        %v2742 = vpack.c.b16 %v2725, %v2724
        %v2743 = vpack.c.b16 %v2727, %v2726
        %2744 = vrot.lane.b32.xlu0 %v2728, 104
        %v2745 = vpop.permute.xlu0 %2744
        %2746 = vrot.lane.b32.xlu0 %v2729, 104
        %v2747 = vpop.permute.xlu0 %2746
        %2748 = vrot.lane.b32.xlu0 %v2730, 104
        %v2749 = vpop.permute.xlu0 %2748
        %2750 = vrot.lane.b32.xlu0 %v2731, 104
        %v2751 = vpop.permute.xlu0 %2750
        %2752 = vrot.lane.b32.xlu0 %v2732, 104
        %v2753 = vpop.permute.xlu0 %2752
        %2754 = vrot.lane.b32.xlu0 %v2733, 104
        %v2755 = vpop.permute.xlu0 %2754
        %2756 = vrot.lane.b32.xlu0 %v2734, 104
        %v2757 = vpop.permute.xlu0 %2756
        %2758 = vrot.lane.b32.xlu0 %v2735, 104
        %v2759 = vpop.permute.xlu0 %2758
        %2760 = vrot.lane.b32.xlu0 %v2736, 104
        %v2761 = vpop.permute.xlu0 %2760
        %2762 = vrot.lane.b32.xlu0 %v2737, 104
        %v2763 = vpop.permute.xlu0 %2762
        %2764 = vrot.lane.b32.xlu0 %v2738, 104
        %v2765 = vpop.permute.xlu0 %2764
        %2766 = vrot.lane.b32.xlu0 %v2739, 104
        %v2767 = vpop.permute.xlu0 %2766
        %2768 = vrot.lane.b32.xlu0 %v2740, 104
        %v2769 = vpop.permute.xlu0 %2768
        %2770 = vrot.lane.b32.xlu0 %v2741, 104
        %v2771 = vpop.permute.xlu0 %2770
        %2772 = vrot.lane.b32.xlu0 %v2742, 104
        %v2773 = vpop.permute.xlu0 %2772
        %2774 = vrot.lane.b32.xlu0 %v2743, 104
        %v2775 = vpop.permute.xlu0 %2774
        %v2777 = vsel %vm1609, %v2649, 0
        %v2780 = vsel %vm1609, %v2651, 0
        %v2783 = vsel %vm1609, %v2653, 0
        %v2786 = vsel %vm1609, %v2655, 0
        %v2789 = vsel %vm1609, %v2657, 0
        %v2792 = vsel %vm1609, %v2659, 0
        %v2795 = vsel %vm1609, %v2661, 0
        %v2798 = vsel %vm1609, %v2663, 0
        %v2801 = vsel %vm1609, %v2745, 0
        %v2804 = vsel %vm1609, %v2747, 0
        %v2807 = vsel %vm1609, %v2749, 0
        %v2810 = vsel %vm1609, %v2751, 0
        %v2813 = vsel %vm1609, %v2753, 0
        %v2816 = vsel %vm1609, %v2755, 0
        %v2819 = vsel %vm1609, %v2757, 0
        %v2822 = vsel %vm1609, %v2759, 0
        %v2825 = vsel %vm1609, %v2761, 0
        %v2828 = vsel %vm1609, %v2763, 0
        %v2831 = vsel %vm1609, %v2765, 0
        %v2834 = vsel %vm1609, %v2767, 0
        %v2837 = vsel %vm1609, %v2769, 0
        %v2840 = vsel %vm1609, %v2771, 0
        %v2843 = vsel %vm1609, %v2773, 0
        %v2846 = vsel %vm1609, %v2775, 0
        %2848 = vmatpush.bf16.xpose.msra.mxu0 %v2822
        %2849 = vmatpush.bf16.xpose.msra.mxu0 %v2819
        %2850 = vmatpush.bf16.xpose.msra.mxu0 %v2816
        %2851 = vmatpush.bf16.xpose.msra.mxu0 %v2813
        %2852 = vmatpush.bf16.xpose.msra.mxu0 %v2810
        %2853 = vmatpush.bf16.xpose.msra.mxu0 %v2807
        %2854 = vmatpush.bf16.xpose.msra.mxu0 %v2804
        %2855 = vmatpush.bf16.xpose.msra.mxu0 %v2801
        %2856 = vmatmul.bf16.gmra.mxu0 %v2777
        %v2857 = vpop.f32.mrf.mxu0
        %v2858 = vadd.f32 0.0, %v2857
        %v2859 = vpop.f32.mrf.mxu0
        %v2860 = vadd.f32 0.0, %v2859
        %2861 = vmatmul.bf16.gmra.mxu0 %v2780
        %v2862 = vpop.f32.mrf.mxu0
        %v2863 = vadd.f32 0.0, %v2862
        %v2864 = vpop.f32.mrf.mxu0
        %v2865 = vadd.f32 0.0, %v2864
        %2866 = vmatmul.bf16.gmra.mxu0 %v2783
        %v2867 = vpop.f32.mrf.mxu0
        %v2868 = vadd.f32 0.0, %v2867
        %v2869 = vpop.f32.mrf.mxu0
        %v2870 = vadd.f32 0.0, %v2869
        %2871 = vmatmul.bf16.gmra.mxu0 %v2786
        %v2872 = vpop.f32.mrf.mxu0
        %v2873 = vadd.f32 0.0, %v2872
        %v2874 = vpop.f32.mrf.mxu0
        %v2875 = vadd.f32 0.0, %v2874
        %2876 = vmatmul.bf16.gmra.mxu0 %v2789
        %v2877 = vpop.f32.mrf.mxu0
        %v2878 = vadd.f32 0.0, %v2877
        %v2879 = vpop.f32.mrf.mxu0
        %v2880 = vadd.f32 0.0, %v2879
        %2881 = vmatmul.bf16.gmra.mxu0 %v2792
        %v2882 = vpop.f32.mrf.mxu0
        %v2883 = vadd.f32 0.0, %v2882
        %v2884 = vpop.f32.mrf.mxu0
        %v2885 = vadd.f32 0.0, %v2884
        %2886 = vmatmul.bf16.gmra.mxu0 %v2795
        %v2887 = vpop.f32.mrf.mxu0
        %v2888 = vadd.f32 0.0, %v2887
        %v2889 = vpop.f32.mrf.mxu0
        %v2890 = vadd.f32 0.0, %v2889
        %2891 = vmatmul.bf16.gmra.mxu0 %v2798
        %v2892 = vpop.f32.mrf.mxu0
        %v2893 = vadd.f32 0.0, %v2892
        %v2894 = vpop.f32.mrf.mxu0
        %v2895 = vadd.f32 0.0, %v2894
        %2896 = vdwg.mxu0
        %2897 = vmatpush.bf16.xpose.msra.mxu0 %v2846
        %2898 = vmatpush.bf16.xpose.msra.mxu0 %v2843
        %2899 = vmatpush.bf16.xpose.msra.mxu0 %v2840
        %2900 = vmatpush.bf16.xpose.msra.mxu0 %v2837
        %2901 = vmatpush.bf16.xpose.msra.mxu0 %v2834
        %2902 = vmatpush.bf16.xpose.msra.mxu0 %v2831
        %2903 = vmatpush.bf16.xpose.msra.mxu0 %v2828
        %2904 = vmatpush.bf16.xpose.msra.mxu0 %v2825
        %2905 = vmatmul.bf16.gmra.mxu0 %v2777
        %v2906 = vpop.f32.mrf.mxu0
        %v2907 = vadd.f32 0.0, %v2906
        %v2908 = vpop.f32.mrf.mxu0
        %v2909 = vadd.f32 0.0, %v2908
        %2910 = vmatmul.bf16.gmra.mxu0 %v2780
        %v2911 = vpop.f32.mrf.mxu0
        %v2912 = vadd.f32 0.0, %v2911
        %v2913 = vpop.f32.mrf.mxu0
        %v2914 = vadd.f32 0.0, %v2913
        %2915 = vmatmul.bf16.gmra.mxu0 %v2783
        %v2916 = vpop.f32.mrf.mxu0
        %v2917 = vadd.f32 0.0, %v2916
        %v2918 = vpop.f32.mrf.mxu0
        %v2919 = vadd.f32 0.0, %v2918
        %2920 = vmatmul.bf16.gmra.mxu0 %v2786
        %v2921 = vpop.f32.mrf.mxu0
        %v2922 = vadd.f32 0.0, %v2921
        %v2923 = vpop.f32.mrf.mxu0
        %v2924 = vadd.f32 0.0, %v2923
        %2925 = vmatmul.bf16.gmra.mxu0 %v2789
        %v2926 = vpop.f32.mrf.mxu0
        %v2927 = vadd.f32 0.0, %v2926
        %v2928 = vpop.f32.mrf.mxu0
        %v2929 = vadd.f32 0.0, %v2928
        %2930 = vmatmul.bf16.gmra.mxu0 %v2792
        %v2931 = vpop.f32.mrf.mxu0
        %v2932 = vadd.f32 0.0, %v2931
        %v2933 = vpop.f32.mrf.mxu0
        %v2934 = vadd.f32 0.0, %v2933
        %2935 = vmatmul.bf16.gmra.mxu0 %v2795
        %v2936 = vpop.f32.mrf.mxu0
        %v2937 = vadd.f32 0.0, %v2936
        %v2938 = vpop.f32.mrf.mxu0
        %v2939 = vadd.f32 0.0, %v2938
        %2940 = vmatmul.bf16.gmra.mxu0 %v2798
        %v2941 = vpop.f32.mrf.mxu0
        %v2942 = vadd.f32 0.0, %v2941
        %v2943 = vpop.f32.mrf.mxu0
        %v2944 = vadd.f32 0.0, %v2943
        %2945 = vdwg.mxu0
        %v2946 = vunpack.c.l.bf16 %v2560
        %v2947 = vunpack.c.l.bf16 %v2561
        %v2948 = vunpack.c.l.bf16 %v2562
        %v2949 = vunpack.c.l.bf16 %v2563
        %v2950 = vunpack.c.l.bf16 %v2564
        %v2951 = vunpack.c.l.bf16 %v2565
        %v2952 = vunpack.c.l.bf16 %v2566
        %v2953 = vunpack.c.l.bf16 %v2567
        %v2954 = vunpack.c.l.bf16 %v2568
        %v2955 = vunpack.c.l.bf16 %v2569
        %v2956 = vunpack.c.l.bf16 %v2570
        %v2957 = vunpack.c.l.bf16 %v2571
        %v2958 = vunpack.c.l.bf16 %v2572
        %v2959 = vunpack.c.l.bf16 %v2573
        %v2960 = vunpack.c.l.bf16 %v2574
        %v2961 = vunpack.c.l.bf16 %v2575
        %v2962 = vmul.f32 %v2946, %v2946
        %v2963 = vmul.f32 %v2947, %v2947
        %v2964 = vmul.f32 %v2948, %v2948
        %v2965 = vmul.f32 %v2949, %v2949
        %v2966 = vmul.f32 %v2950, %v2950
        %v2967 = vmul.f32 %v2951, %v2951
        %v2968 = vmul.f32 %v2952, %v2952
        %v2969 = vmul.f32 %v2953, %v2953
        %v2970 = vmul.f32 %v2954, %v2954
        %v2971 = vmul.f32 %v2955, %v2955
        %v2972 = vmul.f32 %v2956, %v2956
        %v2973 = vmul.f32 %v2957, %v2957
        %v2974 = vmul.f32 %v2958, %v2958
        %v2975 = vmul.f32 %v2959, %v2959
        %v2976 = vmul.f32 %v2960, %v2960
        %v2977 = vmul.f32 %v2961, %v2961
        %2994 = vrot.lane.b32.xlu0 %v2962, 120
        %v2995 = vpop.permute.xlu0 %2994
        %2996 = vrot.lane.b32.xlu0 %v2963, 120
        %v2997 = vpop.permute.xlu0 %2996
        %2998 = vrot.lane.b32.xlu0 %v2964, 120
        %v2999 = vpop.permute.xlu0 %2998
        %3000 = vrot.lane.b32.xlu0 %v2965, 120
        %v3001 = vpop.permute.xlu0 %3000
        %3002 = vrot.lane.b32.xlu0 %v2966, 120
        %v3003 = vpop.permute.xlu0 %3002
        %3004 = vrot.lane.b32.xlu0 %v2967, 120
        %v3005 = vpop.permute.xlu0 %3004
        %3006 = vrot.lane.b32.xlu0 %v2968, 120
        %v3007 = vpop.permute.xlu0 %3006
        %3008 = vrot.lane.b32.xlu0 %v2969, 120
        %v3009 = vpop.permute.xlu0 %3008
        %3010 = vrot.lane.b32.xlu0 %v2970, 120
        %v3011 = vpop.permute.xlu0 %3010
        %3012 = vrot.lane.b32.xlu0 %v2971, 120
        %v3013 = vpop.permute.xlu0 %3012
        %3014 = vrot.lane.b32.xlu0 %v2972, 120
        %v3015 = vpop.permute.xlu0 %3014
        %3016 = vrot.lane.b32.xlu0 %v2973, 120
        %v3017 = vpop.permute.xlu0 %3016
        %3018 = vrot.lane.b32.xlu0 %v2974, 120
        %v3019 = vpop.permute.xlu0 %3018
        %3020 = vrot.lane.b32.xlu0 %v2975, 120
        %v3021 = vpop.permute.xlu0 %3020
        %3022 = vrot.lane.b32.xlu0 %v2976, 120
        %v3023 = vpop.permute.xlu0 %3022
        %3024 = vrot.lane.b32.xlu0 %v2977, 120
        %v3025 = vpop.permute.xlu0 %3024
        %v3042 = vsel %vm1609, %v2995, 0.0
        %3043 = vadd.xlane.f32.xlu0 %v3042
        %v3044 = vpop.xlane.xlu0 %3043
        %v3045 = vsel %vm1609, %v2997, 0.0
        %3046 = vadd.xlane.f32.xlu0 %v3045
        %v3047 = vpop.xlane.xlu0 %3046
        %v3048 = vsel %vm1609, %v2999, 0.0
        %3049 = vadd.xlane.f32.xlu0 %v3048
        %v3050 = vpop.xlane.xlu0 %3049
        %v3051 = vsel %vm1609, %v3001, 0.0
        %3052 = vadd.xlane.f32.xlu0 %v3051
        %v3053 = vpop.xlane.xlu0 %3052
        %v3054 = vsel %vm1609, %v3003, 0.0
        %3055 = vadd.xlane.f32.xlu0 %v3054
        %v3056 = vpop.xlane.xlu0 %3055
        %v3057 = vsel %vm1609, %v3005, 0.0
        %3058 = vadd.xlane.f32.xlu0 %v3057
        %v3059 = vpop.xlane.xlu0 %3058
        %v3060 = vsel %vm1609, %v3007, 0.0
        %3061 = vadd.xlane.f32.xlu0 %v3060
        %v3062 = vpop.xlane.xlu0 %3061
        %v3063 = vsel %vm1609, %v3009, 0.0
        %3064 = vadd.xlane.f32.xlu0 %v3063
        %v3065 = vpop.xlane.xlu0 %3064
        %v3066 = vsel %vm1609, %v3011, 0.0
        %3067 = vadd.xlane.f32.xlu0 %v3066
        %v3068 = vpop.xlane.xlu0 %3067
        %v3069 = vsel %vm1609, %v3013, 0.0
        %3070 = vadd.xlane.f32.xlu0 %v3069
        %v3071 = vpop.xlane.xlu0 %3070
        %v3072 = vsel %vm1609, %v3015, 0.0
        %3073 = vadd.xlane.f32.xlu0 %v3072
        %v3074 = vpop.xlane.xlu0 %3073
        %v3075 = vsel %vm1609, %v3017, 0.0
        %3076 = vadd.xlane.f32.xlu0 %v3075
        %v3077 = vpop.xlane.xlu0 %3076
        %v3078 = vsel %vm1609, %v3019, 0.0
        %3079 = vadd.xlane.f32.xlu0 %v3078
        %v3080 = vpop.xlane.xlu0 %3079
        %v3081 = vsel %vm1609, %v3021, 0.0
        %3082 = vadd.xlane.f32.xlu0 %v3081
        %v3083 = vpop.xlane.xlu0 %3082
        %v3084 = vsel %vm1609, %v3023, 0.0
        %3085 = vadd.xlane.f32.xlu0 %v3084
        %v3086 = vpop.xlane.xlu0 %3085
        %v3087 = vsel %vm1609, %v3025, 0.0
        %3088 = vadd.xlane.f32.xlu0 %v3087
        %v3089 = vpop.xlane.xlu0 %3088
        %v3090 = vadd.f32 %v3044, 0.0001
        %v3091 = vadd.f32 %v3047, 0.0001
        %v3092 = vadd.f32 %v3050, 0.0001
        %v3093 = vadd.f32 %v3053, 0.0001
        %v3094 = vadd.f32 %v3056, 0.0001
        %v3095 = vadd.f32 %v3059, 0.0001
        %v3096 = vadd.f32 %v3062, 0.0001
        %v3097 = vadd.f32 %v3065, 0.0001
        %v3098 = vadd.f32 %v3068, 0.0001
        %v3099 = vadd.f32 %v3071, 0.0001
        %v3100 = vadd.f32 %v3074, 0.0001
        %v3101 = vadd.f32 %v3077, 0.0001
        %v3102 = vadd.f32 %v3080, 0.0001
        %v3103 = vadd.f32 %v3083, 0.0001
        %v3104 = vadd.f32 %v3086, 0.0001
        %v3105 = vadd.f32 %v3089, 0.0001
        %v3106 = vrsqrt.pop %v3090
        %v3107 = vmul.f32 %v3106, %v3090
        %v3108 = vmul.f32 %v3107, %v3106
        %v3109 = vmul.f32 0.5, %v3108
        %v3110 = vsub.f32 1.5, %v3109
        %v3111 = vmul.f32 %v3106, %v3110
        %vm3112 = vweird.f32 %v3090
        %vm3113 = vweird.f32 %v3106
        %vm3114 = vmor %vm3112, %vm3113
        %v3115 = vsel %vm3114, %v3106, %v3111
        %v3116 = vrsqrt.pop %v3091
        %v3117 = vmul.f32 %v3116, %v3091
        %v3118 = vmul.f32 %v3117, %v3116
        %v3119 = vmul.f32 0.5, %v3118
        %v3120 = vsub.f32 1.5, %v3119
        %v3121 = vmul.f32 %v3116, %v3120
        %vm3122 = vweird.f32 %v3091
        %vm3123 = vweird.f32 %v3116
        %vm3124 = vmor %vm3122, %vm3123
        %v3125 = vsel %vm3124, %v3116, %v3121
        %v3126 = vrsqrt.pop %v3092
        %v3127 = vmul.f32 %v3126, %v3092
        %v3128 = vmul.f32 %v3127, %v3126
        %v3129 = vmul.f32 0.5, %v3128
        %v3130 = vsub.f32 1.5, %v3129
        %v3131 = vmul.f32 %v3126, %v3130
        %vm3132 = vweird.f32 %v3092
        %vm3133 = vweird.f32 %v3126
        %vm3134 = vmor %vm3132, %vm3133
        %v3135 = vsel %vm3134, %v3126, %v3131
        %v3136 = vrsqrt.pop %v3093
        %v3137 = vmul.f32 %v3136, %v3093
        %v3138 = vmul.f32 %v3137, %v3136
        %v3139 = vmul.f32 0.5, %v3138
        %v3140 = vsub.f32 1.5, %v3139
        %v3141 = vmul.f32 %v3136, %v3140
        %vm3142 = vweird.f32 %v3093
        %vm3143 = vweird.f32 %v3136
        %vm3144 = vmor %vm3142, %vm3143
        %v3145 = vsel %vm3144, %v3136, %v3141
        %v3146 = vrsqrt.pop %v3094
        %v3147 = vmul.f32 %v3146, %v3094
        %v3148 = vmul.f32 %v3147, %v3146
        %v3149 = vmul.f32 0.5, %v3148
        %v3150 = vsub.f32 1.5, %v3149
        %v3151 = vmul.f32 %v3146, %v3150
        %vm3152 = vweird.f32 %v3094
        %vm3153 = vweird.f32 %v3146
        %vm3154 = vmor %vm3152, %vm3153
        %v3155 = vsel %vm3154, %v3146, %v3151
        %v3156 = vrsqrt.pop %v3095
        %v3157 = vmul.f32 %v3156, %v3095
        %v3158 = vmul.f32 %v3157, %v3156
        %v3159 = vmul.f32 0.5, %v3158
        %v3160 = vsub.f32 1.5, %v3159
        %v3161 = vmul.f32 %v3156, %v3160
        %vm3162 = vweird.f32 %v3095
        %vm3163 = vweird.f32 %v3156
        %vm3164 = vmor %vm3162, %vm3163
        %v3165 = vsel %vm3164, %v3156, %v3161
        %v3166 = vrsqrt.pop %v3096
        %v3167 = vmul.f32 %v3166, %v3096
        %v3168 = vmul.f32 %v3167, %v3166
        %v3169 = vmul.f32 0.5, %v3168
        %v3170 = vsub.f32 1.5, %v3169
        %v3171 = vmul.f32 %v3166, %v3170
        %vm3172 = vweird.f32 %v3096
        %vm3173 = vweird.f32 %v3166
        %vm3174 = vmor %vm3172, %vm3173
        %v3175 = vsel %vm3174, %v3166, %v3171
        %v3176 = vrsqrt.pop %v3097
        %v3177 = vmul.f32 %v3176, %v3097
        %v3178 = vmul.f32 %v3177, %v3176
        %v3179 = vmul.f32 0.5, %v3178
        %v3180 = vsub.f32 1.5, %v3179
        %v3181 = vmul.f32 %v3176, %v3180
        %vm3182 = vweird.f32 %v3097
        %vm3183 = vweird.f32 %v3176
        %vm3184 = vmor %vm3182, %vm3183
        %v3185 = vsel %vm3184, %v3176, %v3181
        %v3186 = vrsqrt.pop %v3098
        %v3187 = vmul.f32 %v3186, %v3098
        %v3188 = vmul.f32 %v3187, %v3186
        %v3189 = vmul.f32 0.5, %v3188
        %v3190 = vsub.f32 1.5, %v3189
        %v3191 = vmul.f32 %v3186, %v3190
        %vm3192 = vweird.f32 %v3098
        %vm3193 = vweird.f32 %v3186
        %vm3194 = vmor %vm3192, %vm3193
        %v3195 = vsel %vm3194, %v3186, %v3191
        %v3196 = vrsqrt.pop %v3099
        %v3197 = vmul.f32 %v3196, %v3099
        %v3198 = vmul.f32 %v3197, %v3196
        %v3199 = vmul.f32 0.5, %v3198
        %v3200 = vsub.f32 1.5, %v3199
        %v3201 = vmul.f32 %v3196, %v3200
        %vm3202 = vweird.f32 %v3099
        %vm3203 = vweird.f32 %v3196
        %vm3204 = vmor %vm3202, %vm3203
        %v3205 = vsel %vm3204, %v3196, %v3201
        %v3206 = vrsqrt.pop %v3100
        %v3207 = vmul.f32 %v3206, %v3100
        %v3208 = vmul.f32 %v3207, %v3206
        %v3209 = vmul.f32 0.5, %v3208
        %v3210 = vsub.f32 1.5, %v3209
        %v3211 = vmul.f32 %v3206, %v3210
        %vm3212 = vweird.f32 %v3100
        %vm3213 = vweird.f32 %v3206
        %vm3214 = vmor %vm3212, %vm3213
        %v3215 = vsel %vm3214, %v3206, %v3211
        %v3216 = vrsqrt.pop %v3101
        %v3217 = vmul.f32 %v3216, %v3101
        %v3218 = vmul.f32 %v3217, %v3216
        %v3219 = vmul.f32 0.5, %v3218
        %v3220 = vsub.f32 1.5, %v3219
        %v3221 = vmul.f32 %v3216, %v3220
        %vm3222 = vweird.f32 %v3101
        %vm3223 = vweird.f32 %v3216
        %vm3224 = vmor %vm3222, %vm3223
        %v3225 = vsel %vm3224, %v3216, %v3221
        %v3226 = vrsqrt.pop %v3102
        %v3227 = vmul.f32 %v3226, %v3102
        %v3228 = vmul.f32 %v3227, %v3226
        %v3229 = vmul.f32 0.5, %v3228
        %v3230 = vsub.f32 1.5, %v3229
        %v3231 = vmul.f32 %v3226, %v3230
        %vm3232 = vweird.f32 %v3102
        %vm3233 = vweird.f32 %v3226
        %vm3234 = vmor %vm3232, %vm3233
        %v3235 = vsel %vm3234, %v3226, %v3231
        %v3236 = vrsqrt.pop %v3103
        %v3237 = vmul.f32 %v3236, %v3103
        %v3238 = vmul.f32 %v3237, %v3236
        %v3239 = vmul.f32 0.5, %v3238
        %v3240 = vsub.f32 1.5, %v3239
        %v3241 = vmul.f32 %v3236, %v3240
        %vm3242 = vweird.f32 %v3103
        %vm3243 = vweird.f32 %v3236
        %vm3244 = vmor %vm3242, %vm3243
        %v3245 = vsel %vm3244, %v3236, %v3241
        %v3246 = vrsqrt.pop %v3104
        %v3247 = vmul.f32 %v3246, %v3104
        %v3248 = vmul.f32 %v3247, %v3246
        %v3249 = vmul.f32 0.5, %v3248
        %v3250 = vsub.f32 1.5, %v3249
        %v3251 = vmul.f32 %v3246, %v3250
        %vm3252 = vweird.f32 %v3104
        %vm3253 = vweird.f32 %v3246
        %vm3254 = vmor %vm3252, %vm3253
        %v3255 = vsel %vm3254, %v3246, %v3251
        %v3256 = vrsqrt.pop %v3105
        %v3257 = vmul.f32 %v3256, %v3105
        %v3258 = vmul.f32 %v3257, %v3256
        %v3259 = vmul.f32 0.5, %v3258
        %v3260 = vsub.f32 1.5, %v3259
        %v3261 = vmul.f32 %v3256, %v3260
        %vm3262 = vweird.f32 %v3105
        %vm3263 = vweird.f32 %v3256
        %vm3264 = vmor %vm3262, %vm3263
        %v3265 = vsel %vm3264, %v3256, %v3261
        %s3266 = scalar_lea.vmem [#allocation2], 2
        %v3267 = vld [vmem:[%s3266] sm:$0x3]
        %v3269 = vperm.slane %v3267, 0
        %v3270 = vperm.slane %v3267, 1
        %v3273 = vmul.f32 %v3115, %v3269
        %v3274 = vmul.f32 %v3115, %v3270
        %v3275 = vmul.f32 %v3125, %v3269
        %v3276 = vmul.f32 %v3125, %v3270
        %v3277 = vmul.f32 %v3135, %v3269
        %v3278 = vmul.f32 %v3135, %v3270
        %v3279 = vmul.f32 %v3145, %v3269
        %v3280 = vmul.f32 %v3145, %v3270
        %v3281 = vmul.f32 %v3155, %v3269
        %v3282 = vmul.f32 %v3155, %v3270
        %v3283 = vmul.f32 %v3165, %v3269
        %v3284 = vmul.f32 %v3165, %v3270
        %v3285 = vmul.f32 %v3175, %v3269
        %v3286 = vmul.f32 %v3175, %v3270
        %v3287 = vmul.f32 %v3185, %v3269
        %v3288 = vmul.f32 %v3185, %v3270
        %v3289 = vmul.f32 %v3195, %v3269
        %v3290 = vmul.f32 %v3195, %v3270
        %v3291 = vmul.f32 %v3205, %v3269
        %v3292 = vmul.f32 %v3205, %v3270
        %v3293 = vmul.f32 %v3215, %v3269
        %v3294 = vmul.f32 %v3215, %v3270
        %v3295 = vmul.f32 %v3225, %v3269
        %v3296 = vmul.f32 %v3225, %v3270
        %v3297 = vmul.f32 %v3235, %v3269
        %v3298 = vmul.f32 %v3235, %v3270
        %v3299 = vmul.f32 %v3245, %v3269
        %v3300 = vmul.f32 %v3245, %v3270
        %v3301 = vmul.f32 %v3255, %v3269
        %v3302 = vmul.f32 %v3255, %v3270
        %v3303 = vmul.f32 %v3265, %v3269
        %v3304 = vmul.f32 %v3265, %v3270
        %s3305 = sld [smem:[#allocation3 + $0x1]]
        %s3306 = ssub.f32 0.0, %s3305
        %v3307 = vstv %s3306
        %v3308 = vmul.f32 %v3307, %v1372
        %v3309 = vmul.f32 %v3307, %v1373
        %v3310 = vmul.f32 %v3307, %v1374
        %v3311 = vmul.f32 %v3307, %v1375
        %v3312 = vmul.f32 %v3307, %v1376
        %v3313 = vmul.f32 %v3307, %v1377
        %v3314 = vmul.f32 %v3307, %v1378
        %v3315 = vmul.f32 %v3307, %v1379
        %v3316 = vmul.f32 %v3307, %v1380
        %v3317 = vmul.f32 %v3307, %v1381
        %v3318 = vmul.f32 %v3307, %v1382
        %v3319 = vmul.f32 %v3307, %v1383
        %v3320 = vmul.f32 %v3307, %v1384
        %v3321 = vmul.f32 %v3307, %v1385
        %v3322 = vmul.f32 %v3307, %v1386
        %v3323 = vmul.f32 %v3307, %v1387
        %v3324 = vmul.f32 %v3307, %v1388
        %v3325 = vmul.f32 %v3307, %v1389
        %v3326 = vmul.f32 %v3307, %v1390
        %v3327 = vmul.f32 %v3307, %v1391
        %v3328 = vmul.f32 %v3307, %v1392
        %v3329 = vmul.f32 %v3307, %v1393
        %v3330 = vmul.f32 %v3307, %v1394
        %v3331 = vmul.f32 %v3307, %v1395
        %v3332 = vmul.f32 %v3307, %v1396
        %v3333 = vmul.f32 %v3307, %v1397
        %v3334 = vmul.f32 %v3307, %v1398
        %v3335 = vmul.f32 %v3307, %v1399
        %v3336 = vmul.f32 %v3307, %v1400
        %v3337 = vmul.f32 %v3307, %v1401
        %v3338 = vmul.f32 %v3307, %v1402
        %v3339 = vmul.f32 %v3307, %v1403
        %v3340 = vmul.f32 %v3308, 1.442695
        %v3341 = vpow.pop %v3340
        %v3342 = vmul.f32 %v3309, 1.442695
        %v3343 = vpow.pop %v3342
        %v3344 = vmul.f32 %v3310, 1.442695
        %v3345 = vpow.pop %v3344
        %v3346 = vmul.f32 %v3311, 1.442695
        %v3347 = vpow.pop %v3346
        %v3348 = vmul.f32 %v3312, 1.442695
        %v3349 = vpow.pop %v3348
        %v3350 = vmul.f32 %v3313, 1.442695
        %v3351 = vpow.pop %v3350
        %v3352 = vmul.f32 %v3314, 1.442695
        %v3353 = vpow.pop %v3352
        %v3354 = vmul.f32 %v3315, 1.442695
        %v3355 = vpow.pop %v3354
        %v3356 = vmul.f32 %v3316, 1.442695
        %v3357 = vpow.pop %v3356
        %v3358 = vmul.f32 %v3317, 1.442695
        %v3359 = vpow.pop %v3358
        %v3360 = vmul.f32 %v3318, 1.442695
        %v3361 = vpow.pop %v3360
        %v3362 = vmul.f32 %v3319, 1.442695
        %v3363 = vpow.pop %v3362
        %v3364 = vmul.f32 %v3320, 1.442695
        %v3365 = vpow.pop %v3364
        %v3366 = vmul.f32 %v3321, 1.442695
        %v3367 = vpow.pop %v3366
        %v3368 = vmul.f32 %v3322, 1.442695
        %v3369 = vpow.pop %v3368
        %v3370 = vmul.f32 %v3323, 1.442695
        %v3371 = vpow.pop %v3370
        %v3372 = vmul.f32 %v3324, 1.442695
        %v3373 = vpow.pop %v3372
        %v3374 = vmul.f32 %v3325, 1.442695
        %v3375 = vpow.pop %v3374
        %v3376 = vmul.f32 %v3326, 1.442695
        %v3377 = vpow.pop %v3376
        %v3378 = vmul.f32 %v3327, 1.442695
        %v3379 = vpow.pop %v3378
        %v3380 = vmul.f32 %v3328, 1.442695
        %v3381 = vpow.pop %v3380
        %v3382 = vmul.f32 %v3329, 1.442695
        %v3383 = vpow.pop %v3382
        %v3384 = vmul.f32 %v3330, 1.442695
        %v3385 = vpow.pop %v3384
        %v3386 = vmul.f32 %v3331, 1.442695
        %v3387 = vpow.pop %v3386
        %v3388 = vmul.f32 %v3332, 1.442695
        %v3389 = vpow.pop %v3388
        %v3390 = vmul.f32 %v3333, 1.442695
        %v3391 = vpow.pop %v3390
        %v3392 = vmul.f32 %v3334, 1.442695
        %v3393 = vpow.pop %v3392
        %v3394 = vmul.f32 %v3335, 1.442695
        %v3395 = vpow.pop %v3394
        %v3396 = vmul.f32 %v3336, 1.442695
        %v3397 = vpow.pop %v3396
        %v3398 = vmul.f32 %v3337, 1.442695
        %v3399 = vpow.pop %v3398
        %v3400 = vmul.f32 %v3338, 1.442695
        %v3401 = vpow.pop %v3400
        %v3402 = vmul.f32 %v3339, 1.442695
        %v3403 = vpow.pop %v3402
        %v3404 = vld [vmem:[%s365] sm:$0xff]
        %v3405 = vld [vmem:[%s365 + $0x8] sm:$0xff]
        %v3406 = vld [vmem:[%s365 + $0x10] sm:$0xff]
        %v3407 = vld [vmem:[%s365 + $0x18] sm:$0xff]
        %v3408 = vld [vmem:[%s365 + $0x20] sm:$0xff]
        %v3409 = vld [vmem:[%s365 + $0x28] sm:$0xff]
        %v3410 = vld [vmem:[%s365 + $0x30] sm:$0xff]
        %v3411 = vld [vmem:[%s365 + $0x38] sm:$0xff]
        %v3412 = vld [vmem:[%s365 + $0x40] sm:$0xff]
        %v3413 = vld [vmem:[%s365 + $0x48] sm:$0xff]
        %v3414 = vld [vmem:[%s365 + $0x50] sm:$0xff]
        %v3415 = vld [vmem:[%s365 + $0x58] sm:$0xff]
        %v3416 = vld [vmem:[%s365 + $0x60] sm:$0xff]
        %v3417 = vld [vmem:[%s365 + $0x68] sm:$0xff]
        %v3418 = vld [vmem:[%s365 + $0x70] sm:$0xff]
        %v3419 = vld [vmem:[%s365 + $0x78] sm:$0xff]
        %3421 = vset.pattern.permute.xlu0 1
        %3422 = vperm.xlu0 %3421, %v3404
        %v3423 = vpop.permute.xlu0 %3422
        %3426 = vset.pattern.permute.xlu0 1
        %3427 = vperm.xlu0 %3426, %v3405
        %v3428 = vpop.permute.xlu0 %3427
        %3431 = vset.pattern.permute.xlu0 1
        %3432 = vperm.xlu0 %3431, %v3406
        %v3433 = vpop.permute.xlu0 %3432
        %3436 = vset.pattern.permute.xlu0 1
        %3437 = vperm.xlu0 %3436, %v3407
        %v3438 = vpop.permute.xlu0 %3437
        %3441 = vset.pattern.permute.xlu0 1
        %3442 = vperm.xlu0 %3441, %v3408
        %v3443 = vpop.permute.xlu0 %3442
        %3446 = vset.pattern.permute.xlu0 1
        %3447 = vperm.xlu0 %3446, %v3409
        %v3448 = vpop.permute.xlu0 %3447
        %3451 = vset.pattern.permute.xlu0 1
        %3452 = vperm.xlu0 %3451, %v3410
        %v3453 = vpop.permute.xlu0 %3452
        %3456 = vset.pattern.permute.xlu0 1
        %3457 = vperm.xlu0 %3456, %v3411
        %v3458 = vpop.permute.xlu0 %3457
        %3461 = vset.pattern.permute.xlu0 1
        %3462 = vperm.xlu0 %3461, %v3412
        %v3463 = vpop.permute.xlu0 %3462
        %3466 = vset.pattern.permute.xlu0 1
        %3467 = vperm.xlu0 %3466, %v3413
        %v3468 = vpop.permute.xlu0 %3467
        %3471 = vset.pattern.permute.xlu0 1
        %3472 = vperm.xlu0 %3471, %v3414
        %v3473 = vpop.permute.xlu0 %3472
        %3476 = vset.pattern.permute.xlu0 1
        %3477 = vperm.xlu0 %3476, %v3415
        %v3478 = vpop.permute.xlu0 %3477
        %3481 = vset.pattern.permute.xlu0 1
        %3482 = vperm.xlu0 %3481, %v3416
        %v3483 = vpop.permute.xlu0 %3482
        %3486 = vset.pattern.permute.xlu0 1
        %3487 = vperm.xlu0 %3486, %v3417
        %v3488 = vpop.permute.xlu0 %3487
        %3491 = vset.pattern.permute.xlu0 1
        %3492 = vperm.xlu0 %3491, %v3418
        %v3493 = vpop.permute.xlu0 %3492
        %3496 = vset.pattern.permute.xlu0 1
        %3497 = vperm.xlu0 %3496, %v3419
        %v3498 = vpop.permute.xlu0 %3497
        %v3500 = vmul.f32 %v3341, %v3423
        %v3501 = vmul.f32 %v3343, %v3423
        %v3502 = vmul.f32 %v3345, %v3428
        %v3503 = vmul.f32 %v3347, %v3428
        %v3504 = vmul.f32 %v3349, %v3433
        %v3505 = vmul.f32 %v3351, %v3433
        %v3506 = vmul.f32 %v3353, %v3438
        %v3507 = vmul.f32 %v3355, %v3438
        %v3508 = vmul.f32 %v3357, %v3443
        %v3509 = vmul.f32 %v3359, %v3443
        %v3510 = vmul.f32 %v3361, %v3448
        %v3511 = vmul.f32 %v3363, %v3448
        %v3512 = vmul.f32 %v3365, %v3453
        %v3513 = vmul.f32 %v3367, %v3453
        %v3514 = vmul.f32 %v3369, %v3458
        %v3515 = vmul.f32 %v3371, %v3458
        %v3516 = vmul.f32 %v3373, %v3463
        %v3517 = vmul.f32 %v3375, %v3463
        %v3518 = vmul.f32 %v3377, %v3468
        %v3519 = vmul.f32 %v3379, %v3468
        %v3520 = vmul.f32 %v3381, %v3473
        %v3521 = vmul.f32 %v3383, %v3473
        %v3522 = vmul.f32 %v3385, %v3478
        %v3523 = vmul.f32 %v3387, %v3478
        %v3524 = vmul.f32 %v3389, %v3483
        %v3525 = vmul.f32 %v3391, %v3483
        %v3526 = vmul.f32 %v3393, %v3488
        %v3527 = vmul.f32 %v3395, %v3488
        %v3528 = vmul.f32 %v3397, %v3493
        %v3529 = vmul.f32 %v3399, %v3493
        %v3530 = vmul.f32 %v3401, %v3498
        %v3531 = vmul.f32 %v3403, %v3498
        %v3532 = vmul.f32 %v2858, %v3273
        %v3533 = vmul.f32 %v2907, %v3274
        %v3534 = vmul.f32 %v2860, %v3275
        %v3535 = vmul.f32 %v2909, %v3276
        %v3536 = vmul.f32 %v2863, %v3277
        %v3537 = vmul.f32 %v2912, %v3278
        %v3538 = vmul.f32 %v2865, %v3279
        %v3539 = vmul.f32 %v2914, %v3280
        %v3540 = vmul.f32 %v2868, %v3281
        %v3541 = vmul.f32 %v2917, %v3282
        %v3542 = vmul.f32 %v2870, %v3283
        %v3543 = vmul.f32 %v2919, %v3284
        %v3544 = vmul.f32 %v2873, %v3285
        %v3545 = vmul.f32 %v2922, %v3286
        %v3546 = vmul.f32 %v2875, %v3287
        %v3547 = vmul.f32 %v2924, %v3288
        %v3548 = vmul.f32 %v2878, %v3289
        %v3549 = vmul.f32 %v2927, %v3290
        %v3550 = vmul.f32 %v2880, %v3291
        %v3551 = vmul.f32 %v2929, %v3292
        %v3552 = vmul.f32 %v2883, %v3293
        %v3553 = vmul.f32 %v2932, %v3294
        %v3554 = vmul.f32 %v2885, %v3295
        %v3555 = vmul.f32 %v2934, %v3296
        %v3556 = vmul.f32 %v2888, %v3297
        %v3557 = vmul.f32 %v2937, %v3298
        %v3558 = vmul.f32 %v2890, %v3299
        %v3559 = vmul.f32 %v2939, %v3300
        %v3560 = vmul.f32 %v2893, %v3301
        %v3561 = vmul.f32 %v2942, %v3302
        %v3562 = vmul.f32 %v2895, %v3303
        %v3563 = vmul.f32 %v2944, %v3304
        %v3564 = vmul.f32 %v3532, %v3500
        %v3565 = vmul.f32 %v3533, %v3501
        %v3566 = vmul.f32 %v3534, %v3502
        %v3567 = vmul.f32 %v3535, %v3503
        %v3568 = vmul.f32 %v3536, %v3504
        %v3569 = vmul.f32 %v3537, %v3505
        %v3570 = vmul.f32 %v3538, %v3506
        %v3571 = vmul.f32 %v3539, %v3507
        %v3572 = vmul.f32 %v3540, %v3508
        %v3573 = vmul.f32 %v3541, %v3509
        %v3574 = vmul.f32 %v3542, %v3510
        %v3575 = vmul.f32 %v3543, %v3511
        %v3576 = vmul.f32 %v3544, %v3512
        %v3577 = vmul.f32 %v3545, %v3513
        %v3578 = vmul.f32 %v3546, %v3514
        %v3579 = vmul.f32 %v3547, %v3515
        %v3580 = vmul.f32 %v3548, %v3516
        %v3581 = vmul.f32 %v3549, %v3517
        %v3582 = vmul.f32 %v3550, %v3518
        %v3583 = vmul.f32 %v3551, %v3519
        %v3584 = vmul.f32 %v3552, %v3520
        %v3585 = vmul.f32 %v3553, %v3521
        %v3586 = vmul.f32 %v3554, %v3522
        %v3587 = vmul.f32 %v3555, %v3523
        %v3588 = vmul.f32 %v3556, %v3524
        %v3589 = vmul.f32 %v3557, %v3525
        %v3590 = vmul.f32 %v3558, %v3526
        %v3591 = vmul.f32 %v3559, %v3527
        %v3592 = vmul.f32 %v3560, %v3528
        %v3593 = vmul.f32 %v3561, %v3529
        %v3594 = vmul.f32 %v3562, %v3530
        %v3595 = vmul.f32 %v3563, %v3531
        %v3596 = vpack.c.bf16 %v3566, %v3564
        %v3597 = vpack.c.bf16 %v3567, %v3565
        %v3598 = vpack.c.bf16 %v3570, %v3568
        %v3599 = vpack.c.bf16 %v3571, %v3569
        %v3600 = vpack.c.bf16 %v3574, %v3572
        %v3601 = vpack.c.bf16 %v3575, %v3573
        %v3602 = vpack.c.bf16 %v3578, %v3576
        %v3603 = vpack.c.bf16 %v3579, %v3577
        %v3604 = vpack.c.bf16 %v3582, %v3580
        %v3605 = vpack.c.bf16 %v3583, %v3581
        %v3606 = vpack.c.bf16 %v3586, %v3584
        %v3607 = vpack.c.bf16 %v3587, %v3585
        %v3608 = vpack.c.bf16 %v3590, %v3588
        %v3609 = vpack.c.bf16 %v3591, %v3589
        %v3610 = vpack.c.bf16 %v3594, %v3592
        %v3611 = vpack.c.bf16 %v3595, %v3593
        %3612 = vrot.lane.b32.xlu0 %v2728, 88
        %v3613 = vpop.permute.xlu0 %3612
        %3614 = vrot.lane.b32.xlu0 %v2729, 88
        %v3615 = vpop.permute.xlu0 %3614
        %3616 = vrot.lane.b32.xlu0 %v2730, 88
        %v3617 = vpop.permute.xlu0 %3616
        %3618 = vrot.lane.b32.xlu0 %v2731, 88
        %v3619 = vpop.permute.xlu0 %3618
        %3620 = vrot.lane.b32.xlu0 %v2732, 88
        %v3621 = vpop.permute.xlu0 %3620
        %3622 = vrot.lane.b32.xlu0 %v2733, 88
        %v3623 = vpop.permute.xlu0 %3622
        %3624 = vrot.lane.b32.xlu0 %v2734, 88
        %v3625 = vpop.permute.xlu0 %3624
        %3626 = vrot.lane.b32.xlu0 %v2735, 88
        %v3627 = vpop.permute.xlu0 %3626
        %3628 = vrot.lane.b32.xlu0 %v2736, 88
        %v3629 = vpop.permute.xlu0 %3628
        %3630 = vrot.lane.b32.xlu0 %v2737, 88
        %v3631 = vpop.permute.xlu0 %3630
        %3632 = vrot.lane.b32.xlu0 %v2738, 88
        %v3633 = vpop.permute.xlu0 %3632
        %3634 = vrot.lane.b32.xlu0 %v2739, 88
        %v3635 = vpop.permute.xlu0 %3634
        %3636 = vrot.lane.b32.xlu0 %v2740, 88
        %v3637 = vpop.permute.xlu0 %3636
        %3638 = vrot.lane.b32.xlu0 %v2741, 88
        %v3639 = vpop.permute.xlu0 %3638
        %3640 = vrot.lane.b32.xlu0 %v2742, 88
        %v3641 = vpop.permute.xlu0 %3640
        %3642 = vrot.lane.b32.xlu0 %v2743, 88
        %v3643 = vpop.permute.xlu0 %3642
        %3660 = vmatpush.bf16.msra.mxu0 %v3627
        %3661 = vmatpush.bf16.msra.mxu0 %v3625
        %3662 = vmatpush.bf16.msra.mxu0 %v3623
        %3663 = vmatpush.bf16.msra.mxu0 %v3621
        %3664 = vmatpush.bf16.msra.mxu0 %v3619
        %3665 = vmatpush.bf16.msra.mxu0 %v3617
        %3666 = vmatpush.bf16.msra.mxu0 %v3615
        %3667 = vmatpush.bf16.msra.mxu0 %v3613
        %3668 = vmatmul.bf16.gmra.mxu0 %v3596
        %v3669 = vpop.f32.mrf.mxu0
        %v3670 = vadd.f32 0.0, %v3669
        %v3671 = vpop.f32.mrf.mxu0
        %v3672 = vadd.f32 0.0, %v3671
        %3673 = vmatmul.bf16.gmra.mxu0 %v3598
        %v3674 = vpop.f32.mrf.mxu0
        %v3675 = vadd.f32 0.0, %v3674
        %v3676 = vpop.f32.mrf.mxu0
        %v3677 = vadd.f32 0.0, %v3676
        %3678 = vmatmul.bf16.gmra.mxu0 %v3600
        %v3679 = vpop.f32.mrf.mxu0
        %v3680 = vadd.f32 0.0, %v3679
        %v3681 = vpop.f32.mrf.mxu0
        %v3682 = vadd.f32 0.0, %v3681
        %3683 = vmatmul.bf16.gmra.mxu0 %v3602
        %v3684 = vpop.f32.mrf.mxu0
        %v3685 = vadd.f32 0.0, %v3684
        %v3686 = vpop.f32.mrf.mxu0
        %v3687 = vadd.f32 0.0, %v3686
        %3688 = vmatmul.bf16.gmra.mxu0 %v3604
        %v3689 = vpop.f32.mrf.mxu0
        %v3690 = vadd.f32 0.0, %v3689
        %v3691 = vpop.f32.mrf.mxu0
        %v3692 = vadd.f32 0.0, %v3691
        %3693 = vmatmul.bf16.gmra.mxu0 %v3606
        %v3694 = vpop.f32.mrf.mxu0
        %v3695 = vadd.f32 0.0, %v3694
        %v3696 = vpop.f32.mrf.mxu0
        %v3697 = vadd.f32 0.0, %v3696
        %3698 = vmatmul.bf16.gmra.mxu0 %v3608
        %v3699 = vpop.f32.mrf.mxu0
        %v3700 = vadd.f32 0.0, %v3699
        %v3701 = vpop.f32.mrf.mxu0
        %v3702 = vadd.f32 0.0, %v3701
        %3703 = vmatmul.bf16.gmra.mxu0 %v3610
        %v3704 = vpop.f32.mrf.mxu0
        %v3705 = vadd.f32 0.0, %v3704
        %v3706 = vpop.f32.mrf.mxu0
        %v3707 = vadd.f32 0.0, %v3706
        %3708 = vdwg.mxu0
        %3709 = vmatpush.bf16.msra.mxu0 %v3643
        %3710 = vmatpush.bf16.msra.mxu0 %v3641
        %3711 = vmatpush.bf16.msra.mxu0 %v3639
        %3712 = vmatpush.bf16.msra.mxu0 %v3637
        %3713 = vmatpush.bf16.msra.mxu0 %v3635
        %3714 = vmatpush.bf16.msra.mxu0 %v3633
        %3715 = vmatpush.bf16.msra.mxu0 %v3631
        %3716 = vmatpush.bf16.msra.mxu0 %v3629
        %3717 = vmatmul.bf16.gmra.mxu0 %v3597
        %v3718 = vpop.f32.mrf.mxu0
        %v3719 = vadd.f32 %v3670, %v3718
        %v3720 = vpop.f32.mrf.mxu0
        %v3721 = vadd.f32 %v3672, %v3720
        %3722 = vmatmul.bf16.gmra.mxu0 %v3599
        %v3723 = vpop.f32.mrf.mxu0
        %v3724 = vadd.f32 %v3675, %v3723
        %v3725 = vpop.f32.mrf.mxu0
        %v3726 = vadd.f32 %v3677, %v3725
        %3727 = vmatmul.bf16.gmra.mxu0 %v3601
        %v3728 = vpop.f32.mrf.mxu0
        %v3729 = vadd.f32 %v3680, %v3728
        %v3730 = vpop.f32.mrf.mxu0
        %v3731 = vadd.f32 %v3682, %v3730
        %3732 = vmatmul.bf16.gmra.mxu0 %v3603
        %v3733 = vpop.f32.mrf.mxu0
        %v3734 = vadd.f32 %v3685, %v3733
        %v3735 = vpop.f32.mrf.mxu0
        %v3736 = vadd.f32 %v3687, %v3735
        %3737 = vmatmul.bf16.gmra.mxu0 %v3605
        %v3738 = vpop.f32.mrf.mxu0
        %v3739 = vadd.f32 %v3690, %v3738
        %v3740 = vpop.f32.mrf.mxu0
        %v3741 = vadd.f32 %v3692, %v3740
        %3742 = vmatmul.bf16.gmra.mxu0 %v3607
        %v3743 = vpop.f32.mrf.mxu0
        %v3744 = vadd.f32 %v3695, %v3743
        %v3745 = vpop.f32.mrf.mxu0
        %v3746 = vadd.f32 %v3697, %v3745
        %3747 = vmatmul.bf16.gmra.mxu0 %v3609
        %v3748 = vpop.f32.mrf.mxu0
        %v3749 = vadd.f32 %v3700, %v3748
        %v3750 = vpop.f32.mrf.mxu0
        %v3751 = vadd.f32 %v3702, %v3750
        %3752 = vmatmul.bf16.gmra.mxu0 %v3611
        %v3753 = vpop.f32.mrf.mxu0
        %v3754 = vadd.f32 %v3705, %v3753
        %v3755 = vpop.f32.mrf.mxu0
        %v3756 = vadd.f32 %v3707, %v3755
        %3757 = vdwg.mxu0
        %v3758 = vpack.c.bf16 %v3719, %v3719
        %v3759 = vpack.c.bf16 %v3721, %v3721
        %v3760 = vpack.c.bf16 %v3724, %v3724
        %v3761 = vpack.c.bf16 %v3726, %v3726
        %v3762 = vpack.c.bf16 %v3729, %v3729
        %v3763 = vpack.c.bf16 %v3731, %v3731
        %v3764 = vpack.c.bf16 %v3734, %v3734
        %v3765 = vpack.c.bf16 %v3736, %v3736
        %v3766 = vpack.c.bf16 %v3739, %v3739
        %v3767 = vpack.c.bf16 %v3741, %v3741
        %v3768 = vpack.c.bf16 %v3744, %v3744
        %v3769 = vpack.c.bf16 %v3746, %v3746
        %v3770 = vpack.c.bf16 %v3749, %v3749
        %v3771 = vpack.c.bf16 %v3751, %v3751
        %v3772 = vpack.c.bf16 %v3754, %v3754
        %v3773 = vpack.c.bf16 %v3756, %v3756
        %3790 = vrot.lane.b32.xlu0 %v3758, 8
        %v3791 = vpop.permute.xlu0 %3790
        %3792 = vrot.lane.b32.xlu0 %v3759, 8
        %v3793 = vpop.permute.xlu0 %3792
        %3794 = vrot.lane.b32.xlu0 %v3760, 8
        %v3795 = vpop.permute.xlu0 %3794
        %3796 = vrot.lane.b32.xlu0 %v3761, 8
        %v3797 = vpop.permute.xlu0 %3796
        %3798 = vrot.lane.b32.xlu0 %v3762, 8
        %v3799 = vpop.permute.xlu0 %3798
        %3800 = vrot.lane.b32.xlu0 %v3763, 8
        %v3801 = vpop.permute.xlu0 %3800
        %3802 = vrot.lane.b32.xlu0 %v3764, 8
        %v3803 = vpop.permute.xlu0 %3802
        %3804 = vrot.lane.b32.xlu0 %v3765, 8
        %v3805 = vpop.permute.xlu0 %3804
        %3806 = vrot.lane.b32.xlu0 %v3766, 8
        %v3807 = vpop.permute.xlu0 %3806
        %3808 = vrot.lane.b32.xlu0 %v3767, 8
        %v3809 = vpop.permute.xlu0 %3808
        %3810 = vrot.lane.b32.xlu0 %v3768, 8
        %v3811 = vpop.permute.xlu0 %3810
        %3812 = vrot.lane.b32.xlu0 %v3769, 8
        %v3813 = vpop.permute.xlu0 %3812
        %3814 = vrot.lane.b32.xlu0 %v3770, 8
        %v3815 = vpop.permute.xlu0 %3814
        %3816 = vrot.lane.b32.xlu0 %v3771, 8
        %v3817 = vpop.permute.xlu0 %3816
        %3818 = vrot.lane.b32.xlu0 %v3772, 8
        %v3819 = vpop.permute.xlu0 %3818
        %3820 = vrot.lane.b32.xlu0 %v3773, 8
        %v3821 = vpop.permute.xlu0 %3820
        %vm3838 = vcmask 126016
        %3839 = vst.msk [vmem:[%s380] sm:$0xf] %vm3838, %v3791
        %3840 = vst.msk [vmem:[%s380 + $0x4] sm:$0xf] %vm3838, %v3793
        %3841 = vst.msk [vmem:[%s380 + $0x8] sm:$0xf] %vm3838, %v3795
        %3842 = vst.msk [vmem:[%s380 + $0xc] sm:$0xf] %vm3838, %v3797
        %3843 = vst.msk [vmem:[%s380 + $0x10] sm:$0xf] %vm3838, %v3799
        %3844 = vst.msk [vmem:[%s380 + $0x14] sm:$0xf] %vm3838, %v3801
        %3845 = vst.msk [vmem:[%s380 + $0x18] sm:$0xf] %vm3838, %v3803
        %3846 = vst.msk [vmem:[%s380 + $0x1c] sm:$0xf] %vm3838, %v3805
        %3847 = vst.msk [vmem:[%s380 + $0x20] sm:$0xf] %vm3838, %v3807
        %3848 = vst.msk [vmem:[%s380 + $0x24] sm:$0xf] %vm3838, %v3809
        %3849 = vst.msk [vmem:[%s380 + $0x28] sm:$0xf] %vm3838, %v3811
        %3850 = vst.msk [vmem:[%s380 + $0x2c] sm:$0xf] %vm3838, %v3813
        %3851 = vst.msk [vmem:[%s380 + $0x30] sm:$0xf] %vm3838, %v3815
        %3852 = vst.msk [vmem:[%s380 + $0x34] sm:$0xf] %vm3838, %v3817
        %3853 = vst.msk [vmem:[%s380 + $0x38] sm:$0xf] %vm3838, %v3819
        %3854 = vst.msk [vmem:[%s380 + $0x3c] sm:$0xf] %vm3838, %v3821
        %s3855 = smul.u32 16, %s24
        %p3856 = scmp.lt.s32.totalorder %s23, 1
        %s3857 = scalar_select %p3856, %s23, 1
        %p3858 = scmp.lt.s32.totalorder %s3855, 31
        %s3859 = scalar_select %p3858, %s3855, 31
        %s3860 = smul.addr %s3857, 32
        %s3861 = sadd.s32 %s3859, %s3860
        %s3862 = smul.addr %s3861, 4
        %s3863 = scalar_lea.vmem %s7, %s3862
        // Predicated region
        $region57: #{cnn_attention_forward.5} parent=47 // pred_check
          %p3864 = pneg %p218
        $region58: #{cnn_attention_forward.5} parent=47 // pred_check_branch
          %3866 = sbr.rel (%p3864) target = $region60
        $region59: #{cnn_attention_forward.5} parent=47 // pred_region
          %s3867 = smul.u32 16, %s24
        $region60: #{cnn_attention_forward.5} parent=47 // pred_fallthru
          _
      $region48: #{cnn_attention_forward.5} parent=5 // pred_fallthru
        _
      %p3868 = scmp.le.s32.totalorder 2, %s14
      // Predicated region
      $region61: #{cnn_attention_forward.5} parent=5 // pred_check
        %p3869 = pneg %p3868
      $region62: #{cnn_attention_forward.5} parent=5 // pred_check_branch
        %3871 = sbr.rel (%p3869) target = $region64
      $region63: #{cnn_attention_forward.5} parent=5 // pred_region
        %s3872 = ssub.s32 %s14, 2
        // Predicated region
        $region65: #{cnn_attention_forward.5} parent=63 // pred_check
          %p3873 = pneg %p224
        $region66: #{cnn_attention_forward.5} parent=63 // pred_check_branch
          %3875 = sbr.rel (%p3873) target = $region68
        $region67: #{cnn_attention_forward.5} parent=63 // pred_region
          %s3876 = smul.u32 16, %s26
          %p3877 = scmp.lt.s32.totalorder %s25, 1
          %s3878 = scalar_select %p3877, %s25, 1
          %p3879 = scmp.lt.s32.totalorder %s3876, 31
          %s3880 = scalar_select %p3879, %s3876, 31
          %s3881 = smul.addr %s3878, 32
          %s3882 = sadd.s32 %s3880, %s3881
          %s3883 = smul.addr %s3882, 4
          %s3884 = scalar_lea.vmem %s7, %s3883
        $region68: #{cnn_attention_forward.5} parent=63 // pred_fallthru
          _
      $region64: #{cnn_attention_forward.5} parent=5 // pred_fallthru
        _
    $region6: #{cnn_attention_forward.5} parent=1 // loop_footer
      %s18 = sadd.s32 1, %s14
    $region7: #{cnn_attention_forward.5} parent=1 // loop_footer_branch
      %13 = sbr.rel target = $region3
    $region8: #{cnn_attention_forward.5} parent=1 // loop_exit
      _
    %3885 = vsyncpa [#allocation4], 1
    %s3886 = scalar_lea.sflag [#allocation4], 1
    %3887 = vsyncpa %s3886, 1

</llo_original>
